<compile_context>
chip_gen: v7x
topology: tpu7x:2x2x1
jax: 0.10.0
libtpu: 0.0.40
codegen_flags: <defaults>
</compile_context>

<pallas_src>
import functools
import math

import jax
import jax.numpy as jnp
from jax.experimental import pallas as pl
from jax.experimental.pallas import tpu as pltpu


# ----------------------------------------------------------------------------
# In-kernel building blocks (values stay in vregs/VMEM; no HBM round trips).
# ----------------------------------------------------------------------------

def _mm(a, b, bias=None):
    y = jnp.dot(a.astype(b.dtype), b, preferred_element_type=jnp.float32)
    if bias is not None:
        y = y + bias
    return y


def _layer_norm(x, g, b, eps=1e-5):
    mean = jnp.mean(x, axis=-1, keepdims=True)
    var = jnp.mean(jnp.square(x - mean), axis=-1, keepdims=True)
    return (x - mean) * jax.lax.rsqrt(var + eps) * g + b


def _attention(q, k, v, heads, out_ref, rows, cdt):
    """q: (rows, D), k/v: (Sk, D).  Per-head outputs are stored into the VMEM
    scratch `out_ref` at static lane offsets (no lane concatenate)."""
    d = q.shape[-1]
    dh = d // heads
    q = q * jnp.float32(1.0 / math.sqrt(dh))          # fold scale in once
    for h in range(heads):
        lo, hi = h * dh, (h + 1) * dh
        qh = q[:, lo:hi].astype(cdt)
        kh = k[:, lo:hi].astype(cdt)
        vh = v[:, lo:hi].astype(cdt)
        # q @ k^T without materializing a transpose (contract last dims).
        s = jax.lax.dot_general(qh, kh, (((1,), (1,)), ((), ())),
                                preferred_element_type=jnp.float32)
        m = jnp.max(s, axis=-1, keepdims=True)
        p = jnp.exp(s - m)
        p = p / jnp.sum(p, axis=-1, keepdims=True)     # exact division
        out_ref[0:rows, lo:hi] = jnp.dot(p.astype(cdt), vh,
                                         preferred_element_type=jnp.float32)
    return out_ref[0:rows, :]


# ----------------------------------------------------------------------------
# Single fused kernel: encoder -> decoder -> class head + sigmoid.
# ----------------------------------------------------------------------------

def _ner_fused_kernel(x_ref,
                      e_wqkv, e_wo, e_wf1, e_wf2, e_vec,
                      d_swv, d_swo, d_cwq, d_cwkv, d_cwo, d_wf1, d_wf2, d_vec,
                      w_out, misc,
                      probs_ref,
                      att,                                   # VMEM scratch
                      *, le, ld, he, hd, d, f, enc_scale, cdt):
    seq = x_ref.shape[0]

    x = x_ref[...]
    if enc_scale:
        x = x * jnp.float32(math.sqrt(d))

    # ---------------- encoder (static unrolled) ----------------
    for l in range(le):
        vec = e_vec[l]                                       # (8, W)
        bqkv = vec[0:1, :3 * d]
        bo = vec[1:2, :d]
        g1 = vec[2:3, :d]
        b1 = vec[3:4, :d]
        bf1 = vec[4:5, :f]
        bf2 = vec[5:6, :d]
        g2 = vec[6:7, :d]
        b2 = vec[7:8, :d]

        qkv = _mm(x, e_wqkv[l], bqkv)                        # fused Q|K|V
        q, k, v = qkv[:, :d], qkv[:, d:2 * d], qkv[:, 2 * d:]
        a = _mm(_attention(q, k, v, he, att, seq, cdt), e_wo[l], bo)
        h = _layer_norm(a + x, g1, b1)
        ffn = jnp.maximum(_mm(h, e_wf1[l], bf1), 0.0)
        ffn = _mm(ffn, e_wf2[l], bf2)
        x = _layer_norm(ffn + h, g2, b2)
    enc = x

    # Cross-attn K/V for ALL decoder layers in one lane-dense matmul
    # (enc is fixed after the encoder; Enc_keys == Enc_values == enc).
    ckv_all = _mm(enc, d_cwkv[...])                          # (seq, ld*2d)

    # ---------------- decoder (single-row BOS buffer) ----------------
    buf = misc[0:1, :d]                                      # BOS embedding
    for l in range(ld):
        vec = d_vec[l]                                       # (14, W)
        sbv = vec[0:1, :d]
        sbo = vec[1:2, :d]
        gs = vec[2:3, :d]
        bs = vec[3:4, :d]
        cbq = vec[4:5, :d]
        cbk = vec[5:6, :d]
        cbv = vec[6:7, :d]
        cbo = vec[7:8, :d]
        gc = vec[8:9, :d]
        bc = vec[9:10, :d]
        bf1 = vec[10:11, :f]
        bf2 = vec[11:12, :d]
        gf = vec[12:13, :d]
        bfv = vec[13:14, :d]

        # Self-attention on a 1-row buffer: softmax of a 1x1 score == 1, so
        # the attention output is exactly the V projection (Q/K skipped).
        sv = _mm(buf, d_swv[l], sbv)
        a = _mm(sv, d_swo[l], sbo)
        query = _layer_norm(a + buf, gs, bs)

        # Cross attention; K/V slabs sliced from the hoisted projection.
        cq = _mm(query, d_cwq[l], cbq)
        ck = ckv_all[:, l * 2 * d:l * 2 * d + d] + cbk
        cv = ckv_all[:, l * 2 * d + d:(l + 1) * 2 * d] + cbv
        catt = _attention(cq, ck, cv, hd, att, 1, cdt)
        c = _mm(catt, d_cwo[l], cbo)
        y = _layer_norm(c + query, gc, bc)

        ffn = jnp.maximum(_mm(y, d_wf1[l], bf1), 0.0)
        ffn = _mm(ffn, d_wf2[l], bf2)
        buf = _layer_norm(ffn + y, gf, bfv)

    # Classification head + sigmoid on buffer[-1]; lane-dense padded output.
    logits = _mm(buf, w_out[...], misc[1:2, :])              # (1, P)
    probs_ref[...] = 1.0 / (1.0 + jnp.exp(-logits))


# ----------------------------------------------------------------------------
# Host-side packing / wrapper.
# ----------------------------------------------------------------------------

def _default_use_bf16():
    try:
        kind = jax.devices()[0].device_kind.lower()
    except Exception:
        return False
    return ("v6" in kind) or ("v7" in kind)    # v5e has no bf16 VPU -> keep f32


def _pad_last(a, width):
    return jnp.pad(a, [(0, 0)] * (a.ndim - 1) + [(0, width - a.shape[-1])])


def _pack_inputs(params, x, cfg, use_bf16):
    d = cfg["model_dim"]
    f = cfg["forward_expansion"] * d
    c = cfg["num_Classes"]
    ld = cfg["num_Dec_layers"]
    W = max(3 * d, f)                               # vector-pack row width
    P = ((max(d, c, 128) + 127) // 128) * 128       # lane-dense output width
    wdt = jnp.bfloat16 if use_bf16 else jnp.float32
    enc, dec = params["enc"], params["dec"]

    e_vec = jnp.concatenate(
        [_pad_last(enc[k], W) for k in
         ("bqkv", "bo", "g1", "b1", "bf1", "bf2", "g2", "b2")], axis=1)

    sbv = dec["sbqkv"][:, :, 2 * d:]                # only V third is needed
    cbk = dec["cbkv"][:, :, :d]
    cbv = dec["cbkv"][:, :, d:]
    d_rows = [sbv, dec["sbo"], dec["gs"], dec["bs"],
              dec["cbq"], cbk, cbv, dec["cbo"], dec["gc"], dec["bc"],
              dec["bf1"], dec["bf2"], dec["gf"], dec["bf"]]
    d_vec = jnp.concatenate([_pad_last(r, W) for r in d_rows], axis=1)

    # Stack all layers' cross-K/V weights along the output dim: (d, ld*2d).
    d_cwkv_all = jnp.moveaxis(dec["cwkv"], 0, 1).reshape(d, ld * 2 * d)

    misc = jnp.concatenate([_pad_last(params["bos"], P),
                            _pad_last(params["b_out"], P)], axis=0)
    w_out = _pad_last(params["w_out"], P)

    cast = lambda a: a.astype(wdt)
    inputs = [
        x.astype(jnp.float32),
        cast(enc["wqkv"]), cast(enc["wo"]), cast(enc["wf1"]), cast(enc["wf2"]),
        e_vec.astype(jnp.float32),
        cast(dec["swqkv"][:, :, 2 * d:]), cast(dec["swo"]), cast(dec["cwq"]),
        cast(d_cwkv_all), cast(dec["cwo"]), cast(dec["wf1"]), cast(dec["wf2"]),
        d_vec.astype(jnp.float32),
        cast(w_out), misc.astype(jnp.float32),
    ]
    return inputs, P


def _cost_estimate(cfg, seq, bytes_accessed):
    d = cfg["model_dim"]
    f = cfg["forward_expansion"] * d
    le, ld, c = cfg["num_Enc_layers"], cfg["num_Dec_layers"], cfg["num_Classes"]
    s = seq
    enc_flops = le * (2 * s * d * 3 * d + 4 * s * s * d + 2 * s * d * d
                      + 4 * s * d * f)
    dec_flops = ld * (4 * d * d + 2 * d * d + 2 * s * d * 2 * d
                      + 4 * s * d + 2 * d * d + 4 * d * f)
    head_flops = 2 * d * c
    exps = le * cfg["heads_Enc"] * s * s + ld * cfg["heads_Dec"] * s + c
    return pl.CostEstimate(flops=int(enc_flops + dec_flops + head_flops),
                           transcendentals=int(exps),
                           bytes_accessed=int(bytes_accessed))


def ner_class_forward(params, x, cfg, masked=True, enc_scale=True,
                      use_bf16=None):
    if use_bf16 is None:
        use_bf16 = _default_use_bf16()
    d = cfg["model_dim"]
    f = cfg["forward_expansion"] * d
    c = cfg["num_Classes"]
    seq = x.shape[0]

    inputs, P = _pack_inputs(params, x, cfg, use_bf16)
    bytes_accessed = sum(int(a.size) * a.dtype.itemsize for a in inputs) + 4 * P

    cdt = jnp.bfloat16 if use_bf16 else jnp.float32
    kernel = functools.partial(
        _ner_fused_kernel,
        le=cfg["num_Enc_layers"], ld=cfg["num_Dec_layers"],
        he=cfg["heads_Enc"], hd=cfg["heads_Dec"],
        d=d, f=f, enc_scale=enc_scale, cdt=cdt)

    vmem = pl.BlockSpec(memory_space=pltpu.MemorySpace.VMEM)
    probs = pl.pallas_call(
        kernel,
        out_shape=jax.ShapeDtypeStruct((1, P), jnp.float32),
        in_specs=[vmem] * len(inputs),
        out_specs=vmem,
        scratch_shapes=[pltpu.VMEM((seq, d), jnp.float32)],
        compiler_params=pltpu.CompilerParams(vmem_limit_bytes=16 * 1024 * 1024),
        cost_estimate=_cost_estimate(cfg, seq, bytes_accessed),
    )(*inputs)

    out = probs[0, :c]                              # (num_Classes,)
    if masked:
        return out >= 0.5                           # torch .ge(0.5) -> bool
    return out


def ner_class_handler_forward(params, x, cfg, masked_out=True):
    # TODO(synk): the PyTorch split branch (x.shape[0] > num_Classes) calls
    # range() on a float and cannot execute in Python 3; only the reachable
    # non-split path is implemented here.
    assert x.shape[0] <= cfg["num_Classes"]
    return ner_class_forward(params, x, cfg, masked=masked_out, enc_scale=True)


# ----------------------------------------------------------------------------
# Deterministic parameter initialization (synthetic; no checkpoint files).
# Per-layer weights are stacked with a leading layer axis.
# ----------------------------------------------------------------------------

def _uniform(key, shape, bound):
    return jax.random.uniform(key, shape, jnp.float32, -bound, bound)


def init_params(key, cfg):
    d = cfg["model_dim"]
    f = cfg["forward_expansion"] * d
    c = cfg["num_Classes"]
    le = cfg["num_Enc_layers"]
    ld = cfg["num_Dec_layers"]
    bd = 1.0 / math.sqrt(d)
    bf = 1.0 / math.sqrt(f)

    keys = iter(jax.random.split(key, 32))
    nk = lambda: next(keys)

    enc = {
        "wqkv": _uniform(nk(), (le, d, 3 * d), bd),
        "bqkv": _uniform(nk(), (le, 1, 3 * d), bd),
        "wo":   _uniform(nk(), (le, d, d), bd),
        "bo":   _uniform(nk(), (le, 1, d), bd),
        "g1":   jnp.ones((le, 1, d), jnp.float32),
        "b1":   jnp.zeros((le, 1, d), jnp.float32),
        "wf1":  _uniform(nk(), (le, d, f), bd),
        "bf1":  _uniform(nk(), (le, 1, f), bd),
        "wf2":  _uniform(nk(), (le, f, d), bf),
        "bf2":  _uniform(nk(), (le, 1, d), bf),
        "g2":   jnp.ones((le, 1, d), jnp.float32),
        "b2":   jnp.zeros((le, 1, d), jnp.float32),
    }
    dec = {
        "swqkv": _uniform(nk(), (ld, d, 3 * d), bd),
        "sbqkv": _uniform(nk(), (ld, 1, 3 * d), bd),
        "swo":   _uniform(nk(), (ld, d, d), bd),
        "sbo":   _uniform(nk(), (ld, 1, d), bd),
        "gs":    jnp.ones((ld, 1, d), jnp.float32),
        "bs":    jnp.zeros((ld, 1, d), jnp.float32),
        "cwq":   _uniform(nk(), (ld, d, d), bd),
        "cbq":   _uniform(nk(), (ld, 1, d), bd),
        "cwkv":  _uniform(nk(), (ld, d, 2 * d), bd),
        "cbkv":  _uniform(nk(), (ld, 1, 2 * d), bd),
        "cwo":   _uniform(nk(), (ld, d, d), bd),
        "cbo":   _uniform(nk(), (ld, 1, d), bd),
        "gc":    jnp.ones((ld, 1, d), jnp.float32),
        "bc":    jnp.zeros((ld, 1, d), jnp.float32),
        "wf1":   _uniform(nk(), (ld, d, f), bd),
        "bf1":   _uniform(nk(), (ld, 1, f), bd),
        "wf2":   _uniform(nk(), (ld, f, d), bf),
        "bf2":   _uniform(nk(), (ld, 1, d), bf),
        "gf":    jnp.ones((ld, 1, d), jnp.float32),
        "bf":    jnp.zeros((ld, 1, d), jnp.float32),
    }

    k_out_w, k_out_b, k_cls = jax.random.split(nk(), 3)
    # TODO(synk): CLS_token.json / SEP_token.json are unavailable; the BOS
    # (CLS) embedding is synthesized deterministically instead.
    bos = jax.random.normal(k_cls, (1, d), jnp.float32)

    return {
        "enc": enc,
        "dec": dec,
        "bos": bos,
        "w_out": _uniform(k_out_w, (d, c), bd),
        "b_out": _uniform(k_out_b, (1, c), bd),
    }


# ----------------------------------------------------------------------------
if __name__ == "__main__":
    cfg = dict(model_dim=32, heads_Enc=4, heads_Dec=4,
               num_Enc_layers=2, num_Dec_layers=2,
               num_Classes=8, forward_expansion=4)
    seq_len = 8  # <= num_Classes so the reachable non-split handler path runs

    root = jax.random.PRNGKey(0)
    k_params, k_x = jax.random.split(root)
    params = init_params(k_params, cfg)
    x = jax.random.normal(k_x, (seq_len, cfg["model_dim"]), jnp.float32)

    fwd = jax.jit(functools.partial(ner_class_handler_forward, cfg=cfg,
                                    masked_out=True))
    out = fwd(params, x)
    jax.block_until_ready(out)
    assert out.shape == (cfg["num_Classes"],) and out.dtype == jnp.bool_
    print("KERNEL_OK")
</pallas_src>

<mosaic_0001>
module attributes {stable_mosaic.version = 11 : i64} {
  func.func @_ner_fused_kernel(%arg0: memref<8x32xf32, #tpu.memory_space<vmem>>, %arg1: memref<2x32x96xf32, #tpu.memory_space<vmem>>, %arg2: memref<2x32x32xf32, #tpu.memory_space<vmem>>, %arg3: memref<2x32x128xf32, #tpu.memory_space<vmem>>, %arg4: memref<2x128x32xf32, #tpu.memory_space<vmem>>, %arg5: memref<2x8x128xf32, #tpu.memory_space<vmem>>, %arg6: memref<2x32x32xf32, #tpu.memory_space<vmem>>, %arg7: memref<2x32x32xf32, #tpu.memory_space<vmem>>, %arg8: memref<2x32x32xf32, #tpu.memory_space<vmem>>, %arg9: memref<32x128xf32, #tpu.memory_space<vmem>>, %arg10: memref<2x32x32xf32, #tpu.memory_space<vmem>>, %arg11: memref<2x32x128xf32, #tpu.memory_space<vmem>>, %arg12: memref<2x128x32xf32, #tpu.memory_space<vmem>>, %arg13: memref<2x14x128xf32, #tpu.memory_space<vmem>>, %arg14: memref<32x128xf32, #tpu.memory_space<vmem>>, %arg15: memref<2x128xf32, #tpu.memory_space<vmem>>, %arg16: memref<1x128xf32, #tpu.memory_space<vmem>>, %arg17: memref<8x32xf32, #tpu.memory_space<vmem>>) attributes {dimension_semantics = [], scalar_prefetch = 0 : i64, scratch_operands = 1 : i64, tpu.core_type = #tpu.core_type<tc>} {
    %c0 = arith.constant 0 : index
    %c0_0 = arith.constant 0 : index
    %0 = vector.load %arg0[%c0, %c0_0] : memref<8x32xf32, #tpu.memory_space<vmem>>, vector<8x32xf32>
    %cst = arith.constant 5.65685415 : f32
    %1 = vector.broadcast %cst : f32 to vector<8x32xf32>
    %2 = arith.mulf %0, %1 : vector<8x32xf32>
    %c0_1 = arith.constant 0 : index
    %c0_2 = arith.constant 0 : index
    %c0_3 = arith.constant 0 : index
    %3 = vector.load %arg5[%c0_1, %c0_2, %c0_3] : memref<2x8x128xf32, #tpu.memory_space<vmem>>, vector<1x8x128xf32>
    %4 = vector.shape_cast %3 : vector<1x8x128xf32> to vector<8x128xf32>
    %5 = vector.extract_strided_slice %4 {offsets = [0, 0], sizes = [1, 96], strides = [1, 1]} : vector<8x128xf32> to vector<1x96xf32>
    %6 = vector.extract_strided_slice %4 {offsets = [1, 0], sizes = [1, 32], strides = [1, 1]} : vector<8x128xf32> to vector<1x32xf32>
    %7 = vector.extract_strided_slice %4 {offsets = [2, 0], sizes = [1, 32], strides = [1, 1]} : vector<8x128xf32> to vector<1x32xf32>
    %8 = vector.extract_strided_slice %4 {offsets = [3, 0], sizes = [1, 32], strides = [1, 1]} : vector<8x128xf32> to vector<1x32xf32>
    %9 = vector.extract_strided_slice %4 {offsets = [4, 0], sizes = [1, 128], strides = [1, 1]} : vector<8x128xf32> to vector<1x128xf32>
    %10 = vector.extract_strided_slice %4 {offsets = [5, 0], sizes = [1, 32], strides = [1, 1]} : vector<8x128xf32> to vector<1x32xf32>
    %11 = vector.extract_strided_slice %4 {offsets = [6, 0], sizes = [1, 32], strides = [1, 1]} : vector<8x128xf32> to vector<1x32xf32>
    %12 = vector.extract_strided_slice %4 {offsets = [7, 0], sizes = [1, 32], strides = [1, 1]} : vector<8x128xf32> to vector<1x32xf32>
    %c0_4 = arith.constant 0 : index
    %c0_5 = arith.constant 0 : index
    %c0_6 = arith.constant 0 : index
    %13 = vector.load %arg1[%c0_4, %c0_5, %c0_6] : memref<2x32x96xf32, #tpu.memory_space<vmem>>, vector<1x32x96xf32>
    %14 = vector.shape_cast %13 : vector<1x32x96xf32> to vector<32x96xf32>
    %cst_7 = arith.constant dense<0.000000e+00> : vector<8x96xf32>
    %15 = tpu.matmul %2, %14, %cst_7 {dimension_numbers = #tpu.dot_dimension_numbers<[1], [0], [0], [1], [0, 0, 1, 1], [], []>} : vector<8x32xf32>, vector<32x96xf32>, vector<8x96xf32> -> vector<8x96xf32>
    %16 = vector.broadcast %5 : vector<1x96xf32> to vector<8x96xf32>
    %17 = arith.addf %15, %16 : vector<8x96xf32>
    %18 = vector.extract_strided_slice %17 {offsets = [0, 0], sizes = [8, 32], strides = [1, 1]} : vector<8x96xf32> to vector<8x32xf32>
    %19 = vector.extract_strided_slice %17 {offsets = [0, 32], sizes = [8, 32], strides = [1, 1]} : vector<8x96xf32> to vector<8x32xf32>
    %20 = vector.extract_strided_slice %17 {offsets = [0, 64], sizes = [8, 32], strides = [1, 1]} : vector<8x96xf32> to vector<8x32xf32>
    %cst_8 = arith.constant 0.353553385 : f32
    %21 = vector.broadcast %cst_8 : f32 to vector<8x32xf32>
    %22 = arith.mulf %18, %21 : vector<8x32xf32>
    %23 = vector.extract_strided_slice %22 {offsets = [0, 0], sizes = [8, 8], strides = [1, 1]} : vector<8x32xf32> to vector<8x8xf32>
    %24 = vector.extract_strided_slice %19 {offsets = [0, 0], sizes = [8, 8], strides = [1, 1]} : vector<8x32xf32> to vector<8x8xf32>
    %25 = vector.extract_strided_slice %20 {offsets = [0, 0], sizes = [8, 8], strides = [1, 1]} : vector<8x32xf32> to vector<8x8xf32>
    %cst_9 = arith.constant dense<0.000000e+00> : vector<8x8xf32>
    %26 = tpu.matmul %23, %24, %cst_9 {dimension_numbers = #tpu.dot_dimension_numbers<[1], [1], [0], [0], [0, 0, 1, 0], [], []>} : vector<8x8xf32>, vector<8x8xf32>, vector<8x8xf32> -> vector<8x8xf32>
    %cst_10 = arith.constant dense<0xFF800000> : vector<8xf32>
    %27 = vector.multi_reduction <maximumf>, %26, %cst_10 [1] : vector<8x8xf32> to vector<8xf32>
    %28 = vector.shape_cast %27 : vector<8xf32> to vector<8x1xf32>
    %29 = vector.broadcast %28 : vector<8x1xf32> to vector<8x8xf32>
    %30 = arith.subf %26, %29 : vector<8x8xf32>
    %31 = math.exp %30 : vector<8x8xf32>
    %cst_11 = arith.constant dense<0.000000e+00> : vector<8xf32>
    %32 = vector.multi_reduction <add>, %31, %cst_11 [1] : vector<8x8xf32> to vector<8xf32>
    %33 = vector.shape_cast %32 : vector<8xf32> to vector<8x1xf32>
    %34 = vector.broadcast %33 : vector<8x1xf32> to vector<8x8xf32>
    %35 = arith.divf %31, %34 : vector<8x8xf32>
    %cst_12 = arith.constant dense<0.000000e+00> : vector<8x8xf32>
    %36 = tpu.matmul %35, %25, %cst_12 {dimension_numbers = #tpu.dot_dimension_numbers<[1], [0], [0], [1], [0, 0, 1, 1], [], []>} : vector<8x8xf32>, vector<8x8xf32>, vector<8x8xf32> -> vector<8x8xf32>
    %c0_13 = arith.constant 0 : index
    %c0_14 = arith.constant 0 : index
    %37 = vector.load %arg17[%c0_13, %c0_14] : memref<8x32xf32, #tpu.memory_space<vmem>>, vector<8x8xf32>
    tpu.vector_store %arg17[%c0_13, %c0_14], %36 {strides = array<i32>} : memref<8x32xf32, #tpu.memory_space<vmem>>, vector<8x8xf32>,
    %38 = vector.extract_strided_slice %22 {offsets = [0, 8], sizes = [8, 8], strides = [1, 1]} : vector<8x32xf32> to vector<8x8xf32>
    %39 = vector.extract_strided_slice %19 {offsets = [0, 8], sizes = [8, 8], strides = [1, 1]} : vector<8x32xf32> to vector<8x8xf32>
    %40 = vector.extract_strided_slice %20 {offsets = [0, 8], sizes = [8, 8], strides = [1, 1]} : vector<8x32xf32> to vector<8x8xf32>
    %cst_15 = arith.constant dense<0.000000e+00> : vector<8x8xf32>
    %41 = tpu.matmul %38, %39, %cst_15 {dimension_numbers = #tpu.dot_dimension_numbers<[1], [1], [0], [0], [0, 0, 1, 0], [], []>} : vector<8x8xf32>, vector<8x8xf32>, vector<8x8xf32> -> vector<8x8xf32>
    %cst_16 = arith.constant dense<0xFF800000> : vector<8xf32>
    %42 = vector.multi_reduction <maximumf>, %41, %cst_16 [1] : vector<8x8xf32> to vector<8xf32>
    %43 = vector.shape_cast %42 : vector<8xf32> to vector<8x1xf32>
    %44 = vector.broadcast %43 : vector<8x1xf32> to vector<8x8xf32>
    %45 = arith.subf %41, %44 : vector<8x8xf32>
    %46 = math.exp %45 : vector<8x8xf32>
    %cst_17 = arith.constant dense<0.000000e+00> : vector<8xf32>
    %47 = vector.multi_reduction <add>, %46, %cst_17 [1] : vector<8x8xf32> to vector<8xf32>
    %48 = vector.shape_cast %47 : vector<8xf32> to vector<8x1xf32>
    %49 = vector.broadcast %48 : vector<8x1xf32> to vector<8x8xf32>
    %50 = arith.divf %46, %49 : vector<8x8xf32>
    %cst_18 = arith.constant dense<0.000000e+00> : vector<8x8xf32>
    %51 = tpu.matmul %50, %40, %cst_18 {dimension_numbers = #tpu.dot_dimension_numbers<[1], [0], [0], [1], [0, 0, 1, 1], [], []>} : vector<8x8xf32>, vector<8x8xf32>, vector<8x8xf32> -> vector<8x8xf32>
    %c0_19 = arith.constant 0 : index
    %c8 = arith.constant 8 : index
    %52 = vector.load %arg17[%c0_19, %c8] : memref<8x32xf32, #tpu.memory_space<vmem>>, vector<8x8xf32>
    tpu.vector_store %arg17[%c0_19, %c8], %51 {strides = array<i32>} : memref<8x32xf32, #tpu.memory_space<vmem>>, vector<8x8xf32>,
    %53 = vector.extract_strided_slice %22 {offsets = [0, 16], sizes = [8, 8], strides = [1, 1]} : vector<8x32xf32> to vector<8x8xf32>
    %54 = vector.extract_strided_slice %19 {offsets = [0, 16], sizes = [8, 8], strides = [1, 1]} : vector<8x32xf32> to vector<8x8xf32>
    %55 = vector.extract_strided_slice %20 {offsets = [0, 16], sizes = [8, 8], strides = [1, 1]} : vector<8x32xf32> to vector<8x8xf32>
    %cst_20 = arith.constant dense<0.000000e+00> : vector<8x8xf32>
    %56 = tpu.matmul %53, %54, %cst_20 {dimension_numbers = #tpu.dot_dimension_numbers<[1], [1], [0], [0], [0, 0, 1, 0], [], []>} : vector<8x8xf32>, vector<8x8xf32>, vector<8x8xf32> -> vector<8x8xf32>
    %cst_21 = arith.constant dense<0xFF800000> : vector<8xf32>
    %57 = vector.multi_reduction <maximumf>, %56, %cst_21 [1] : vector<8x8xf32> to vector<8xf32>
    %58 = vector.shape_cast %57 : vector<8xf32> to vector<8x1xf32>
    %59 = vector.broadcast %58 : vector<8x1xf32> to vector<8x8xf32>
    %60 = arith.subf %56, %59 : vector<8x8xf32>
    %61 = math.exp %60 : vector<8x8xf32>
    %cst_22 = arith.constant dense<0.000000e+00> : vector<8xf32>
    %62 = vector.multi_reduction <add>, %61, %cst_22 [1] : vector<8x8xf32> to vector<8xf32>
    %63 = vector.shape_cast %62 : vector<8xf32> to vector<8x1xf32>
    %64 = vector.broadcast %63 : vector<8x1xf32> to vector<8x8xf32>
    %65 = arith.divf %61, %64 : vector<8x8xf32>
    %cst_23 = arith.constant dense<0.000000e+00> : vector<8x8xf32>
    %66 = tpu.matmul %65, %55, %cst_23 {dimension_numbers = #tpu.dot_dimension_numbers<[1], [0], [0], [1], [0, 0, 1, 1], [], []>} : vector<8x8xf32>, vector<8x8xf32>, vector<8x8xf32> -> vector<8x8xf32>
    %c0_24 = arith.constant 0 : index
    %c16 = arith.constant 16 : index
    %67 = vector.load %arg17[%c0_24, %c16] : memref<8x32xf32, #tpu.memory_space<vmem>>, vector<8x8xf32>
    tpu.vector_store %arg17[%c0_24, %c16], %66 {strides = array<i32>} : memref<8x32xf32, #tpu.memory_space<vmem>>, vector<8x8xf32>,
    %68 = vector.extract_strided_slice %22 {offsets = [0, 24], sizes = [8, 8], strides = [1, 1]} : vector<8x32xf32> to vector<8x8xf32>
    %69 = vector.extract_strided_slice %19 {offsets = [0, 24], sizes = [8, 8], strides = [1, 1]} : vector<8x32xf32> to vector<8x8xf32>
    %70 = vector.extract_strided_slice %20 {offsets = [0, 24], sizes = [8, 8], strides = [1, 1]} : vector<8x32xf32> to vector<8x8xf32>
    %cst_25 = arith.constant dense<0.000000e+00> : vector<8x8xf32>
    %71 = tpu.matmul %68, %69, %cst_25 {dimension_numbers = #tpu.dot_dimension_numbers<[1], [1], [0], [0], [0, 0, 1, 0], [], []>} : vector<8x8xf32>, vector<8x8xf32>, vector<8x8xf32> -> vector<8x8xf32>
    %cst_26 = arith.constant dense<0xFF800000> : vector<8xf32>
    %72 = vector.multi_reduction <maximumf>, %71, %cst_26 [1] : vector<8x8xf32> to vector<8xf32>
    %73 = vector.shape_cast %72 : vector<8xf32> to vector<8x1xf32>
    %74 = vector.broadcast %73 : vector<8x1xf32> to vector<8x8xf32>
    %75 = arith.subf %71, %74 : vector<8x8xf32>
    %76 = math.exp %75 : vector<8x8xf32>
    %cst_27 = arith.constant dense<0.000000e+00> : vector<8xf32>
    %77 = vector.multi_reduction <add>, %76, %cst_27 [1] : vector<8x8xf32> to vector<8xf32>
    %78 = vector.shape_cast %77 : vector<8xf32> to vector<8x1xf32>
    %79 = vector.broadcast %78 : vector<8x1xf32> to vector<8x8xf32>
    %80 = arith.divf %76, %79 : vector<8x8xf32>
    %cst_28 = arith.constant dense<0.000000e+00> : vector<8x8xf32>
    %81 = tpu.matmul %80, %70, %cst_28 {dimension_numbers = #tpu.dot_dimension_numbers<[1], [0], [0], [1], [0, 0, 1, 1], [], []>} : vector<8x8xf32>, vector<8x8xf32>, vector<8x8xf32> -> vector<8x8xf32>
    %c0_29 = arith.constant 0 : index
    %c24 = arith.constant 24 : index
    %82 = vector.load %arg17[%c0_29, %c24] : memref<8x32xf32, #tpu.memory_space<vmem>>, vector<8x8xf32>
    tpu.vector_store %arg17[%c0_29, %c24], %81 {strides = array<i32>} : memref<8x32xf32, #tpu.memory_space<vmem>>, vector<8x8xf32>,
    %c0_30 = arith.constant 0 : index
    %c0_31 = arith.constant 0 : index
    %83 = vector.load %arg17[%c0_30, %c0_31] : memref<8x32xf32, #tpu.memory_space<vmem>>, vector<8x32xf32>
    %c0_32 = arith.constant 0 : index
    %c0_33 = arith.constant 0 : index
    %c0_34 = arith.constant 0 : index
    %84 = vector.load %arg2[%c0_32, %c0_33, %c0_34] : memref<2x32x32xf32, #tpu.memory_space<vmem>>, vector<1x32x32xf32>
    %85 = vector.shape_cast %84 : vector<1x32x32xf32> to vector<32x32xf32>
    %cst_35 = arith.constant dense<0.000000e+00> : vector<8x32xf32>
    %86 = tpu.matmul %83, %85, %cst_35 {dimension_numbers = #tpu.dot_dimension_numbers<[1], [0], [0], [1], [0, 0, 1, 1], [], []>} : vector<8x32xf32>, vector<32x32xf32>, vector<8x32xf32> -> vector<8x32xf32>
    %87 = vector.broadcast %6 : vector<1x32xf32> to vector<8x32xf32>
    %88 = arith.addf %86, %87 : vector<8x32xf32>
    %89 = arith.addf %88, %2 : vector<8x32xf32>
    %cst_36 = arith.constant dense<0.000000e+00> : vector<8xf32>
    %90 = vector.multi_reduction <add>, %89, %cst_36 [1] : vector<8x32xf32> to vector<8xf32>
    %91 = vector.shape_cast %90 : vector<8xf32> to vector<8x1xf32>
    %cst_37 = arith.constant 3.200000e+01 : f32
    %92 = vector.broadcast %cst_37 : f32 to vector<8x1xf32>
    %93 = arith.divf %91, %92 : vector<8x1xf32>
    %94 = vector.broadcast %93 : vector<8x1xf32> to vector<8x32xf32>
    %95 = arith.subf %89, %94 : vector<8x32xf32>
    %96 = arith.mulf %95, %95 : vector<8x32xf32>
    %cst_38 = arith.constant dense<0.000000e+00> : vector<8xf32>
    %97 = vector.multi_reduction <add>, %96, %cst_38 [1] : vector<8x32xf32> to vector<8xf32>
    %98 = vector.shape_cast %97 : vector<8xf32> to vector<8x1xf32>
    %cst_39 = arith.constant 3.200000e+01 : f32
    %99 = vector.broadcast %cst_39 : f32 to vector<8x1xf32>
    %100 = arith.divf %98, %99 : vector<8x1xf32>
    %101 = vector.broadcast %93 : vector<8x1xf32> to vector<8x32xf32>
    %102 = arith.subf %89, %101 : vector<8x32xf32>
    %cst_40 = arith.constant 9.99999974E-6 : f32
    %103 = vector.broadcast %cst_40 : f32 to vector<8x1xf32>
    %104 = arith.addf %100, %103 : vector<8x1xf32>
    %105 = math.rsqrt %104 : vector<8x1xf32>
    %106 = vector.broadcast %105 : vector<8x1xf32> to vector<8x32xf32>
    %107 = arith.mulf %102, %106 : vector<8x32xf32>
    %108 = vector.broadcast %7 : vector<1x32xf32> to vector<8x32xf32>
    %109 = arith.mulf %107, %108 : vector<8x32xf32>
    %110 = vector.broadcast %8 : vector<1x32xf32> to vector<8x32xf32>
    %111 = arith.addf %109, %110 : vector<8x32xf32>
    %c0_41 = arith.constant 0 : index
    %c0_42 = arith.constant 0 : index
    %c0_43 = arith.constant 0 : index
    %112 = vector.load %arg3[%c0_41, %c0_42, %c0_43] : memref<2x32x128xf32, #tpu.memory_space<vmem>>, vector<1x32x128xf32>
    %113 = vector.shape_cast %112 : vector<1x32x128xf32> to vector<32x128xf32>
    %cst_44 = arith.constant dense<0.000000e+00> : vector<8x128xf32>
    %114 = tpu.matmul %111, %113, %cst_44 {dimension_numbers = #tpu.dot_dimension_numbers<[1], [0], [0], [1], [0, 0, 1, 1], [], []>} : vector<8x32xf32>, vector<32x128xf32>, vector<8x128xf32> -> vector<8x128xf32>
    %115 = vector.broadcast %9 : vector<1x128xf32> to vector<8x128xf32>
    %116 = arith.addf %114, %115 : vector<8x128xf32>
    %cst_45 = arith.constant 0.000000e+00 : f32
    %117 = vector.broadcast %cst_45 : f32 to vector<8x128xf32>
    %118 = arith.maximumf %116, %117 : vector<8x128xf32>
    %c0_46 = arith.constant 0 : index
    %c0_47 = arith.constant 0 : index
    %c0_48 = arith.constant 0 : index
    %119 = vector.load %arg4[%c0_46, %c0_47, %c0_48] : memref<2x128x32xf32, #tpu.memory_space<vmem>>, vector<1x128x32xf32>
    %120 = vector.shape_cast %119 : vector<1x128x32xf32> to vector<128x32xf32>
    %cst_49 = arith.constant dense<0.000000e+00> : vector<8x32xf32>
    %121 = tpu.matmul %118, %120, %cst_49 {dimension_numbers = #tpu.dot_dimension_numbers<[1], [0], [0], [1], [0, 0, 1, 1], [], []>} : vector<8x128xf32>, vector<128x32xf32>, vector<8x32xf32> -> vector<8x32xf32>
    %122 = vector.broadcast %10 : vector<1x32xf32> to vector<8x32xf32>
    %123 = arith.addf %121, %122 : vector<8x32xf32>
    %124 = arith.addf %123, %111 : vector<8x32xf32>
    %cst_50 = arith.constant dense<0.000000e+00> : vector<8xf32>
    %125 = vector.multi_reduction <add>, %124, %cst_50 [1] : vector<8x32xf32> to vector<8xf32>
    %126 = vector.shape_cast %125 : vector<8xf32> to vector<8x1xf32>
    %cst_51 = arith.constant 3.200000e+01 : f32
    %127 = vector.broadcast %cst_51 : f32 to vector<8x1xf32>
    %128 = arith.divf %126, %127 : vector<8x1xf32>
    %129 = vector.broadcast %128 : vector<8x1xf32> to vector<8x32xf32>
    %130 = arith.subf %124, %129 : vector<8x32xf32>
    %131 = arith.mulf %130, %130 : vector<8x32xf32>
    %cst_52 = arith.constant dense<0.000000e+00> : vector<8xf32>
    %132 = vector.multi_reduction <add>, %131, %cst_52 [1] : vector<8x32xf32> to vector<8xf32>
    %133 = vector.shape_cast %132 : vector<8xf32> to vector<8x1xf32>
    %cst_53 = arith.constant 3.200000e+01 : f32
    %134 = vector.broadcast %cst_53 : f32 to vector<8x1xf32>
    %135 = arith.divf %133, %134 : vector<8x1xf32>
    %136 = vector.broadcast %128 : vector<8x1xf32> to vector<8x32xf32>
    %137 = arith.subf %124, %136 : vector<8x32xf32>
    %cst_54 = arith.constant 9.99999974E-6 : f32
    %138 = vector.broadcast %cst_54 : f32 to vector<8x1xf32>
    %139 = arith.addf %135, %138 : vector<8x1xf32>
    %140 = math.rsqrt %139 : vector<8x1xf32>
    %141 = vector.broadcast %140 : vector<8x1xf32> to vector<8x32xf32>
    %142 = arith.mulf %137, %141 : vector<8x32xf32>
    %143 = vector.broadcast %11 : vector<1x32xf32> to vector<8x32xf32>
    %144 = arith.mulf %142, %143 : vector<8x32xf32>
    %145 = vector.broadcast %12 : vector<1x32xf32> to vector<8x32xf32>
    %146 = arith.addf %144, %145 : vector<8x32xf32>
    %c1 = arith.constant 1 : index
    %c0_55 = arith.constant 0 : index
    %c0_56 = arith.constant 0 : index
    %147 = vector.load %arg5[%c1, %c0_55, %c0_56] : memref<2x8x128xf32, #tpu.memory_space<vmem>>, vector<1x8x128xf32>
    %148 = vector.shape_cast %147 : vector<1x8x128xf32> to vector<8x128xf32>
    %149 = vector.extract_strided_slice %148 {offsets = [0, 0], sizes = [1, 96], strides = [1, 1]} : vector<8x128xf32> to vector<1x96xf32>
    %150 = vector.extract_strided_slice %148 {offsets = [1, 0], sizes = [1, 32], strides = [1, 1]} : vector<8x128xf32> to vector<1x32xf32>
    %151 = vector.extract_strided_slice %148 {offsets = [2, 0], sizes = [1, 32], strides = [1, 1]} : vector<8x128xf32> to vector<1x32xf32>
    %152 = vector.extract_strided_slice %148 {offsets = [3, 0], sizes = [1, 32], strides = [1, 1]} : vector<8x128xf32> to vector<1x32xf32>
    %153 = vector.extract_strided_slice %148 {offsets = [4, 0], sizes = [1, 128], strides = [1, 1]} : vector<8x128xf32> to vector<1x128xf32>
    %154 = vector.extract_strided_slice %148 {offsets = [5, 0], sizes = [1, 32], strides = [1, 1]} : vector<8x128xf32> to vector<1x32xf32>
    %155 = vector.extract_strided_slice %148 {offsets = [6, 0], sizes = [1, 32], strides = [1, 1]} : vector<8x128xf32> to vector<1x32xf32>
    %156 = vector.extract_strided_slice %148 {offsets = [7, 0], sizes = [1, 32], strides = [1, 1]} : vector<8x128xf32> to vector<1x32xf32>
    %c1_57 = arith.constant 1 : index
    %c0_58 = arith.constant 0 : index
    %c0_59 = arith.constant 0 : index
    %157 = vector.load %arg1[%c1_57, %c0_58, %c0_59] : memref<2x32x96xf32, #tpu.memory_space<vmem>>, vector<1x32x96xf32>
    %158 = vector.shape_cast %157 : vector<1x32x96xf32> to vector<32x96xf32>
    %cst_60 = arith.constant dense<0.000000e+00> : vector<8x96xf32>
    %159 = tpu.matmul %146, %158, %cst_60 {dimension_numbers = #tpu.dot_dimension_numbers<[1], [0], [0], [1], [0, 0, 1, 1], [], []>} : vector<8x32xf32>, vector<32x96xf32>, vector<8x96xf32> -> vector<8x96xf32>
    %160 = vector.broadcast %149 : vector<1x96xf32> to vector<8x96xf32>
    %161 = arith.addf %159, %160 : vector<8x96xf32>
    %162 = vector.extract_strided_slice %161 {offsets = [0, 0], sizes = [8, 32], strides = [1, 1]} : vector<8x96xf32> to vector<8x32xf32>
    %163 = vector.extract_strided_slice %161 {offsets = [0, 32], sizes = [8, 32], strides = [1, 1]} : vector<8x96xf32> to vector<8x32xf32>
    %164 = vector.extract_strided_slice %161 {offsets = [0, 64], sizes = [8, 32], strides = [1, 1]} : vector<8x96xf32> to vector<8x32xf32>
    %cst_61 = arith.constant 0.353553385 : f32
    %165 = vector.broadcast %cst_61 : f32 to vector<8x32xf32>
    %166 = arith.mulf %162, %165 : vector<8x32xf32>
    %167 = vector.extract_strided_slice %166 {offsets = [0, 0], sizes = [8, 8], strides = [1, 1]} : vector<8x32xf32> to vector<8x8xf32>
    %168 = vector.extract_strided_slice %163 {offsets = [0, 0], sizes = [8, 8], strides = [1, 1]} : vector<8x32xf32> to vector<8x8xf32>
    %169 = vector.extract_strided_slice %164 {offsets = [0, 0], sizes = [8, 8], strides = [1, 1]} : vector<8x32xf32> to vector<8x8xf32>
    %cst_62 = arith.constant dense<0.000000e+00> : vector<8x8xf32>
    %170 = tpu.matmul %167, %168, %cst_62 {dimension_numbers = #tpu.dot_dimension_numbers<[1], [1], [0], [0], [0, 0, 1, 0], [], []>} : vector<8x8xf32>, vector<8x8xf32>, vector<8x8xf32> -> vector<8x8xf32>
    %cst_63 = arith.constant dense<0xFF800000> : vector<8xf32>
    %171 = vector.multi_reduction <maximumf>, %170, %cst_63 [1] : vector<8x8xf32> to vector<8xf32>
    %172 = vector.shape_cast %171 : vector<8xf32> to vector<8x1xf32>
    %173 = vector.broadcast %172 : vector<8x1xf32> to vector<8x8xf32>
    %174 = arith.subf %170, %173 : vector<8x8xf32>
    %175 = math.exp %174 : vector<8x8xf32>
    %cst_64 = arith.constant dense<0.000000e+00> : vector<8xf32>
    %176 = vector.multi_reduction <add>, %175, %cst_64 [1] : vector<8x8xf32> to vector<8xf32>
    %177 = vector.shape_cast %176 : vector<8xf32> to vector<8x1xf32>
    %178 = vector.broadcast %177 : vector<8x1xf32> to vector<8x8xf32>
    %179 = arith.divf %175, %178 : vector<8x8xf32>
    %cst_65 = arith.constant dense<0.000000e+00> : vector<8x8xf32>
    %180 = tpu.matmul %179, %169, %cst_65 {dimension_numbers = #tpu.dot_dimension_numbers<[1], [0], [0], [1], [0, 0, 1, 1], [], []>} : vector<8x8xf32>, vector<8x8xf32>, vector<8x8xf32> -> vector<8x8xf32>
    %c0_66 = arith.constant 0 : index
    %c0_67 = arith.constant 0 : index
    %181 = vector.load %arg17[%c0_66, %c0_67] : memref<8x32xf32, #tpu.memory_space<vmem>>, vector<8x8xf32>
    tpu.vector_store %arg17[%c0_66, %c0_67], %180 {strides = array<i32>} : memref<8x32xf32, #tpu.memory_space<vmem>>, vector<8x8xf32>,
    %182 = vector.extract_strided_slice %166 {offsets = [0, 8], sizes = [8, 8], strides = [1, 1]} : vector<8x32xf32> to vector<8x8xf32>
    %183 = vector.extract_strided_slice %163 {offsets = [0, 8], sizes = [8, 8], strides = [1, 1]} : vector<8x32xf32> to vector<8x8xf32>
    %184 = vector.extract_strided_slice %164 {offsets = [0, 8], sizes = [8, 8], strides = [1, 1]} : vector<8x32xf32> to vector<8x8xf32>
    %cst_68 = arith.constant dense<0.000000e+00> : vector<8x8xf32>
    %185 = tpu.matmul %182, %183, %cst_68 {dimension_numbers = #tpu.dot_dimension_numbers<[1], [1], [0], [0], [0, 0, 1, 0], [], []>} : vector<8x8xf32>, vector<8x8xf32>, vector<8x8xf32> -> vector<8x8xf32>
    %cst_69 = arith.constant dense<0xFF800000> : vector<8xf32>
    %186 = vector.multi_reduction <maximumf>, %185, %cst_69 [1] : vector<8x8xf32> to vector<8xf32>
    %187 = vector.shape_cast %186 : vector<8xf32> to vector<8x1xf32>
    %188 = vector.broadcast %187 : vector<8x1xf32> to vector<8x8xf32>
    %189 = arith.subf %185, %188 : vector<8x8xf32>
    %190 = math.exp %189 : vector<8x8xf32>
    %cst_70 = arith.constant dense<0.000000e+00> : vector<8xf32>
    %191 = vector.multi_reduction <add>, %190, %cst_70 [1] : vector<8x8xf32> to vector<8xf32>
    %192 = vector.shape_cast %191 : vector<8xf32> to vector<8x1xf32>
    %193 = vector.broadcast %192 : vector<8x1xf32> to vector<8x8xf32>
    %194 = arith.divf %190, %193 : vector<8x8xf32>
    %cst_71 = arith.constant dense<0.000000e+00> : vector<8x8xf32>
    %195 = tpu.matmul %194, %184, %cst_71 {dimension_numbers = #tpu.dot_dimension_numbers<[1], [0], [0], [1], [0, 0, 1, 1], [], []>} : vector<8x8xf32>, vector<8x8xf32>, vector<8x8xf32> -> vector<8x8xf32>
    %c0_72 = arith.constant 0 : index
    %c8_73 = arith.constant 8 : index
    %196 = vector.load %arg17[%c0_72, %c8_73] : memref<8x32xf32, #tpu.memory_space<vmem>>, vector<8x8xf32>
    tpu.vector_store %arg17[%c0_72, %c8_73], %195 {strides = array<i32>} : memref<8x32xf32, #tpu.memory_space<vmem>>, vector<8x8xf32>,
    %197 = vector.extract_strided_slice %166 {offsets = [0, 16], sizes = [8, 8], strides = [1, 1]} : vector<8x32xf32> to vector<8x8xf32>
    %198 = vector.extract_strided_slice %163 {offsets = [0, 16], sizes = [8, 8], strides = [1, 1]} : vector<8x32xf32> to vector<8x8xf32>
    %199 = vector.extract_strided_slice %164 {offsets = [0, 16], sizes = [8, 8], strides = [1, 1]} : vector<8x32xf32> to vector<8x8xf32>
    %cst_74 = arith.constant dense<0.000000e+00> : vector<8x8xf32>
    %200 = tpu.matmul %197, %198, %cst_74 {dimension_numbers = #tpu.dot_dimension_numbers<[1], [1], [0], [0], [0, 0, 1, 0], [], []>} : vector<8x8xf32>, vector<8x8xf32>, vector<8x8xf32> -> vector<8x8xf32>
    %cst_75 = arith.constant dense<0xFF800000> : vector<8xf32>
    %201 = vector.multi_reduction <maximumf>, %200, %cst_75 [1] : vector<8x8xf32> to vector<8xf32>
    %202 = vector.shape_cast %201 : vector<8xf32> to vector<8x1xf32>
    %203 = vector.broadcast %202 : vector<8x1xf32> to vector<8x8xf32>
    %204 = arith.subf %200, %203 : vector<8x8xf32>
    %205 = math.exp %204 : vector<8x8xf32>
    %cst_76 = arith.constant dense<0.000000e+00> : vector<8xf32>
    %206 = vector.multi_reduction <add>, %205, %cst_76 [1] : vector<8x8xf32> to vector<8xf32>
    %207 = vector.shape_cast %206 : vector<8xf32> to vector<8x1xf32>
    %208 = vector.broadcast %207 : vector<8x1xf32> to vector<8x8xf32>
    %209 = arith.divf %205, %208 : vector<8x8xf32>
    %cst_77 = arith.constant dense<0.000000e+00> : vector<8x8xf32>
    %210 = tpu.matmul %209, %199, %cst_77 {dimension_numbers = #tpu.dot_dimension_numbers<[1], [0], [0], [1], [0, 0, 1, 1], [], []>} : vector<8x8xf32>, vector<8x8xf32>, vector<8x8xf32> -> vector<8x8xf32>
    %c0_78 = arith.constant 0 : index
    %c16_79 = arith.constant 16 : index
    %211 = vector.load %arg17[%c0_78, %c16_79] : memref<8x32xf32, #tpu.memory_space<vmem>>, vector<8x8xf32>
    tpu.vector_store %arg17[%c0_78, %c16_79], %210 {strides = array<i32>} : memref<8x32xf32, #tpu.memory_space<vmem>>, vector<8x8xf32>,
    %212 = vector.extract_strided_slice %166 {offsets = [0, 24], sizes = [8, 8], strides = [1, 1]} : vector<8x32xf32> to vector<8x8xf32>
    %213 = vector.extract_strided_slice %163 {offsets = [0, 24], sizes = [8, 8], strides = [1, 1]} : vector<8x32xf32> to vector<8x8xf32>
    %214 = vector.extract_strided_slice %164 {offsets = [0, 24], sizes = [8, 8], strides = [1, 1]} : vector<8x32xf32> to vector<8x8xf32>
    %cst_80 = arith.constant dense<0.000000e+00> : vector<8x8xf32>
    %215 = tpu.matmul %212, %213, %cst_80 {dimension_numbers = #tpu.dot_dimension_numbers<[1], [1], [0], [0], [0, 0, 1, 0], [], []>} : vector<8x8xf32>, vector<8x8xf32>, vector<8x8xf32> -> vector<8x8xf32>
    %cst_81 = arith.constant dense<0xFF800000> : vector<8xf32>
    %216 = vector.multi_reduction <maximumf>, %215, %cst_81 [1] : vector<8x8xf32> to vector<8xf32>
    %217 = vector.shape_cast %216 : vector<8xf32> to vector<8x1xf32>
    %218 = vector.broadcast %217 : vector<8x1xf32> to vector<8x8xf32>
    %219 = arith.subf %215, %218 : vector<8x8xf32>
    %220 = math.exp %219 : vector<8x8xf32>
    %cst_82 = arith.constant dense<0.000000e+00> : vector<8xf32>
    %221 = vector.multi_reduction <add>, %220, %cst_82 [1] : vector<8x8xf32> to vector<8xf32>
    %222 = vector.shape_cast %221 : vector<8xf32> to vector<8x1xf32>
    %223 = vector.broadcast %222 : vector<8x1xf32> to vector<8x8xf32>
    %224 = arith.divf %220, %223 : vector<8x8xf32>
    %cst_83 = arith.constant dense<0.000000e+00> : vector<8x8xf32>
    %225 = tpu.matmul %224, %214, %cst_83 {dimension_numbers = #tpu.dot_dimension_numbers<[1], [0], [0], [1], [0, 0, 1, 1], [], []>} : vector<8x8xf32>, vector<8x8xf32>, vector<8x8xf32> -> vector<8x8xf32>
    %c0_84 = arith.constant 0 : index
    %c24_85 = arith.constant 24 : index
    %226 = vector.load %arg17[%c0_84, %c24_85] : memref<8x32xf32, #tpu.memory_space<vmem>>, vector<8x8xf32>
    tpu.vector_store %arg17[%c0_84, %c24_85], %225 {strides = array<i32>} : memref<8x32xf32, #tpu.memory_space<vmem>>, vector<8x8xf32>,
    %c0_86 = arith.constant 0 : index
    %c0_87 = arith.constant 0 : index
    %227 = vector.load %arg17[%c0_86, %c0_87] : memref<8x32xf32, #tpu.memory_space<vmem>>, vector<8x32xf32>
    %c1_88 = arith.constant 1 : index
    %c0_89 = arith.constant 0 : index
    %c0_90 = arith.constant 0 : index
    %228 = vector.load %arg2[%c1_88, %c0_89, %c0_90] : memref<2x32x32xf32, #tpu.memory_space<vmem>>, vector<1x32x32xf32>
    %229 = vector.shape_cast %228 : vector<1x32x32xf32> to vector<32x32xf32>
    %cst_91 = arith.constant dense<0.000000e+00> : vector<8x32xf32>
    %230 = tpu.matmul %227, %229, %cst_91 {dimension_numbers = #tpu.dot_dimension_numbers<[1], [0], [0], [1], [0, 0, 1, 1], [], []>} : vector<8x32xf32>, vector<32x32xf32>, vector<8x32xf32> -> vector<8x32xf32>
    %231 = vector.broadcast %150 : vector<1x32xf32> to vector<8x32xf32>
    %232 = arith.addf %230, %231 : vector<8x32xf32>
    %233 = arith.addf %232, %146 : vector<8x32xf32>
    %cst_92 = arith.constant dense<0.000000e+00> : vector<8xf32>
    %234 = vector.multi_reduction <add>, %233, %cst_92 [1] : vector<8x32xf32> to vector<8xf32>
    %235 = vector.shape_cast %234 : vector<8xf32> to vector<8x1xf32>
    %cst_93 = arith.constant 3.200000e+01 : f32
    %236 = vector.broadcast %cst_93 : f32 to vector<8x1xf32>
    %237 = arith.divf %235, %236 : vector<8x1xf32>
    %238 = vector.broadcast %237 : vector<8x1xf32> to vector<8x32xf32>
    %239 = arith.subf %233, %238 : vector<8x32xf32>
    %240 = arith.mulf %239, %239 : vector<8x32xf32>
    %cst_94 = arith.constant dense<0.000000e+00> : vector<8xf32>
    %241 = vector.multi_reduction <add>, %240, %cst_94 [1] : vector<8x32xf32> to vector<8xf32>
    %242 = vector.shape_cast %241 : vector<8xf32> to vector<8x1xf32>
    %cst_95 = arith.constant 3.200000e+01 : f32
    %243 = vector.broadcast %cst_95 : f32 to vector<8x1xf32>
    %244 = arith.divf %242, %243 : vector<8x1xf32>
    %245 = vector.broadcast %237 : vector<8x1xf32> to vector<8x32xf32>
    %246 = arith.subf %233, %245 : vector<8x32xf32>
    %cst_96 = arith.constant 9.99999974E-6 : f32
    %247 = vector.broadcast %cst_96 : f32 to vector<8x1xf32>
    %248 = arith.addf %244, %247 : vector<8x1xf32>
    %249 = math.rsqrt %248 : vector<8x1xf32>
    %250 = vector.broadcast %249 : vector<8x1xf32> to vector<8x32xf32>
    %251 = arith.mulf %246, %250 : vector<8x32xf32>
    %252 = vector.broadcast %151 : vector<1x32xf32> to vector<8x32xf32>
    %253 = arith.mulf %251, %252 : vector<8x32xf32>
    %254 = vector.broadcast %152 : vector<1x32xf32> to vector<8x32xf32>
    %255 = arith.addf %253, %254 : vector<8x32xf32>
    %c1_97 = arith.constant 1 : index
    %c0_98 = arith.constant 0 : index
    %c0_99 = arith.constant 0 : index
    %256 = vector.load %arg3[%c1_97, %c0_98, %c0_99] : memref<2x32x128xf32, #tpu.memory_space<vmem>>, vector<1x32x128xf32>
    %257 = vector.shape_cast %256 : vector<1x32x128xf32> to vector<32x128xf32>
    %cst_100 = arith.constant dense<0.000000e+00> : vector<8x128xf32>
    %258 = tpu.matmul %255, %257, %cst_100 {dimension_numbers = #tpu.dot_dimension_numbers<[1], [0], [0], [1], [0, 0, 1, 1], [], []>} : vector<8x32xf32>, vector<32x128xf32>, vector<8x128xf32> -> vector<8x128xf32>
    %259 = vector.broadcast %153 : vector<1x128xf32> to vector<8x128xf32>
    %260 = arith.addf %258, %259 : vector<8x128xf32>
    %cst_101 = arith.constant 0.000000e+00 : f32
    %261 = vector.broadcast %cst_101 : f32 to vector<8x128xf32>
    %262 = arith.maximumf %260, %261 : vector<8x128xf32>
    %c1_102 = arith.constant 1 : index
    %c0_103 = arith.constant 0 : index
    %c0_104 = arith.constant 0 : index
    %263 = vector.load %arg4[%c1_102, %c0_103, %c0_104] : memref<2x128x32xf32, #tpu.memory_space<vmem>>, vector<1x128x32xf32>
    %264 = vector.shape_cast %263 : vector<1x128x32xf32> to vector<128x32xf32>
    %cst_105 = arith.constant dense<0.000000e+00> : vector<8x32xf32>
    %265 = tpu.matmul %262, %264, %cst_105 {dimension_numbers = #tpu.dot_dimension_numbers<[1], [0], [0], [1], [0, 0, 1, 1], [], []>} : vector<8x128xf32>, vector<128x32xf32>, vector<8x32xf32> -> vector<8x32xf32>
    %266 = vector.broadcast %154 : vector<1x32xf32> to vector<8x32xf32>
    %267 = arith.addf %265, %266 : vector<8x32xf32>
    %268 = arith.addf %267, %255 : vector<8x32xf32>
    %cst_106 = arith.constant dense<0.000000e+00> : vector<8xf32>
    %269 = vector.multi_reduction <add>, %268, %cst_106 [1] : vector<8x32xf32> to vector<8xf32>
    %270 = vector.shape_cast %269 : vector<8xf32> to vector<8x1xf32>
    %cst_107 = arith.constant 3.200000e+01 : f32
    %271 = vector.broadcast %cst_107 : f32 to vector<8x1xf32>
    %272 = arith.divf %270, %271 : vector<8x1xf32>
    %273 = vector.broadcast %272 : vector<8x1xf32> to vector<8x32xf32>
    %274 = arith.subf %268, %273 : vector<8x32xf32>
    %275 = arith.mulf %274, %274 : vector<8x32xf32>
    %cst_108 = arith.constant dense<0.000000e+00> : vector<8xf32>
    %276 = vector.multi_reduction <add>, %275, %cst_108 [1] : vector<8x32xf32> to vector<8xf32>
    %277 = vector.shape_cast %276 : vector<8xf32> to vector<8x1xf32>
    %cst_109 = arith.constant 3.200000e+01 : f32
    %278 = vector.broadcast %cst_109 : f32 to vector<8x1xf32>
    %279 = arith.divf %277, %278 : vector<8x1xf32>
    %280 = vector.broadcast %272 : vector<8x1xf32> to vector<8x32xf32>
    %281 = arith.subf %268, %280 : vector<8x32xf32>
    %cst_110 = arith.constant 9.99999974E-6 : f32
    %282 = vector.broadcast %cst_110 : f32 to vector<8x1xf32>
    %283 = arith.addf %279, %282 : vector<8x1xf32>
    %284 = math.rsqrt %283 : vector<8x1xf32>
    %285 = vector.broadcast %284 : vector<8x1xf32> to vector<8x32xf32>
    %286 = arith.mulf %281, %285 : vector<8x32xf32>
    %287 = vector.broadcast %155 : vector<1x32xf32> to vector<8x32xf32>
    %288 = arith.mulf %286, %287 : vector<8x32xf32>
    %289 = vector.broadcast %156 : vector<1x32xf32> to vector<8x32xf32>
    %290 = arith.addf %288, %289 : vector<8x32xf32>
    %c0_111 = arith.constant 0 : index
    %c0_112 = arith.constant 0 : index
    %291 = vector.load %arg9[%c0_111, %c0_112] : memref<32x128xf32, #tpu.memory_space<vmem>>, vector<32x128xf32>
    %cst_113 = arith.constant dense<0.000000e+00> : vector<8x128xf32>
    %292 = tpu.matmul %290, %291, %cst_113 {dimension_numbers = #tpu.dot_dimension_numbers<[1], [0], [0], [1], [0, 0, 1, 1], [], []>} : vector<8x32xf32>, vector<32x128xf32>, vector<8x128xf32> -> vector<8x128xf32>
    %c0_114 = arith.constant 0 : index
    %c0_115 = arith.constant 0 : index
    %293 = vector.load %arg15[%c0_114, %c0_115] : memref<2x128xf32, #tpu.memory_space<vmem>>, vector<1x32xf32>
    %c0_116 = arith.constant 0 : index
    %c0_117 = arith.constant 0 : index
    %c0_118 = arith.constant 0 : index
    %294 = vector.load %arg13[%c0_116, %c0_117, %c0_118] : memref<2x14x128xf32, #tpu.memory_space<vmem>>, vector<1x14x128xf32>
    %295 = vector.shape_cast %294 : vector<1x14x128xf32> to vector<14x128xf32>
    %296 = vector.extract_strided_slice %295 {offsets = [0, 0], sizes = [1, 32], strides = [1, 1]} : vector<14x128xf32> to vector<1x32xf32>
    %297 = vector.extract_strided_slice %295 {offsets = [1, 0], sizes = [1, 32], strides = [1, 1]} : vector<14x128xf32> to vector<1x32xf32>
    %298 = vector.extract_strided_slice %295 {offsets = [2, 0], sizes = [1, 32], strides = [1, 1]} : vector<14x128xf32> to vector<1x32xf32>
    %299 = vector.extract_strided_slice %295 {offsets = [3, 0], sizes = [1, 32], strides = [1, 1]} : vector<14x128xf32> to vector<1x32xf32>
    %300 = vector.extract_strided_slice %295 {offsets = [4, 0], sizes = [1, 32], strides = [1, 1]} : vector<14x128xf32> to vector<1x32xf32>
    %301 = vector.extract_strided_slice %295 {offsets = [5, 0], sizes = [1, 32], strides = [1, 1]} : vector<14x128xf32> to vector<1x32xf32>
    %302 = vector.extract_strided_slice %295 {offsets = [6, 0], sizes = [1, 32], strides = [1, 1]} : vector<14x128xf32> to vector<1x32xf32>
    %303 = vector.extract_strided_slice %295 {offsets = [7, 0], sizes = [1, 32], strides = [1, 1]} : vector<14x128xf32> to vector<1x32xf32>
    %304 = vector.extract_strided_slice %295 {offsets = [8, 0], sizes = [1, 32], strides = [1, 1]} : vector<14x128xf32> to vector<1x32xf32>
    %305 = vector.extract_strided_slice %295 {offsets = [9, 0], sizes = [1, 32], strides = [1, 1]} : vector<14x128xf32> to vector<1x32xf32>
    %306 = vector.extract_strided_slice %295 {offsets = [10, 0], sizes = [1, 128], strides = [1, 1]} : vector<14x128xf32> to vector<1x128xf32>
    %307 = vector.extract_strided_slice %295 {offsets = [11, 0], sizes = [1, 32], strides = [1, 1]} : vector<14x128xf32> to vector<1x32xf32>
    %308 = vector.extract_strided_slice %295 {offsets = [12, 0], sizes = [1, 32], strides = [1, 1]} : vector<14x128xf32> to vector<1x32xf32>
    %309 = vector.extract_strided_slice %295 {offsets = [13, 0], sizes = [1, 32], strides = [1, 1]} : vector<14x128xf32> to vector<1x32xf32>
    %c0_119 = arith.constant 0 : index
    %c0_120 = arith.constant 0 : index
    %c0_121 = arith.constant 0 : index
    %310 = vector.load %arg6[%c0_119, %c0_120, %c0_121] : memref<2x32x32xf32, #tpu.memory_space<vmem>>, vector<1x32x32xf32>
    %311 = vector.shape_cast %310 : vector<1x32x32xf32> to vector<32x32xf32>
    %cst_122 = arith.constant dense<0.000000e+00> : vector<1x32xf32>
    %312 = tpu.matmul %293, %311, %cst_122 {dimension_numbers = #tpu.dot_dimension_numbers<[1], [0], [0], [1], [0, 0, 1, 1], [], []>} : vector<1x32xf32>, vector<32x32xf32>, vector<1x32xf32> -> vector<1x32xf32>
    %313 = arith.addf %312, %296 : vector<1x32xf32>
    %c0_123 = arith.constant 0 : index
    %c0_124 = arith.constant 0 : index
    %c0_125 = arith.constant 0 : index
    %314 = vector.load %arg7[%c0_123, %c0_124, %c0_125] : memref<2x32x32xf32, #tpu.memory_space<vmem>>, vector<1x32x32xf32>
    %315 = vector.shape_cast %314 : vector<1x32x32xf32> to vector<32x32xf32>
    %cst_126 = arith.constant dense<0.000000e+00> : vector<1x32xf32>
    %316 = tpu.matmul %313, %315, %cst_126 {dimension_numbers = #tpu.dot_dimension_numbers<[1], [0], [0], [1], [0, 0, 1, 1], [], []>} : vector<1x32xf32>, vector<32x32xf32>, vector<1x32xf32> -> vector<1x32xf32>
    %317 = arith.addf %316, %297 : vector<1x32xf32>
    %318 = arith.addf %317, %293 : vector<1x32xf32>
    %cst_127 = arith.constant dense<0.000000e+00> : vector<1xf32>
    %319 = vector.multi_reduction <add>, %318, %cst_127 [1] : vector<1x32xf32> to vector<1xf32>
    %320 = vector.shape_cast %319 : vector<1xf32> to vector<1x1xf32>
    %cst_128 = arith.constant 3.200000e+01 : f32
    %321 = vector.broadcast %cst_128 : f32 to vector<1x1xf32>
    %322 = arith.divf %320, %321 : vector<1x1xf32>
    %323 = vector.broadcast %322 : vector<1x1xf32> to vector<1x32xf32>
    %324 = arith.subf %318, %323 : vector<1x32xf32>
    %325 = arith.mulf %324, %324 : vector<1x32xf32>
    %cst_129 = arith.constant dense<0.000000e+00> : vector<1xf32>
    %326 = vector.multi_reduction <add>, %325, %cst_129 [1] : vector<1x32xf32> to vector<1xf32>
    %327 = vector.shape_cast %326 : vector<1xf32> to vector<1x1xf32>
    %cst_130 = arith.constant 3.200000e+01 : f32
    %328 = vector.broadcast %cst_130 : f32 to vector<1x1xf32>
    %329 = arith.divf %327, %328 : vector<1x1xf32>
    %330 = vector.broadcast %322 : vector<1x1xf32> to vector<1x32xf32>
    %331 = arith.subf %318, %330 : vector<1x32xf32>
    %cst_131 = arith.constant 9.99999974E-6 : f32
    %332 = vector.broadcast %cst_131 : f32 to vector<1x1xf32>
    %333 = arith.addf %329, %332 : vector<1x1xf32>
    %334 = math.rsqrt %333 : vector<1x1xf32>
    %335 = vector.broadcast %334 : vector<1x1xf32> to vector<1x32xf32>
    %336 = arith.mulf %331, %335 : vector<1x32xf32>
    %337 = arith.mulf %336, %298 : vector<1x32xf32>
    %338 = arith.addf %337, %299 : vector<1x32xf32>
    %c0_132 = arith.constant 0 : index
    %c0_133 = arith.constant 0 : index
    %c0_134 = arith.constant 0 : index
    %339 = vector.load %arg8[%c0_132, %c0_133, %c0_134] : memref<2x32x32xf32, #tpu.memory_space<vmem>>, vector<1x32x32xf32>
    %340 = vector.shape_cast %339 : vector<1x32x32xf32> to vector<32x32xf32>
    %cst_135 = arith.constant dense<0.000000e+00> : vector<1x32xf32>
    %341 = tpu.matmul %338, %340, %cst_135 {dimension_numbers = #tpu.dot_dimension_numbers<[1], [0], [0], [1], [0, 0, 1, 1], [], []>} : vector<1x32xf32>, vector<32x32xf32>, vector<1x32xf32> -> vector<1x32xf32>
    %342 = arith.addf %341, %300 : vector<1x32xf32>
    %343 = vector.extract_strided_slice %292 {offsets = [0, 0], sizes = [8, 32], strides = [1, 1]} : vector<8x128xf32> to vector<8x32xf32>
    %344 = vector.broadcast %301 : vector<1x32xf32> to vector<8x32xf32>
    %345 = arith.addf %343, %344 : vector<8x32xf32>
    %346 = vector.extract_strided_slice %292 {offsets = [0, 32], sizes = [8, 32], strides = [1, 1]} : vector<8x128xf32> to vector<8x32xf32>
    %347 = vector.broadcast %302 : vector<1x32xf32> to vector<8x32xf32>
    %348 = arith.addf %346, %347 : vector<8x32xf32>
    %cst_136 = arith.constant 0.353553385 : f32
    %349 = vector.broadcast %cst_136 : f32 to vector<1x32xf32>
    %350 = arith.mulf %342, %349 : vector<1x32xf32>
    %351 = vector.extract_strided_slice %350 {offsets = [0, 0], sizes = [1, 8], strides = [1, 1]} : vector<1x32xf32> to vector<1x8xf32>
    %352 = vector.extract_strided_slice %345 {offsets = [0, 0], sizes = [8, 8], strides = [1, 1]} : vector<8x32xf32> to vector<8x8xf32>
    %353 = vector.extract_strided_slice %348 {offsets = [0, 0], sizes = [8, 8], strides = [1, 1]} : vector<8x32xf32> to vector<8x8xf32>
    %cst_137 = arith.constant dense<0.000000e+00> : vector<1x8xf32>
    %354 = tpu.matmul %351, %352, %cst_137 {dimension_numbers = #tpu.dot_dimension_numbers<[1], [1], [0], [0], [0, 0, 1, 0], [], []>} : vector<1x8xf32>, vector<8x8xf32>, vector<1x8xf32> -> vector<1x8xf32>
    %cst_138 = arith.constant dense<0xFF800000> : vector<1xf32>
    %355 = vector.multi_reduction <maximumf>, %354, %cst_138 [1] : vector<1x8xf32> to vector<1xf32>
    %356 = vector.shape_cast %355 : vector<1xf32> to vector<1x1xf32>
    %357 = vector.broadcast %356 : vector<1x1xf32> to vector<1x8xf32>
    %358 = arith.subf %354, %357 : vector<1x8xf32>
    %359 = math.exp %358 : vector<1x8xf32>
    %cst_139 = arith.constant dense<0.000000e+00> : vector<1xf32>
    %360 = vector.multi_reduction <add>, %359, %cst_139 [1] : vector<1x8xf32> to vector<1xf32>
    %361 = vector.shape_cast %360 : vector<1xf32> to vector<1x1xf32>
    %362 = vector.broadcast %361 : vector<1x1xf32> to vector<1x8xf32>
    %363 = arith.divf %359, %362 : vector<1x8xf32>
    %cst_140 = arith.constant dense<0.000000e+00> : vector<1x8xf32>
    %364 = tpu.matmul %363, %353, %cst_140 {dimension_numbers = #tpu.dot_dimension_numbers<[1], [0], [0], [1], [0, 0, 1, 1], [], []>} : vector<1x8xf32>, vector<8x8xf32>, vector<1x8xf32> -> vector<1x8xf32>
    %c0_141 = arith.constant 0 : index
    %c0_142 = arith.constant 0 : index
    %365 = vector.load %arg17[%c0_141, %c0_142] : memref<8x32xf32, #tpu.memory_space<vmem>>, vector<1x8xf32>
    tpu.vector_store %arg17[%c0_141, %c0_142], %364 {strides = array<i32>} : memref<8x32xf32, #tpu.memory_space<vmem>>, vector<1x8xf32>,
    %366 = vector.extract_strided_slice %350 {offsets = [0, 8], sizes = [1, 8], strides = [1, 1]} : vector<1x32xf32> to vector<1x8xf32>
    %367 = vector.extract_strided_slice %345 {offsets = [0, 8], sizes = [8, 8], strides = [1, 1]} : vector<8x32xf32> to vector<8x8xf32>
    %368 = vector.extract_strided_slice %348 {offsets = [0, 8], sizes = [8, 8], strides = [1, 1]} : vector<8x32xf32> to vector<8x8xf32>
    %cst_143 = arith.constant dense<0.000000e+00> : vector<1x8xf32>
    %369 = tpu.matmul %366, %367, %cst_143 {dimension_numbers = #tpu.dot_dimension_numbers<[1], [1], [0], [0], [0, 0, 1, 0], [], []>} : vector<1x8xf32>, vector<8x8xf32>, vector<1x8xf32> -> vector<1x8xf32>
    %cst_144 = arith.constant dense<0xFF800000> : vector<1xf32>
    %370 = vector.multi_reduction <maximumf>, %369, %cst_144 [1] : vector<1x8xf32> to vector<1xf32>
    %371 = vector.shape_cast %370 : vector<1xf32> to vector<1x1xf32>
    %372 = vector.broadcast %371 : vector<1x1xf32> to vector<1x8xf32>
    %373 = arith.subf %369, %372 : vector<1x8xf32>
    %374 = math.exp %373 : vector<1x8xf32>
    %cst_145 = arith.constant dense<0.000000e+00> : vector<1xf32>
    %375 = vector.multi_reduction <add>, %374, %cst_145 [1] : vector<1x8xf32> to vector<1xf32>
    %376 = vector.shape_cast %375 : vector<1xf32> to vector<1x1xf32>
    %377 = vector.broadcast %376 : vector<1x1xf32> to vector<1x8xf32>
    %378 = arith.divf %374, %377 : vector<1x8xf32>
    %cst_146 = arith.constant dense<0.000000e+00> : vector<1x8xf32>
    %379 = tpu.matmul %378, %368, %cst_146 {dimension_numbers = #tpu.dot_dimension_numbers<[1], [0], [0], [1], [0, 0, 1, 1], [], []>} : vector<1x8xf32>, vector<8x8xf32>, vector<1x8xf32> -> vector<1x8xf32>
    %c0_147 = arith.constant 0 : index
    %c8_148 = arith.constant 8 : index
    %380 = vector.load %arg17[%c0_147, %c8_148] : memref<8x32xf32, #tpu.memory_space<vmem>>, vector<1x8xf32>
    tpu.vector_store %arg17[%c0_147, %c8_148], %379 {strides = array<i32>} : memref<8x32xf32, #tpu.memory_space<vmem>>, vector<1x8xf32>,
    %381 = vector.extract_strided_slice %350 {offsets = [0, 16], sizes = [1, 8], strides = [1, 1]} : vector<1x32xf32> to vector<1x8xf32>
    %382 = vector.extract_strided_slice %345 {offsets = [0, 16], sizes = [8, 8], strides = [1, 1]} : vector<8x32xf32> to vector<8x8xf32>
    %383 = vector.extract_strided_slice %348 {offsets = [0, 16], sizes = [8, 8], strides = [1, 1]} : vector<8x32xf32> to vector<8x8xf32>
    %cst_149 = arith.constant dense<0.000000e+00> : vector<1x8xf32>
    %384 = tpu.matmul %381, %382, %cst_149 {dimension_numbers = #tpu.dot_dimension_numbers<[1], [1], [0], [0], [0, 0, 1, 0], [], []>} : vector<1x8xf32>, vector<8x8xf32>, vector<1x8xf32> -> vector<1x8xf32>
    %cst_150 = arith.constant dense<0xFF800000> : vector<1xf32>
    %385 = vector.multi_reduction <maximumf>, %384, %cst_150 [1] : vector<1x8xf32> to vector<1xf32>
    %386 = vector.shape_cast %385 : vector<1xf32> to vector<1x1xf32>
    %387 = vector.broadcast %386 : vector<1x1xf32> to vector<1x8xf32>
    %388 = arith.subf %384, %387 : vector<1x8xf32>
    %389 = math.exp %388 : vector<1x8xf32>
    %cst_151 = arith.constant dense<0.000000e+00> : vector<1xf32>
    %390 = vector.multi_reduction <add>, %389, %cst_151 [1] : vector<1x8xf32> to vector<1xf32>
    %391 = vector.shape_cast %390 : vector<1xf32> to vector<1x1xf32>
    %392 = vector.broadcast %391 : vector<1x1xf32> to vector<1x8xf32>
    %393 = arith.divf %389, %392 : vector<1x8xf32>
    %cst_152 = arith.constant dense<0.000000e+00> : vector<1x8xf32>
    %394 = tpu.matmul %393, %383, %cst_152 {dimension_numbers = #tpu.dot_dimension_numbers<[1], [0], [0], [1], [0, 0, 1, 1], [], []>} : vector<1x8xf32>, vector<8x8xf32>, vector<1x8xf32> -> vector<1x8xf32>
    %c0_153 = arith.constant 0 : index
    %c16_154 = arith.constant 16 : index
    %395 = vector.load %arg17[%c0_153, %c16_154] : memref<8x32xf32, #tpu.memory_space<vmem>>, vector<1x8xf32>
    tpu.vector_store %arg17[%c0_153, %c16_154], %394 {strides = array<i32>} : memref<8x32xf32, #tpu.memory_space<vmem>>, vector<1x8xf32>,
    %396 = vector.extract_strided_slice %350 {offsets = [0, 24], sizes = [1, 8], strides = [1, 1]} : vector<1x32xf32> to vector<1x8xf32>
    %397 = vector.extract_strided_slice %345 {offsets = [0, 24], sizes = [8, 8], strides = [1, 1]} : vector<8x32xf32> to vector<8x8xf32>
    %398 = vector.extract_strided_slice %348 {offsets = [0, 24], sizes = [8, 8], strides = [1, 1]} : vector<8x32xf32> to vector<8x8xf32>
    %cst_155 = arith.constant dense<0.000000e+00> : vector<1x8xf32>
    %399 = tpu.matmul %396, %397, %cst_155 {dimension_numbers = #tpu.dot_dimension_numbers<[1], [1], [0], [0], [0, 0, 1, 0], [], []>} : vector<1x8xf32>, vector<8x8xf32>, vector<1x8xf32> -> vector<1x8xf32>
    %cst_156 = arith.constant dense<0xFF800000> : vector<1xf32>
    %400 = vector.multi_reduction <maximumf>, %399, %cst_156 [1] : vector<1x8xf32> to vector<1xf32>
    %401 = vector.shape_cast %400 : vector<1xf32> to vector<1x1xf32>
    %402 = vector.broadcast %401 : vector<1x1xf32> to vector<1x8xf32>
    %403 = arith.subf %399, %402 : vector<1x8xf32>
    %404 = math.exp %403 : vector<1x8xf32>
    %cst_157 = arith.constant dense<0.000000e+00> : vector<1xf32>
    %405 = vector.multi_reduction <add>, %404, %cst_157 [1] : vector<1x8xf32> to vector<1xf32>
    %406 = vector.shape_cast %405 : vector<1xf32> to vector<1x1xf32>
    %407 = vector.broadcast %406 : vector<1x1xf32> to vector<1x8xf32>
    %408 = arith.divf %404, %407 : vector<1x8xf32>
    %cst_158 = arith.constant dense<0.000000e+00> : vector<1x8xf32>
    %409 = tpu.matmul %408, %398, %cst_158 {dimension_numbers = #tpu.dot_dimension_numbers<[1], [0], [0], [1], [0, 0, 1, 1], [], []>} : vector<1x8xf32>, vector<8x8xf32>, vector<1x8xf32> -> vector<1x8xf32>
    %c0_159 = arith.constant 0 : index
    %c24_160 = arith.constant 24 : index
    %410 = vector.load %arg17[%c0_159, %c24_160] : memref<8x32xf32, #tpu.memory_space<vmem>>, vector<1x8xf32>
    tpu.vector_store %arg17[%c0_159, %c24_160], %409 {strides = array<i32>} : memref<8x32xf32, #tpu.memory_space<vmem>>, vector<1x8xf32>,
    %c0_161 = arith.constant 0 : index
    %c0_162 = arith.constant 0 : index
    %411 = vector.load %arg17[%c0_161, %c0_162] : memref<8x32xf32, #tpu.memory_space<vmem>>, vector<1x32xf32>
    %c0_163 = arith.constant 0 : index
    %c0_164 = arith.constant 0 : index
    %c0_165 = arith.constant 0 : index
    %412 = vector.load %arg10[%c0_163, %c0_164, %c0_165] : memref<2x32x32xf32, #tpu.memory_space<vmem>>, vector<1x32x32xf32>
    %413 = vector.shape_cast %412 : vector<1x32x32xf32> to vector<32x32xf32>
    %cst_166 = arith.constant dense<0.000000e+00> : vector<1x32xf32>
    %414 = tpu.matmul %411, %413, %cst_166 {dimension_numbers = #tpu.dot_dimension_numbers<[1], [0], [0], [1], [0, 0, 1, 1], [], []>} : vector<1x32xf32>, vector<32x32xf32>, vector<1x32xf32> -> vector<1x32xf32>
    %415 = arith.addf %414, %303 : vector<1x32xf32>
    %416 = arith.addf %415, %338 : vector<1x32xf32>
    %cst_167 = arith.constant dense<0.000000e+00> : vector<1xf32>
    %417 = vector.multi_reduction <add>, %416, %cst_167 [1] : vector<1x32xf32> to vector<1xf32>
    %418 = vector.shape_cast %417 : vector<1xf32> to vector<1x1xf32>
    %cst_168 = arith.constant 3.200000e+01 : f32
    %419 = vector.broadcast %cst_168 : f32 to vector<1x1xf32>
    %420 = arith.divf %418, %419 : vector<1x1xf32>
    %421 = vector.broadcast %420 : vector<1x1xf32> to vector<1x32xf32>
    %422 = arith.subf %416, %421 : vector<1x32xf32>
    %423 = arith.mulf %422, %422 : vector<1x32xf32>
    %cst_169 = arith.constant dense<0.000000e+00> : vector<1xf32>
    %424 = vector.multi_reduction <add>, %423, %cst_169 [1] : vector<1x32xf32> to vector<1xf32>
    %425 = vector.shape_cast %424 : vector<1xf32> to vector<1x1xf32>
    %cst_170 = arith.constant 3.200000e+01 : f32
    %426 = vector.broadcast %cst_170 : f32 to vector<1x1xf32>
    %427 = arith.divf %425, %426 : vector<1x1xf32>
    %428 = vector.broadcast %420 : vector<1x1xf32> to vector<1x32xf32>
    %429 = arith.subf %416, %428 : vector<1x32xf32>
    %cst_171 = arith.constant 9.99999974E-6 : f32
    %430 = vector.broadcast %cst_171 : f32 to vector<1x1xf32>
    %431 = arith.addf %427, %430 : vector<1x1xf32>
    %432 = math.rsqrt %431 : vector<1x1xf32>
    %433 = vector.broadcast %432 : vector<1x1xf32> to vector<1x32xf32>
    %434 = arith.mulf %429, %433 : vector<1x32xf32>
    %435 = arith.mulf %434, %304 : vector<1x32xf32>
    %436 = arith.addf %435, %305 : vector<1x32xf32>
    %c0_172 = arith.constant 0 : index
    %c0_173 = arith.constant 0 : index
    %c0_174 = arith.constant 0 : index
    %437 = vector.load %arg11[%c0_172, %c0_173, %c0_174] : memref<2x32x128xf32, #tpu.memory_space<vmem>>, vector<1x32x128xf32>
    %438 = vector.shape_cast %437 : vector<1x32x128xf32> to vector<32x128xf32>
    %cst_175 = arith.constant dense<0.000000e+00> : vector<1x128xf32>
    %439 = tpu.matmul %436, %438, %cst_175 {dimension_numbers = #tpu.dot_dimension_numbers<[1], [0], [0], [1], [0, 0, 1, 1], [], []>} : vector<1x32xf32>, vector<32x128xf32>, vector<1x128xf32> -> vector<1x128xf32>
    %440 = arith.addf %439, %306 : vector<1x128xf32>
    %cst_176 = arith.constant 0.000000e+00 : f32
    %441 = vector.broadcast %cst_176 : f32 to vector<1x128xf32>
    %442 = arith.maximumf %440, %441 : vector<1x128xf32>
    %c0_177 = arith.constant 0 : index
    %c0_178 = arith.constant 0 : index
    %c0_179 = arith.constant 0 : index
    %443 = vector.load %arg12[%c0_177, %c0_178, %c0_179] : memref<2x128x32xf32, #tpu.memory_space<vmem>>, vector<1x128x32xf32>
    %444 = vector.shape_cast %443 : vector<1x128x32xf32> to vector<128x32xf32>
    %cst_180 = arith.constant dense<0.000000e+00> : vector<1x32xf32>
    %445 = tpu.matmul %442, %444, %cst_180 {dimension_numbers = #tpu.dot_dimension_numbers<[1], [0], [0], [1], [0, 0, 1, 1], [], []>} : vector<1x128xf32>, vector<128x32xf32>, vector<1x32xf32> -> vector<1x32xf32>
    %446 = arith.addf %445, %307 : vector<1x32xf32>
    %447 = arith.addf %446, %436 : vector<1x32xf32>
    %cst_181 = arith.constant dense<0.000000e+00> : vector<1xf32>
    %448 = vector.multi_reduction <add>, %447, %cst_181 [1] : vector<1x32xf32> to vector<1xf32>
    %449 = vector.shape_cast %448 : vector<1xf32> to vector<1x1xf32>
    %cst_182 = arith.constant 3.200000e+01 : f32
    %450 = vector.broadcast %cst_182 : f32 to vector<1x1xf32>
    %451 = arith.divf %449, %450 : vector<1x1xf32>
    %452 = vector.broadcast %451 : vector<1x1xf32> to vector<1x32xf32>
    %453 = arith.subf %447, %452 : vector<1x32xf32>
    %454 = arith.mulf %453, %453 : vector<1x32xf32>
    %cst_183 = arith.constant dense<0.000000e+00> : vector<1xf32>
    %455 = vector.multi_reduction <add>, %454, %cst_183 [1] : vector<1x32xf32> to vector<1xf32>
    %456 = vector.shape_cast %455 : vector<1xf32> to vector<1x1xf32>
    %cst_184 = arith.constant 3.200000e+01 : f32
    %457 = vector.broadcast %cst_184 : f32 to vector<1x1xf32>
    %458 = arith.divf %456, %457 : vector<1x1xf32>
    %459 = vector.broadcast %451 : vector<1x1xf32> to vector<1x32xf32>
    %460 = arith.subf %447, %459 : vector<1x32xf32>
    %cst_185 = arith.constant 9.99999974E-6 : f32
    %461 = vector.broadcast %cst_185 : f32 to vector<1x1xf32>
    %462 = arith.addf %458, %461 : vector<1x1xf32>
    %463 = math.rsqrt %462 : vector<1x1xf32>
    %464 = vector.broadcast %463 : vector<1x1xf32> to vector<1x32xf32>
    %465 = arith.mulf %460, %464 : vector<1x32xf32>
    %466 = arith.mulf %465, %308 : vector<1x32xf32>
    %467 = arith.addf %466, %309 : vector<1x32xf32>
    %c1_186 = arith.constant 1 : index
    %c0_187 = arith.constant 0 : index
    %c0_188 = arith.constant 0 : index
    %468 = vector.load %arg13[%c1_186, %c0_187, %c0_188] : memref<2x14x128xf32, #tpu.memory_space<vmem>>, vector<1x14x128xf32>
    %469 = vector.shape_cast %468 : vector<1x14x128xf32> to vector<14x128xf32>
    %470 = vector.extract_strided_slice %469 {offsets = [0, 0], sizes = [1, 32], strides = [1, 1]} : vector<14x128xf32> to vector<1x32xf32>
    %471 = vector.extract_strided_slice %469 {offsets = [1, 0], sizes = [1, 32], strides = [1, 1]} : vector<14x128xf32> to vector<1x32xf32>
    %472 = vector.extract_strided_slice %469 {offsets = [2, 0], sizes = [1, 32], strides = [1, 1]} : vector<14x128xf32> to vector<1x32xf32>
    %473 = vector.extract_strided_slice %469 {offsets = [3, 0], sizes = [1, 32], strides = [1, 1]} : vector<14x128xf32> to vector<1x32xf32>
    %474 = vector.extract_strided_slice %469 {offsets = [4, 0], sizes = [1, 32], strides = [1, 1]} : vector<14x128xf32> to vector<1x32xf32>
    %475 = vector.extract_strided_slice %469 {offsets = [5, 0], sizes = [1, 32], strides = [1, 1]} : vector<14x128xf32> to vector<1x32xf32>
    %476 = vector.extract_strided_slice %469 {offsets = [6, 0], sizes = [1, 32], strides = [1, 1]} : vector<14x128xf32> to vector<1x32xf32>
    %477 = vector.extract_strided_slice %469 {offsets = [7, 0], sizes = [1, 32], strides = [1, 1]} : vector<14x128xf32> to vector<1x32xf32>
    %478 = vector.extract_strided_slice %469 {offsets = [8, 0], sizes = [1, 32], strides = [1, 1]} : vector<14x128xf32> to vector<1x32xf32>
    %479 = vector.extract_strided_slice %469 {offsets = [9, 0], sizes = [1, 32], strides = [1, 1]} : vector<14x128xf32> to vector<1x32xf32>
    %480 = vector.extract_strided_slice %469 {offsets = [10, 0], sizes = [1, 128], strides = [1, 1]} : vector<14x128xf32> to vector<1x128xf32>
    %481 = vector.extract_strided_slice %469 {offsets = [11, 0], sizes = [1, 32], strides = [1, 1]} : vector<14x128xf32> to vector<1x32xf32>
    %482 = vector.extract_strided_slice %469 {offsets = [12, 0], sizes = [1, 32], strides = [1, 1]} : vector<14x128xf32> to vector<1x32xf32>
    %483 = vector.extract_strided_slice %469 {offsets = [13, 0], sizes = [1, 32], strides = [1, 1]} : vector<14x128xf32> to vector<1x32xf32>
    %c1_189 = arith.constant 1 : index
    %c0_190 = arith.constant 0 : index
    %c0_191 = arith.constant 0 : index
    %484 = vector.load %arg6[%c1_189, %c0_190, %c0_191] : memref<2x32x32xf32, #tpu.memory_space<vmem>>, vector<1x32x32xf32>
    %485 = vector.shape_cast %484 : vector<1x32x32xf32> to vector<32x32xf32>
    %cst_192 = arith.constant dense<0.000000e+00> : vector<1x32xf32>
    %486 = tpu.matmul %467, %485, %cst_192 {dimension_numbers = #tpu.dot_dimension_numbers<[1], [0], [0], [1], [0, 0, 1, 1], [], []>} : vector<1x32xf32>, vector<32x32xf32>, vector<1x32xf32> -> vector<1x32xf32>
    %487 = arith.addf %486, %470 : vector<1x32xf32>
    %c1_193 = arith.constant 1 : index
    %c0_194 = arith.constant 0 : index
    %c0_195 = arith.constant 0 : index
    %488 = vector.load %arg7[%c1_193, %c0_194, %c0_195] : memref<2x32x32xf32, #tpu.memory_space<vmem>>, vector<1x32x32xf32>
    %489 = vector.shape_cast %488 : vector<1x32x32xf32> to vector<32x32xf32>
    %cst_196 = arith.constant dense<0.000000e+00> : vector<1x32xf32>
    %490 = tpu.matmul %487, %489, %cst_196 {dimension_numbers = #tpu.dot_dimension_numbers<[1], [0], [0], [1], [0, 0, 1, 1], [], []>} : vector<1x32xf32>, vector<32x32xf32>, vector<1x32xf32> -> vector<1x32xf32>
    %491 = arith.addf %490, %471 : vector<1x32xf32>
    %492 = arith.addf %491, %467 : vector<1x32xf32>
    %cst_197 = arith.constant dense<0.000000e+00> : vector<1xf32>
    %493 = vector.multi_reduction <add>, %492, %cst_197 [1] : vector<1x32xf32> to vector<1xf32>
    %494 = vector.shape_cast %493 : vector<1xf32> to vector<1x1xf32>
    %cst_198 = arith.constant 3.200000e+01 : f32
    %495 = vector.broadcast %cst_198 : f32 to vector<1x1xf32>
    %496 = arith.divf %494, %495 : vector<1x1xf32>
    %497 = vector.broadcast %496 : vector<1x1xf32> to vector<1x32xf32>
    %498 = arith.subf %492, %497 : vector<1x32xf32>
    %499 = arith.mulf %498, %498 : vector<1x32xf32>
    %cst_199 = arith.constant dense<0.000000e+00> : vector<1xf32>
    %500 = vector.multi_reduction <add>, %499, %cst_199 [1] : vector<1x32xf32> to vector<1xf32>
    %501 = vector.shape_cast %500 : vector<1xf32> to vector<1x1xf32>
    %cst_200 = arith.constant 3.200000e+01 : f32
    %502 = vector.broadcast %cst_200 : f32 to vector<1x1xf32>
    %503 = arith.divf %501, %502 : vector<1x1xf32>
    %504 = vector.broadcast %496 : vector<1x1xf32> to vector<1x32xf32>
    %505 = arith.subf %492, %504 : vector<1x32xf32>
    %cst_201 = arith.constant 9.99999974E-6 : f32
    %506 = vector.broadcast %cst_201 : f32 to vector<1x1xf32>
    %507 = arith.addf %503, %506 : vector<1x1xf32>
    %508 = math.rsqrt %507 : vector<1x1xf32>
    %509 = vector.broadcast %508 : vector<1x1xf32> to vector<1x32xf32>
    %510 = arith.mulf %505, %509 : vector<1x32xf32>
    %511 = arith.mulf %510, %472 : vector<1x32xf32>
    %512 = arith.addf %511, %473 : vector<1x32xf32>
    %c1_202 = arith.constant 1 : index
    %c0_203 = arith.constant 0 : index
    %c0_204 = arith.constant 0 : index
    %513 = vector.load %arg8[%c1_202, %c0_203, %c0_204] : memref<2x32x32xf32, #tpu.memory_space<vmem>>, vector<1x32x32xf32>
    %514 = vector.shape_cast %513 : vector<1x32x32xf32> to vector<32x32xf32>
    %cst_205 = arith.constant dense<0.000000e+00> : vector<1x32xf32>
    %515 = tpu.matmul %512, %514, %cst_205 {dimension_numbers = #tpu.dot_dimension_numbers<[1], [0], [0], [1], [0, 0, 1, 1], [], []>} : vector<1x32xf32>, vector<32x32xf32>, vector<1x32xf32> -> vector<1x32xf32>
    %516 = arith.addf %515, %474 : vector<1x32xf32>
    %517 = vector.extract_strided_slice %292 {offsets = [0, 64], sizes = [8, 32], strides = [1, 1]} : vector<8x128xf32> to vector<8x32xf32>
    %518 = vector.broadcast %475 : vector<1x32xf32> to vector<8x32xf32>
    %519 = arith.addf %517, %518 : vector<8x32xf32>
    %520 = vector.extract_strided_slice %292 {offsets = [0, 96], sizes = [8, 32], strides = [1, 1]} : vector<8x128xf32> to vector<8x32xf32>
    %521 = vector.broadcast %476 : vector<1x32xf32> to vector<8x32xf32>
    %522 = arith.addf %520, %521 : vector<8x32xf32>
    %cst_206 = arith.constant 0.353553385 : f32
    %523 = vector.broadcast %cst_206 : f32 to vector<1x32xf32>
    %524 = arith.mulf %516, %523 : vector<1x32xf32>
    %525 = vector.extract_strided_slice %524 {offsets = [0, 0], sizes = [1, 8], strides = [1, 1]} : vector<1x32xf32> to vector<1x8xf32>
    %526 = vector.extract_strided_slice %519 {offsets = [0, 0], sizes = [8, 8], strides = [1, 1]} : vector<8x32xf32> to vector<8x8xf32>
    %527 = vector.extract_strided_slice %522 {offsets = [0, 0], sizes = [8, 8], strides = [1, 1]} : vector<8x32xf32> to vector<8x8xf32>
    %cst_207 = arith.constant dense<0.000000e+00> : vector<1x8xf32>
    %528 = tpu.matmul %525, %526, %cst_207 {dimension_numbers = #tpu.dot_dimension_numbers<[1], [1], [0], [0], [0, 0, 1, 0], [], []>} : vector<1x8xf32>, vector<8x8xf32>, vector<1x8xf32> -> vector<1x8xf32>
    %cst_208 = arith.constant dense<0xFF800000> : vector<1xf32>
    %529 = vector.multi_reduction <maximumf>, %528, %cst_208 [1] : vector<1x8xf32> to vector<1xf32>
    %530 = vector.shape_cast %529 : vector<1xf32> to vector<1x1xf32>
    %531 = vector.broadcast %530 : vector<1x1xf32> to vector<1x8xf32>
    %532 = arith.subf %528, %531 : vector<1x8xf32>
    %533 = math.exp %532 : vector<1x8xf32>
    %cst_209 = arith.constant dense<0.000000e+00> : vector<1xf32>
    %534 = vector.multi_reduction <add>, %533, %cst_209 [1] : vector<1x8xf32> to vector<1xf32>
    %535 = vector.shape_cast %534 : vector<1xf32> to vector<1x1xf32>
    %536 = vector.broadcast %535 : vector<1x1xf32> to vector<1x8xf32>
    %537 = arith.divf %533, %536 : vector<1x8xf32>
    %cst_210 = arith.constant dense<0.000000e+00> : vector<1x8xf32>
    %538 = tpu.matmul %537, %527, %cst_210 {dimension_numbers = #tpu.dot_dimension_numbers<[1], [0], [0], [1], [0, 0, 1, 1], [], []>} : vector<1x8xf32>, vector<8x8xf32>, vector<1x8xf32> -> vector<1x8xf32>
    %c0_211 = arith.constant 0 : index
    %c0_212 = arith.constant 0 : index
    %539 = vector.load %arg17[%c0_211, %c0_212] : memref<8x32xf32, #tpu.memory_space<vmem>>, vector<1x8xf32>
    tpu.vector_store %arg17[%c0_211, %c0_212], %538 {strides = array<i32>} : memref<8x32xf32, #tpu.memory_space<vmem>>, vector<1x8xf32>,
    %540 = vector.extract_strided_slice %524 {offsets = [0, 8], sizes = [1, 8], strides = [1, 1]} : vector<1x32xf32> to vector<1x8xf32>
    %541 = vector.extract_strided_slice %519 {offsets = [0, 8], sizes = [8, 8], strides = [1, 1]} : vector<8x32xf32> to vector<8x8xf32>
    %542 = vector.extract_strided_slice %522 {offsets = [0, 8], sizes = [8, 8], strides = [1, 1]} : vector<8x32xf32> to vector<8x8xf32>
    %cst_213 = arith.constant dense<0.000000e+00> : vector<1x8xf32>
    %543 = tpu.matmul %540, %541, %cst_213 {dimension_numbers = #tpu.dot_dimension_numbers<[1], [1], [0], [0], [0, 0, 1, 0], [], []>} : vector<1x8xf32>, vector<8x8xf32>, vector<1x8xf32> -> vector<1x8xf32>
    %cst_214 = arith.constant dense<0xFF800000> : vector<1xf32>
    %544 = vector.multi_reduction <maximumf>, %543, %cst_214 [1] : vector<1x8xf32> to vector<1xf32>
    %545 = vector.shape_cast %544 : vector<1xf32> to vector<1x1xf32>
    %546 = vector.broadcast %545 : vector<1x1xf32> to vector<1x8xf32>
    %547 = arith.subf %543, %546 : vector<1x8xf32>
    %548 = math.exp %547 : vector<1x8xf32>
    %cst_215 = arith.constant dense<0.000000e+00> : vector<1xf32>
    %549 = vector.multi_reduction <add>, %548, %cst_215 [1] : vector<1x8xf32> to vector<1xf32>
    %550 = vector.shape_cast %549 : vector<1xf32> to vector<1x1xf32>
    %551 = vector.broadcast %550 : vector<1x1xf32> to vector<1x8xf32>
    %552 = arith.divf %548, %551 : vector<1x8xf32>
    %cst_216 = arith.constant dense<0.000000e+00> : vector<1x8xf32>
    %553 = tpu.matmul %552, %542, %cst_216 {dimension_numbers = #tpu.dot_dimension_numbers<[1], [0], [0], [1], [0, 0, 1, 1], [], []>} : vector<1x8xf32>, vector<8x8xf32>, vector<1x8xf32> -> vector<1x8xf32>
    %c0_217 = arith.constant 0 : index
    %c8_218 = arith.constant 8 : index
    %554 = vector.load %arg17[%c0_217, %c8_218] : memref<8x32xf32, #tpu.memory_space<vmem>>, vector<1x8xf32>
    tpu.vector_store %arg17[%c0_217, %c8_218], %553 {strides = array<i32>} : memref<8x32xf32, #tpu.memory_space<vmem>>, vector<1x8xf32>,
    %555 = vector.extract_strided_slice %524 {offsets = [0, 16], sizes = [1, 8], strides = [1, 1]} : vector<1x32xf32> to vector<1x8xf32>
    %556 = vector.extract_strided_slice %519 {offsets = [0, 16], sizes = [8, 8], strides = [1, 1]} : vector<8x32xf32> to vector<8x8xf32>
    %557 = vector.extract_strided_slice %522 {offsets = [0, 16], sizes = [8, 8], strides = [1, 1]} : vector<8x32xf32> to vector<8x8xf32>
    %cst_219 = arith.constant dense<0.000000e+00> : vector<1x8xf32>
    %558 = tpu.matmul %555, %556, %cst_219 {dimension_numbers = #tpu.dot_dimension_numbers<[1], [1], [0], [0], [0, 0, 1, 0], [], []>} : vector<1x8xf32>, vector<8x8xf32>, vector<1x8xf32> -> vector<1x8xf32>
    %cst_220 = arith.constant dense<0xFF800000> : vector<1xf32>
    %559 = vector.multi_reduction <maximumf>, %558, %cst_220 [1] : vector<1x8xf32> to vector<1xf32>
    %560 = vector.shape_cast %559 : vector<1xf32> to vector<1x1xf32>
    %561 = vector.broadcast %560 : vector<1x1xf32> to vector<1x8xf32>
    %562 = arith.subf %558, %561 : vector<1x8xf32>
    %563 = math.exp %562 : vector<1x8xf32>
    %cst_221 = arith.constant dense<0.000000e+00> : vector<1xf32>
    %564 = vector.multi_reduction <add>, %563, %cst_221 [1] : vector<1x8xf32> to vector<1xf32>
    %565 = vector.shape_cast %564 : vector<1xf32> to vector<1x1xf32>
    %566 = vector.broadcast %565 : vector<1x1xf32> to vector<1x8xf32>
    %567 = arith.divf %563, %566 : vector<1x8xf32>
    %cst_222 = arith.constant dense<0.000000e+00> : vector<1x8xf32>
    %568 = tpu.matmul %567, %557, %cst_222 {dimension_numbers = #tpu.dot_dimension_numbers<[1], [0], [0], [1], [0, 0, 1, 1], [], []>} : vector<1x8xf32>, vector<8x8xf32>, vector<1x8xf32> -> vector<1x8xf32>
    %c0_223 = arith.constant 0 : index
    %c16_224 = arith.constant 16 : index
    %569 = vector.load %arg17[%c0_223, %c16_224] : memref<8x32xf32, #tpu.memory_space<vmem>>, vector<1x8xf32>
    tpu.vector_store %arg17[%c0_223, %c16_224], %568 {strides = array<i32>} : memref<8x32xf32, #tpu.memory_space<vmem>>, vector<1x8xf32>,
    %570 = vector.extract_strided_slice %524 {offsets = [0, 24], sizes = [1, 8], strides = [1, 1]} : vector<1x32xf32> to vector<1x8xf32>
    %571 = vector.extract_strided_slice %519 {offsets = [0, 24], sizes = [8, 8], strides = [1, 1]} : vector<8x32xf32> to vector<8x8xf32>
    %572 = vector.extract_strided_slice %522 {offsets = [0, 24], sizes = [8, 8], strides = [1, 1]} : vector<8x32xf32> to vector<8x8xf32>
    %cst_225 = arith.constant dense<0.000000e+00> : vector<1x8xf32>
    %573 = tpu.matmul %570, %571, %cst_225 {dimension_numbers = #tpu.dot_dimension_numbers<[1], [1], [0], [0], [0, 0, 1, 0], [], []>} : vector<1x8xf32>, vector<8x8xf32>, vector<1x8xf32> -> vector<1x8xf32>
    %cst_226 = arith.constant dense<0xFF800000> : vector<1xf32>
    %574 = vector.multi_reduction <maximumf>, %573, %cst_226 [1] : vector<1x8xf32> to vector<1xf32>
    %575 = vector.shape_cast %574 : vector<1xf32> to vector<1x1xf32>
    %576 = vector.broadcast %575 : vector<1x1xf32> to vector<1x8xf32>
    %577 = arith.subf %573, %576 : vector<1x8xf32>
    %578 = math.exp %577 : vector<1x8xf32>
    %cst_227 = arith.constant dense<0.000000e+00> : vector<1xf32>
    %579 = vector.multi_reduction <add>, %578, %cst_227 [1] : vector<1x8xf32> to vector<1xf32>
    %580 = vector.shape_cast %579 : vector<1xf32> to vector<1x1xf32>
    %581 = vector.broadcast %580 : vector<1x1xf32> to vector<1x8xf32>
    %582 = arith.divf %578, %581 : vector<1x8xf32>
    %cst_228 = arith.constant dense<0.000000e+00> : vector<1x8xf32>
    %583 = tpu.matmul %582, %572, %cst_228 {dimension_numbers = #tpu.dot_dimension_numbers<[1], [0], [0], [1], [0, 0, 1, 1], [], []>} : vector<1x8xf32>, vector<8x8xf32>, vector<1x8xf32> -> vector<1x8xf32>
    %c0_229 = arith.constant 0 : index
    %c24_230 = arith.constant 24 : index
    %584 = vector.load %arg17[%c0_229, %c24_230] : memref<8x32xf32, #tpu.memory_space<vmem>>, vector<1x8xf32>
    tpu.vector_store %arg17[%c0_229, %c24_230], %583 {strides = array<i32>} : memref<8x32xf32, #tpu.memory_space<vmem>>, vector<1x8xf32>,
    %c0_231 = arith.constant 0 : index
    %c0_232 = arith.constant 0 : index
    %585 = vector.load %arg17[%c0_231, %c0_232] : memref<8x32xf32, #tpu.memory_space<vmem>>, vector<1x32xf32>
    %c1_233 = arith.constant 1 : index
    %c0_234 = arith.constant 0 : index
    %c0_235 = arith.constant 0 : index
    %586 = vector.load %arg10[%c1_233, %c0_234, %c0_235] : memref<2x32x32xf32, #tpu.memory_space<vmem>>, vector<1x32x32xf32>
    %587 = vector.shape_cast %586 : vector<1x32x32xf32> to vector<32x32xf32>
    %cst_236 = arith.constant dense<0.000000e+00> : vector<1x32xf32>
    %588 = tpu.matmul %585, %587, %cst_236 {dimension_numbers = #tpu.dot_dimension_numbers<[1], [0], [0], [1], [0, 0, 1, 1], [], []>} : vector<1x32xf32>, vector<32x32xf32>, vector<1x32xf32> -> vector<1x32xf32>
    %589 = arith.addf %588, %477 : vector<1x32xf32>
    %590 = arith.addf %589, %512 : vector<1x32xf32>
    %cst_237 = arith.constant dense<0.000000e+00> : vector<1xf32>
    %591 = vector.multi_reduction <add>, %590, %cst_237 [1] : vector<1x32xf32> to vector<1xf32>
    %592 = vector.shape_cast %591 : vector<1xf32> to vector<1x1xf32>
    %cst_238 = arith.constant 3.200000e+01 : f32
    %593 = vector.broadcast %cst_238 : f32 to vector<1x1xf32>
    %594 = arith.divf %592, %593 : vector<1x1xf32>
    %595 = vector.broadcast %594 : vector<1x1xf32> to vector<1x32xf32>
    %596 = arith.subf %590, %595 : vector<1x32xf32>
    %597 = arith.mulf %596, %596 : vector<1x32xf32>
    %cst_239 = arith.constant dense<0.000000e+00> : vector<1xf32>
    %598 = vector.multi_reduction <add>, %597, %cst_239 [1] : vector<1x32xf32> to vector<1xf32>
    %599 = vector.shape_cast %598 : vector<1xf32> to vector<1x1xf32>
    %cst_240 = arith.constant 3.200000e+01 : f32
    %600 = vector.broadcast %cst_240 : f32 to vector<1x1xf32>
    %601 = arith.divf %599, %600 : vector<1x1xf32>
    %602 = vector.broadcast %594 : vector<1x1xf32> to vector<1x32xf32>
    %603 = arith.subf %590, %602 : vector<1x32xf32>
    %cst_241 = arith.constant 9.99999974E-6 : f32
    %604 = vector.broadcast %cst_241 : f32 to vector<1x1xf32>
    %605 = arith.addf %601, %604 : vector<1x1xf32>
    %606 = math.rsqrt %605 : vector<1x1xf32>
    %607 = vector.broadcast %606 : vector<1x1xf32> to vector<1x32xf32>
    %608 = arith.mulf %603, %607 : vector<1x32xf32>
    %609 = arith.mulf %608, %478 : vector<1x32xf32>
    %610 = arith.addf %609, %479 : vector<1x32xf32>
    %c1_242 = arith.constant 1 : index
    %c0_243 = arith.constant 0 : index
    %c0_244 = arith.constant 0 : index
    %611 = vector.load %arg11[%c1_242, %c0_243, %c0_244] : memref<2x32x128xf32, #tpu.memory_space<vmem>>, vector<1x32x128xf32>
    %612 = vector.shape_cast %611 : vector<1x32x128xf32> to vector<32x128xf32>
    %cst_245 = arith.constant dense<0.000000e+00> : vector<1x128xf32>
    %613 = tpu.matmul %610, %612, %cst_245 {dimension_numbers = #tpu.dot_dimension_numbers<[1], [0], [0], [1], [0, 0, 1, 1], [], []>} : vector<1x32xf32>, vector<32x128xf32>, vector<1x128xf32> -> vector<1x128xf32>
    %614 = arith.addf %613, %480 : vector<1x128xf32>
    %cst_246 = arith.constant 0.000000e+00 : f32
    %615 = vector.broadcast %cst_246 : f32 to vector<1x128xf32>
    %616 = arith.maximumf %614, %615 : vector<1x128xf32>
    %c1_247 = arith.constant 1 : index
    %c0_248 = arith.constant 0 : index
    %c0_249 = arith.constant 0 : index
    %617 = vector.load %arg12[%c1_247, %c0_248, %c0_249] : memref<2x128x32xf32, #tpu.memory_space<vmem>>, vector<1x128x32xf32>
    %618 = vector.shape_cast %617 : vector<1x128x32xf32> to vector<128x32xf32>
    %cst_250 = arith.constant dense<0.000000e+00> : vector<1x32xf32>
    %619 = tpu.matmul %616, %618, %cst_250 {dimension_numbers = #tpu.dot_dimension_numbers<[1], [0], [0], [1], [0, 0, 1, 1], [], []>} : vector<1x128xf32>, vector<128x32xf32>, vector<1x32xf32> -> vector<1x32xf32>
    %620 = arith.addf %619, %481 : vector<1x32xf32>
    %621 = arith.addf %620, %610 : vector<1x32xf32>
    %cst_251 = arith.constant dense<0.000000e+00> : vector<1xf32>
    %622 = vector.multi_reduction <add>, %621, %cst_251 [1] : vector<1x32xf32> to vector<1xf32>
    %623 = vector.shape_cast %622 : vector<1xf32> to vector<1x1xf32>
    %cst_252 = arith.constant 3.200000e+01 : f32
    %624 = vector.broadcast %cst_252 : f32 to vector<1x1xf32>
    %625 = arith.divf %623, %624 : vector<1x1xf32>
    %626 = vector.broadcast %625 : vector<1x1xf32> to vector<1x32xf32>
    %627 = arith.subf %621, %626 : vector<1x32xf32>
    %628 = arith.mulf %627, %627 : vector<1x32xf32>
    %cst_253 = arith.constant dense<0.000000e+00> : vector<1xf32>
    %629 = vector.multi_reduction <add>, %628, %cst_253 [1] : vector<1x32xf32> to vector<1xf32>
    %630 = vector.shape_cast %629 : vector<1xf32> to vector<1x1xf32>
    %cst_254 = arith.constant 3.200000e+01 : f32
    %631 = vector.broadcast %cst_254 : f32 to vector<1x1xf32>
    %632 = arith.divf %630, %631 : vector<1x1xf32>
    %633 = vector.broadcast %625 : vector<1x1xf32> to vector<1x32xf32>
    %634 = arith.subf %621, %633 : vector<1x32xf32>
    %cst_255 = arith.constant 9.99999974E-6 : f32
    %635 = vector.broadcast %cst_255 : f32 to vector<1x1xf32>
    %636 = arith.addf %632, %635 : vector<1x1xf32>
    %637 = math.rsqrt %636 : vector<1x1xf32>
    %638 = vector.broadcast %637 : vector<1x1xf32> to vector<1x32xf32>
    %639 = arith.mulf %634, %638 : vector<1x32xf32>
    %640 = arith.mulf %639, %482 : vector<1x32xf32>
    %641 = arith.addf %640, %483 : vector<1x32xf32>
    %c0_256 = arith.constant 0 : index
    %c0_257 = arith.constant 0 : index
    %642 = vector.load %arg14[%c0_256, %c0_257] : memref<32x128xf32, #tpu.memory_space<vmem>>, vector<32x128xf32>
    %c1_258 = arith.constant 1 : index
    %c0_259 = arith.constant 0 : index
    %643 = vector.load %arg15[%c1_258, %c0_259] : memref<2x128xf32, #tpu.memory_space<vmem>>, vector<1x128xf32>
    %cst_260 = arith.constant dense<0.000000e+00> : vector<1x128xf32>
    %644 = tpu.matmul %641, %642, %cst_260 {dimension_numbers = #tpu.dot_dimension_numbers<[1], [0], [0], [1], [0, 0, 1, 1], [], []>} : vector<1x32xf32>, vector<32x128xf32>, vector<1x128xf32> -> vector<1x128xf32>
    %645 = arith.addf %644, %643 : vector<1x128xf32>
    %cst_261 = arith.constant 0.000000e+00 : f32
    %646 = vector.broadcast %cst_261 : f32 to vector<1x128xf32>
    %647 = arith.subf %646, %645 : vector<1x128xf32>
    %648 = math.exp %647 : vector<1x128xf32>
    %cst_262 = arith.constant 1.000000e+00 : f32
    %649 = vector.broadcast %cst_262 : f32 to vector<1x128xf32>
    %650 = arith.addf %649, %648 : vector<1x128xf32>
    %cst_263 = arith.constant 1.000000e+00 : f32
    %651 = vector.broadcast %cst_263 : f32 to vector<1x128xf32>
    %652 = arith.divf %651, %650 : vector<1x128xf32>
    %c0_264 = arith.constant 0 : index
    %c0_265 = arith.constant 0 : index
    %653 = vector.load %arg16[%c0_264, %c0_265] : memref<1x128xf32, #tpu.memory_space<vmem>>, vector<1x128xf32>
    tpu.vector_store %arg16[%c0_264, %c0_265], %652 {strides = array<i32>} : memref<1x128xf32, #tpu.memory_space<vmem>>, vector<1x128xf32>,
    return
  }
}

</mosaic_0001>

<llo_original>
// kernel: ner_class_handler_forward.1
$region0: #{ner_class_handler_forward.1}
  #allocation0 [shape = 'u32[]', space=smem, size = 0x4, offset = 0x4, fixed_abs, tag = 'smem constant byte address 0x4 - core index']
  #allocation1 [shape = 'u32[144,128]{1,0:T(1,128)}', space=vmem, size = 0x12000, scoped, tag = 'internal scratch']
  #allocation2 [shape = 'f32[8,32]{1,0:T(8,128)}', space=vmem, size = 0x1000, scoped, tag = 'scratch operand']
  %s0 = inlined_call_operand.vmem [shape: f32[8,32], index: 0, kind: input, shape index: {}]
  %s1 = inlined_call_operand.vmem [shape: f32[2,32,96], index: 1, kind: input, shape index: {}]
  %s2 = inlined_call_operand.vmem [shape: f32[2,32,32], index: 2, kind: input, shape index: {}]
  %s3 = inlined_call_operand.vmem [shape: f32[2,32,128], index: 3, kind: input, shape index: {}]
  %s4 = inlined_call_operand.vmem [shape: f32[2,128,32], index: 4, kind: input, shape index: {}]
  %s5 = inlined_call_operand.vmem [shape: f32[2,8,128], index: 5, kind: input, shape index: {}]
  %s6 = inlined_call_operand.vmem [shape: f32[2,32,32], index: 6, kind: input, shape index: {}]
  %s7 = inlined_call_operand.vmem [shape: f32[2,32,32], index: 7, kind: input, shape index: {}]
  %s8 = inlined_call_operand.vmem [shape: f32[2,32,32], index: 8, kind: input, shape index: {}]
  %s9 = inlined_call_operand.vmem [shape: f32[32,128], index: 9, kind: input, shape index: {}]
  %s10 = inlined_call_operand.vmem [shape: f32[2,32,32], index: 10, kind: input, shape index: {}]
  %s11 = inlined_call_operand.vmem [shape: f32[2,32,128], index: 11, kind: input, shape index: {}]
  %s12 = inlined_call_operand.vmem [shape: f32[2,128,32], index: 12, kind: input, shape index: {}]
  %s13 = inlined_call_operand.vmem [shape: f32[2,14,128], index: 13, kind: input, shape index: {}]
  %s14 = inlined_call_operand.vmem [shape: f32[32,128], index: 14, kind: input, shape index: {}]
  %s15 = inlined_call_operand.vmem [shape: f32[2,128], index: 15, kind: input, shape index: {}]
  %s16 = inlined_call_operand.vmem [shape: f32[1,128], index: 16, kind: output, shape index: {}]
  %s17 = sld [smem:[#allocation0]]
  $region74: #{ner_class_handler_forward.1} parent=0
    _
  %s19 = ssub.s32 1, %s17
  %s20 = scalar_select 0, %s19, %s17
  // Predicated region
  $region2: #{ner_class_handler_forward.1} parent=0 // pred_check
    _
  $region3: #{ner_class_handler_forward.1} parent=0 // pred_check_branch
    %22 = sbr.rel (0) target = $region5
  $region4: #{ner_class_handler_forward.1} parent=0 // pred_region
    _
  $region5: #{ner_class_handler_forward.1} parent=0 // pred_fallthru
    _
  // Predicated region
  $region6: #{ner_class_handler_forward.1} parent=0 // pred_check
    _
  $region7: #{ner_class_handler_forward.1} parent=0 // pred_check_branch
    %24 = sbr.rel (0) target = $region9
  $region8: #{ner_class_handler_forward.1} parent=0 // pred_region
    _
  $region9: #{ner_class_handler_forward.1} parent=0 // pred_fallthru
    _
  // Predicated region
  $region10: #{ner_class_handler_forward.1} parent=0 // pred_check
    _
  $region11: #{ner_class_handler_forward.1} parent=0 // pred_check_branch
    %26 = sbr.rel (0) target = $region13
  $region12: #{ner_class_handler_forward.1} parent=0 // pred_region
    _
  $region13: #{ner_class_handler_forward.1} parent=0 // pred_fallthru
    _
  // Predicated region
  $region14: #{ner_class_handler_forward.1} parent=0 // pred_check
    _
  $region15: #{ner_class_handler_forward.1} parent=0 // pred_check_branch
    %28 = sbr.rel (0) target = $region17
  $region16: #{ner_class_handler_forward.1} parent=0 // pred_region
    _
  $region17: #{ner_class_handler_forward.1} parent=0 // pred_fallthru
    _
  // Predicated region
  $region18: #{ner_class_handler_forward.1} parent=0 // pred_check
    _
  $region19: #{ner_class_handler_forward.1} parent=0 // pred_check_branch
    %30 = sbr.rel (0) target = $region21
  $region20: #{ner_class_handler_forward.1} parent=0 // pred_region
    _
  $region21: #{ner_class_handler_forward.1} parent=0 // pred_fallthru
    _
  // Predicated region
  $region22: #{ner_class_handler_forward.1} parent=0 // pred_check
    _
  $region23: #{ner_class_handler_forward.1} parent=0 // pred_check_branch
    %32 = sbr.rel (0) target = $region25
  $region24: #{ner_class_handler_forward.1} parent=0 // pred_region
    _
  $region25: #{ner_class_handler_forward.1} parent=0 // pred_fallthru
    _
  // Predicated region
  $region26: #{ner_class_handler_forward.1} parent=0 // pred_check
    _
  $region27: #{ner_class_handler_forward.1} parent=0 // pred_check_branch
    %34 = sbr.rel (0) target = $region29
  $region28: #{ner_class_handler_forward.1} parent=0 // pred_region
    _
  $region29: #{ner_class_handler_forward.1} parent=0 // pred_fallthru
    _
  // Predicated region
  $region30: #{ner_class_handler_forward.1} parent=0 // pred_check
    _
  $region31: #{ner_class_handler_forward.1} parent=0 // pred_check_branch
    %36 = sbr.rel (0) target = $region33
  $region32: #{ner_class_handler_forward.1} parent=0 // pred_region
    _
  $region33: #{ner_class_handler_forward.1} parent=0 // pred_fallthru
    _
  // Predicated region
  $region34: #{ner_class_handler_forward.1} parent=0 // pred_check
    _
  $region35: #{ner_class_handler_forward.1} parent=0 // pred_check_branch
    %38 = sbr.rel (0) target = $region37
  $region36: #{ner_class_handler_forward.1} parent=0 // pred_region
    _
  $region37: #{ner_class_handler_forward.1} parent=0 // pred_fallthru
    _
  // Predicated region
  $region38: #{ner_class_handler_forward.1} parent=0 // pred_check
    _
  $region39: #{ner_class_handler_forward.1} parent=0 // pred_check_branch
    %40 = sbr.rel (0) target = $region41
  $region40: #{ner_class_handler_forward.1} parent=0 // pred_region
    _
  $region41: #{ner_class_handler_forward.1} parent=0 // pred_fallthru
    _
  // Predicated region
  $region42: #{ner_class_handler_forward.1} parent=0 // pred_check
    _
  $region43: #{ner_class_handler_forward.1} parent=0 // pred_check_branch
    %42 = sbr.rel (0) target = $region45
  $region44: #{ner_class_handler_forward.1} parent=0 // pred_region
    _
  $region45: #{ner_class_handler_forward.1} parent=0 // pred_fallthru
    _
  // Predicated region
  $region46: #{ner_class_handler_forward.1} parent=0 // pred_check
    _
  $region47: #{ner_class_handler_forward.1} parent=0 // pred_check_branch
    %44 = sbr.rel (0) target = $region49
  $region48: #{ner_class_handler_forward.1} parent=0 // pred_region
    _
  $region49: #{ner_class_handler_forward.1} parent=0 // pred_fallthru
    _
  // Predicated region
  $region50: #{ner_class_handler_forward.1} parent=0 // pred_check
    _
  $region51: #{ner_class_handler_forward.1} parent=0 // pred_check_branch
    %46 = sbr.rel (0) target = $region53
  $region52: #{ner_class_handler_forward.1} parent=0 // pred_region
    _
  $region53: #{ner_class_handler_forward.1} parent=0 // pred_fallthru
    _
  // Predicated region
  $region54: #{ner_class_handler_forward.1} parent=0 // pred_check
    _
  $region55: #{ner_class_handler_forward.1} parent=0 // pred_check_branch
    %48 = sbr.rel (0) target = $region57
  $region56: #{ner_class_handler_forward.1} parent=0 // pred_region
    _
  $region57: #{ner_class_handler_forward.1} parent=0 // pred_fallthru
    _
  // Predicated region
  $region58: #{ner_class_handler_forward.1} parent=0 // pred_check
    _
  $region59: #{ner_class_handler_forward.1} parent=0 // pred_check_branch
    %50 = sbr.rel (0) target = $region61
  $region60: #{ner_class_handler_forward.1} parent=0 // pred_region
    _
  $region61: #{ner_class_handler_forward.1} parent=0 // pred_fallthru
    _
  // Predicated region
  $region62: #{ner_class_handler_forward.1} parent=0 // pred_check
    _
  $region63: #{ner_class_handler_forward.1} parent=0 // pred_check_branch
    %52 = sbr.rel (0) target = $region65
  $region64: #{ner_class_handler_forward.1} parent=0 // pred_region
    _
  $region65: #{ner_class_handler_forward.1} parent=0 // pred_fallthru
    _
  %v53 = vld [vmem:[%s0] sm:$0xff]
  %v54 = vmul.f32 %v53, 5.656854
  %v55 = vld [vmem:[%s5] sm:$0xff]
  %v56 = vld [vmem:[%s1] sm:$0xff]
  %v57 = vld [vmem:[%s1 + $0x8] sm:$0xff]
  %v58 = vld [vmem:[%s1 + $0x10] sm:$0xff]
  %v59 = vld [vmem:[%s1 + $0x18] sm:$0xff]
  %v60 = vlaneseq
  %v61 = vshrl.u32 %v60, 7
  %v62 = vsub.s32 0, %v61
  %v63 = vrot.slane %v55, %v62
  %vm64 = vcmask 261120
  %v66 = vsel %vm64, %v54, 0
  %68 = vmatprep.subr.mxu0 0.0
  %69 = vmatpush1.msra.mxu0 %v56
  %70 = vmatprep.subr.mxu0 0.0
  %71 = vmatpush1.msra.mxu0 %v57
  %72 = vmatprep.subr.mxu0 0.0
  %73 = vmatpush1.msra.mxu0 %v58
  %74 = vmatprep.subr.mxu0 0.0
  %75 = vmatpush1.msra.mxu0 %v59
  %76 = vmatprep.subr.mxu0 0.0
  %77 = vmatpush1.msra.mxu0 0.0
  %78 = vmatprep.subr.mxu0 0.0
  %79 = vmatpush1.msra.mxu0 0.0
  %80 = vmatprep.subr.mxu0 0.0
  %81 = vmatpush1.msra.mxu0 0.0
  %82 = vmatprep.subr.mxu0 0.0
  %83 = vmatpush1.msra.mxu0 0.0
  %84 = vmatprep.subr.mxu0 0.0
  %85 = vmatpush1.msra.mxu0 0.0
  %86 = vmatprep.subr.mxu0 0.0
  %87 = vmatpush1.msra.mxu0 0.0
  %88 = vmatprep.subr.mxu0 0.0
  %89 = vmatpush1.msra.mxu0 0.0
  %90 = vmatprep.subr.mxu0 0.0
  %91 = vmatpush1.msra.mxu0 0.0
  %92 = vmatprep.subr.mxu0 0.0
  %93 = vmatpush1.msra.mxu0 0.0
  %94 = vmatprep.subr.mxu0 0.0
  %95 = vmatpush1.msra.mxu0 0.0
  %96 = vmatprep.subr.mxu0 0.0
  %97 = vmatpush1.msra.mxu0 0.0
  %98 = vmatprep.subr.mxu0 0.0
  %99 = vmatpush1.msra.mxu0 0.0
  %100 = vmatprep.subr.mxu0 0.0
  %101 = vmatpush1.msra.mxu0 0.0
  %102 = vmatprep.subr.mxu0 0.0
  %103 = vmatpush1.msra.mxu0 0.0
  %104 = vmatprep.subr.mxu0 0.0
  %105 = vmatpush1.msra.mxu0 0.0
  %106 = vmatprep.subr.mxu0 0.0
  %107 = vmatpush1.msra.mxu0 0.0
  %108 = vmatprep.subr.mxu0 0.0
  %109 = vmatpush1.msra.mxu0 0.0
  %110 = vmatprep.subr.mxu0 0.0
  %111 = vmatpush1.msra.mxu0 0.0
  %112 = vmatprep.subr.mxu0 0.0
  %113 = vmatpush1.msra.mxu0 0.0
  %114 = vmatprep.subr.mxu0 0.0
  %115 = vmatpush1.msra.mxu0 0.0
  %116 = vmatprep.subr.mxu0 0.0
  %117 = vmatpush1.msra.mxu0 0.0
  %118 = vmatprep.subr.mxu0 0.0
  %119 = vmatpush1.msra.mxu0 0.0
  %120 = vmatprep.subr.mxu0 0.0
  %121 = vmatpush1.msra.mxu0 0.0
  %122 = vmatprep.subr.mxu0 0.0
  %123 = vmatpush1.msra.mxu0 0.0
  %124 = vmatprep.subr.mxu0 0.0
  %125 = vmatpush1.msra.mxu0 0.0
  %126 = vmatprep.subr.mxu0 0.0
  %127 = vmatpush1.msra.mxu0 0.0
  %128 = vmatprep.subr.mxu0 0.0
  %129 = vmatpush1.msra.mxu0 0.0
  %130 = vmatprep.subr.mxu0 0.0
  %131 = vmatpush1.msra.mxu0 0.0
  %132 = vmatprep.mubr.f32.mxu0 0.0
  %133 = vmatmul.mubr.f32.gmra.mrb[0].mxu0 %v66
  %v134 = vpop.f32.mrb[0].mxu0
  %v135 = vadd.f32 %v63, %v134
  %v136 = vpop.f32.mrb[0].mxu0
  %137 = vdwg.mxu0
  %v138 = vmul.f32 %v135, 0.35355338
  %140 = vrot.lane.b32.xlu0 %v135, 96
  %v141 = vpop.permute.xlu0 %140
  %vm142 = vcmask 64512
  %v144 = vsel %vm142, %v138, 0
  %v146 = vsel %vm142, %v141, 0
  %148 = vmatprep.subr.mxu0 0.0
  %149 = vmatpush1.xpose.msra.mxu0 %v146
  %150 = vmatprep.subr.mxu0 0.0
  %151 = vmatpush1.xpose.msra.mxu0 0.0
  %152 = vmatprep.subr.mxu0 0.0
  %153 = vmatpush1.xpose.msra.mxu0 0.0
  %154 = vmatprep.subr.mxu0 0.0
  %155 = vmatpush1.xpose.msra.mxu0 0.0
  %156 = vmatprep.subr.mxu0 0.0
  %157 = vmatpush1.xpose.msra.mxu0 0.0
  %158 = vmatprep.subr.mxu0 0.0
  %159 = vmatpush1.xpose.msra.mxu0 0.0
  %160 = vmatprep.subr.mxu0 0.0
  %161 = vmatpush1.xpose.msra.mxu0 0.0
  %162 = vmatprep.subr.mxu0 0.0
  %163 = vmatpush1.xpose.msra.mxu0 0.0
  %164 = vmatprep.subr.mxu0 0.0
  %165 = vmatpush1.xpose.msra.mxu0 0.0
  %166 = vmatprep.subr.mxu0 0.0
  %167 = vmatpush1.xpose.msra.mxu0 0.0
  %168 = vmatprep.subr.mxu0 0.0
  %169 = vmatpush1.xpose.msra.mxu0 0.0
  %170 = vmatprep.subr.mxu0 0.0
  %171 = vmatpush1.xpose.msra.mxu0 0.0
  %172 = vmatprep.subr.mxu0 0.0
  %173 = vmatpush1.xpose.msra.mxu0 0.0
  %174 = vmatprep.subr.mxu0 0.0
  %175 = vmatpush1.xpose.msra.mxu0 0.0
  %176 = vmatprep.subr.mxu0 0.0
  %177 = vmatpush1.xpose.msra.mxu0 0.0
  %178 = vmatprep.subr.mxu0 0.0
  %179 = vmatpush1.xpose.msra.mxu0 0.0
  %180 = vmatprep.subr.mxu0 0.0
  %181 = vmatpush1.xpose.msra.mxu0 0.0
  %182 = vmatprep.subr.mxu0 0.0
  %183 = vmatpush1.xpose.msra.mxu0 0.0
  %184 = vmatprep.subr.mxu0 0.0
  %185 = vmatpush1.xpose.msra.mxu0 0.0
  %186 = vmatprep.subr.mxu0 0.0
  %187 = vmatpush1.xpose.msra.mxu0 0.0
  %188 = vmatprep.subr.mxu0 0.0
  %189 = vmatpush1.xpose.msra.mxu0 0.0
  %190 = vmatprep.subr.mxu0 0.0
  %191 = vmatpush1.xpose.msra.mxu0 0.0
  %192 = vmatprep.subr.mxu0 0.0
  %193 = vmatpush1.xpose.msra.mxu0 0.0
  %194 = vmatprep.subr.mxu0 0.0
  %195 = vmatpush1.xpose.msra.mxu0 0.0
  %196 = vmatprep.subr.mxu0 0.0
  %197 = vmatpush1.xpose.msra.mxu0 0.0
  %198 = vmatprep.subr.mxu0 0.0
  %199 = vmatpush1.xpose.msra.mxu0 0.0
  %200 = vmatprep.subr.mxu0 0.0
  %201 = vmatpush1.xpose.msra.mxu0 0.0
  %202 = vmatprep.subr.mxu0 0.0
  %203 = vmatpush1.xpose.msra.mxu0 0.0
  %204 = vmatprep.subr.mxu0 0.0
  %205 = vmatpush1.xpose.msra.mxu0 0.0
  %206 = vmatprep.subr.mxu0 0.0
  %207 = vmatpush1.xpose.msra.mxu0 0.0
  %208 = vmatprep.subr.mxu0 0.0
  %209 = vmatpush1.xpose.msra.mxu0 0.0
  %210 = vmatprep.subr.mxu0 0.0
  %211 = vmatpush1.xpose.msra.mxu0 0.0
  %212 = vmatprep.mubr.f32.mxu0 0.0
  %213 = vmatmul.mubr.f32.gmra.mrb[0].mxu0 %v144
  %v214 = vpop.f32.mrb[0].mxu0
  %v215 = vadd.f32 0.0, %v214
  %v216 = vpop.f32.mrb[0].mxu0
  %217 = vdwg.mxu0
  %v218 = vsel %vm142, %v215, -inf
  %219 = vmax.xlane.f32.xlu0 %v218
  %v220 = vpop.xlane.xlu0 %219
  %v221 = vsub.f32 %v215, %v220
  %v222 = vmul.f32 %v221, 1.442695
  %v223 = vpow.pop %v222
  %v224 = vsel %vm142, %v223, 0.0
  %225 = vadd.xlane.f32.xlu0 %v224
  %v226 = vpop.xlane.xlu0 %225
  %v227 = vrcp.pop %v226
  %v228 = vmul.f32 %v223, %v227
  %229 = vrot.lane.b32.xlu0 %v135, 64
  %v230 = vpop.permute.xlu0 %229
  %v233 = vsel %vm142, %v228, 0
  %235 = vmatprep.subr.mxu0 0.0
  %236 = vmatpush1.msra.mxu0 %v230
  %237 = vmatprep.subr.mxu0 0.0
  %238 = vmatpush1.msra.mxu0 0.0
  %239 = vmatprep.subr.mxu0 0.0
  %240 = vmatpush1.msra.mxu0 0.0
  %241 = vmatprep.subr.mxu0 0.0
  %242 = vmatpush1.msra.mxu0 0.0
  %243 = vmatprep.subr.mxu0 0.0
  %244 = vmatpush1.msra.mxu0 0.0
  %245 = vmatprep.subr.mxu0 0.0
  %246 = vmatpush1.msra.mxu0 0.0
  %247 = vmatprep.subr.mxu0 0.0
  %248 = vmatpush1.msra.mxu0 0.0
  %249 = vmatprep.subr.mxu0 0.0
  %250 = vmatpush1.msra.mxu0 0.0
  %251 = vmatprep.subr.mxu0 0.0
  %252 = vmatpush1.msra.mxu0 0.0
  %253 = vmatprep.subr.mxu0 0.0
  %254 = vmatpush1.msra.mxu0 0.0
  %255 = vmatprep.subr.mxu0 0.0
  %256 = vmatpush1.msra.mxu0 0.0
  %257 = vmatprep.subr.mxu0 0.0
  %258 = vmatpush1.msra.mxu0 0.0
  %259 = vmatprep.subr.mxu0 0.0
  %260 = vmatpush1.msra.mxu0 0.0
  %261 = vmatprep.subr.mxu0 0.0
  %262 = vmatpush1.msra.mxu0 0.0
  %263 = vmatprep.subr.mxu0 0.0
  %264 = vmatpush1.msra.mxu0 0.0
  %265 = vmatprep.subr.mxu0 0.0
  %266 = vmatpush1.msra.mxu0 0.0
  %267 = vmatprep.subr.mxu0 0.0
  %268 = vmatpush1.msra.mxu0 0.0
  %269 = vmatprep.subr.mxu0 0.0
  %270 = vmatpush1.msra.mxu0 0.0
  %271 = vmatprep.subr.mxu0 0.0
  %272 = vmatpush1.msra.mxu0 0.0
  %273 = vmatprep.subr.mxu0 0.0
  %274 = vmatpush1.msra.mxu0 0.0
  %275 = vmatprep.subr.mxu0 0.0
  %276 = vmatpush1.msra.mxu0 0.0
  %277 = vmatprep.subr.mxu0 0.0
  %278 = vmatpush1.msra.mxu0 0.0
  %279 = vmatprep.subr.mxu0 0.0
  %280 = vmatpush1.msra.mxu0 0.0
  %281 = vmatprep.subr.mxu0 0.0
  %282 = vmatpush1.msra.mxu0 0.0
  %283 = vmatprep.subr.mxu0 0.0
  %284 = vmatpush1.msra.mxu0 0.0
  %285 = vmatprep.subr.mxu0 0.0
  %286 = vmatpush1.msra.mxu0 0.0
  %287 = vmatprep.subr.mxu0 0.0
  %288 = vmatpush1.msra.mxu0 0.0
  %289 = vmatprep.subr.mxu0 0.0
  %290 = vmatpush1.msra.mxu0 0.0
  %291 = vmatprep.subr.mxu0 0.0
  %292 = vmatpush1.msra.mxu0 0.0
  %293 = vmatprep.subr.mxu0 0.0
  %294 = vmatpush1.msra.mxu0 0.0
  %295 = vmatprep.subr.mxu0 0.0
  %296 = vmatpush1.msra.mxu0 0.0
  %297 = vmatprep.subr.mxu0 0.0
  %298 = vmatpush1.msra.mxu0 0.0
  %299 = vmatprep.mubr.f32.mxu0 0.0
  %300 = vmatmul.mubr.f32.gmra.mrb[0].mxu0 %v233
  %v301 = vpop.f32.mrb[0].mxu0
  %v302 = vadd.f32 0.0, %v301
  %v303 = vpop.f32.mrb[0].mxu0
  %304 = vdwg.mxu0
  %305 = vst.msk [vmem:[#allocation2] sm:$0xff] %vm142, %v302
  %306 = vrot.lane.b32.xlu0 %v138, 120
  %v307 = vpop.permute.xlu0 %306
  %308 = vrot.lane.b32.xlu0 %v135, 88
  %v309 = vpop.permute.xlu0 %308
  %v310 = vsel %vm142, %v307, 0
  %v312 = vsel %vm142, %v309, 0
  %314 = vmatprep.subr.mxu0 0.0
  %315 = vmatpush1.xpose.msra.mxu0 %v312
  %316 = vmatprep.subr.mxu0 0.0
  %317 = vmatpush1.xpose.msra.mxu0 0.0
  %318 = vmatprep.subr.mxu0 0.0
  %319 = vmatpush1.xpose.msra.mxu0 0.0
  %320 = vmatprep.subr.mxu0 0.0
  %321 = vmatpush1.xpose.msra.mxu0 0.0
  %322 = vmatprep.subr.mxu0 0.0
  %323 = vmatpush1.xpose.msra.mxu0 0.0
  %324 = vmatprep.subr.mxu0 0.0
  %325 = vmatpush1.xpose.msra.mxu0 0.0
  %326 = vmatprep.subr.mxu0 0.0
  %327 = vmatpush1.xpose.msra.mxu0 0.0
  %328 = vmatprep.subr.mxu0 0.0
  %329 = vmatpush1.xpose.msra.mxu0 0.0
  %330 = vmatprep.subr.mxu0 0.0
  %331 = vmatpush1.xpose.msra.mxu0 0.0
  %332 = vmatprep.subr.mxu0 0.0
  %333 = vmatpush1.xpose.msra.mxu0 0.0
  %334 = vmatprep.subr.mxu0 0.0
  %335 = vmatpush1.xpose.msra.mxu0 0.0
  %336 = vmatprep.subr.mxu0 0.0
  %337 = vmatpush1.xpose.msra.mxu0 0.0
  %338 = vmatprep.subr.mxu0 0.0
  %339 = vmatpush1.xpose.msra.mxu0 0.0
  %340 = vmatprep.subr.mxu0 0.0
  %341 = vmatpush1.xpose.msra.mxu0 0.0
  %342 = vmatprep.subr.mxu0 0.0
  %343 = vmatpush1.xpose.msra.mxu0 0.0
  %344 = vmatprep.subr.mxu0 0.0
  %345 = vmatpush1.xpose.msra.mxu0 0.0
  %346 = vmatprep.subr.mxu0 0.0
  %347 = vmatpush1.xpose.msra.mxu0 0.0
  %348 = vmatprep.subr.mxu0 0.0
  %349 = vmatpush1.xpose.msra.mxu0 0.0
  %350 = vmatprep.subr.mxu0 0.0
  %351 = vmatpush1.xpose.msra.mxu0 0.0
  %352 = vmatprep.subr.mxu0 0.0
  %353 = vmatpush1.xpose.msra.mxu0 0.0
  %354 = vmatprep.subr.mxu0 0.0
  %355 = vmatpush1.xpose.msra.mxu0 0.0
  %356 = vmatprep.subr.mxu0 0.0
  %357 = vmatpush1.xpose.msra.mxu0 0.0
  %358 = vmatprep.subr.mxu0 0.0
  %359 = vmatpush1.xpose.msra.mxu0 0.0
  %360 = vmatprep.subr.mxu0 0.0
  %361 = vmatpush1.xpose.msra.mxu0 0.0
  %362 = vmatprep.subr.mxu0 0.0
  %363 = vmatpush1.xpose.msra.mxu0 0.0
  %364 = vmatprep.subr.mxu0 0.0
  %365 = vmatpush1.xpose.msra.mxu0 0.0
  %366 = vmatprep.subr.mxu0 0.0
  %367 = vmatpush1.xpose.msra.mxu0 0.0
  %368 = vmatprep.subr.mxu0 0.0
  %369 = vmatpush1.xpose.msra.mxu0 0.0
  %370 = vmatprep.subr.mxu0 0.0
  %371 = vmatpush1.xpose.msra.mxu0 0.0
  %372 = vmatprep.subr.mxu0 0.0
  %373 = vmatpush1.xpose.msra.mxu0 0.0
  %374 = vmatprep.subr.mxu0 0.0
  %375 = vmatpush1.xpose.msra.mxu0 0.0
  %376 = vmatprep.subr.mxu0 0.0
  %377 = vmatpush1.xpose.msra.mxu0 0.0
  %378 = vmatprep.mubr.f32.mxu0 0.0
  %379 = vmatmul.mubr.f32.gmra.mrb[0].mxu0 %v310
  %v380 = vpop.f32.mrb[0].mxu0
  %v381 = vadd.f32 0.0, %v380
  %v382 = vpop.f32.mrb[0].mxu0
  %383 = vdwg.mxu0
  %v384 = vsel %vm142, %v381, -inf
  %385 = vmax.xlane.f32.xlu0 %v384
  %v386 = vpop.xlane.xlu0 %385
  %v387 = vsub.f32 %v381, %v386
  %v388 = vmul.f32 %v387, 1.442695
  %v389 = vpow.pop %v388
  %v390 = vsel %vm142, %v389, 0.0
  %391 = vadd.xlane.f32.xlu0 %v390
  %v392 = vpop.xlane.xlu0 %391
  %v393 = vrcp.pop %v392
  %v394 = vmul.f32 %v389, %v393
  %395 = vrot.lane.b32.xlu0 %v135, 56
  %v396 = vpop.permute.xlu0 %395
  %v399 = vsel %vm142, %v394, 0
  %401 = vmatprep.subr.mxu0 0.0
  %402 = vmatpush1.msra.mxu0 %v396
  %403 = vmatprep.subr.mxu0 0.0
  %404 = vmatpush1.msra.mxu0 0.0
  %405 = vmatprep.subr.mxu0 0.0
  %406 = vmatpush1.msra.mxu0 0.0
  %407 = vmatprep.subr.mxu0 0.0
  %408 = vmatpush1.msra.mxu0 0.0
  %409 = vmatprep.subr.mxu0 0.0
  %410 = vmatpush1.msra.mxu0 0.0
  %411 = vmatprep.subr.mxu0 0.0
  %412 = vmatpush1.msra.mxu0 0.0
  %413 = vmatprep.subr.mxu0 0.0
  %414 = vmatpush1.msra.mxu0 0.0
  %415 = vmatprep.subr.mxu0 0.0
  %416 = vmatpush1.msra.mxu0 0.0
  %417 = vmatprep.subr.mxu0 0.0
  %418 = vmatpush1.msra.mxu0 0.0
  %419 = vmatprep.subr.mxu0 0.0
  %420 = vmatpush1.msra.mxu0 0.0
  %421 = vmatprep.subr.mxu0 0.0
  %422 = vmatpush1.msra.mxu0 0.0
  %423 = vmatprep.subr.mxu0 0.0
  %424 = vmatpush1.msra.mxu0 0.0
  %425 = vmatprep.subr.mxu0 0.0
  %426 = vmatpush1.msra.mxu0 0.0
  %427 = vmatprep.subr.mxu0 0.0
  %428 = vmatpush1.msra.mxu0 0.0
  %429 = vmatprep.subr.mxu0 0.0
  %430 = vmatpush1.msra.mxu0 0.0
  %431 = vmatprep.subr.mxu0 0.0
  %432 = vmatpush1.msra.mxu0 0.0
  %433 = vmatprep.subr.mxu0 0.0
  %434 = vmatpush1.msra.mxu0 0.0
  %435 = vmatprep.subr.mxu0 0.0
  %436 = vmatpush1.msra.mxu0 0.0
  %437 = vmatprep.subr.mxu0 0.0
  %438 = vmatpush1.msra.mxu0 0.0
  %439 = vmatprep.subr.mxu0 0.0
  %440 = vmatpush1.msra.mxu0 0.0
  %441 = vmatprep.subr.mxu0 0.0
  %442 = vmatpush1.msra.mxu0 0.0
  %443 = vmatprep.subr.mxu0 0.0
  %444 = vmatpush1.msra.mxu0 0.0
  %445 = vmatprep.subr.mxu0 0.0
  %446 = vmatpush1.msra.mxu0 0.0
  %447 = vmatprep.subr.mxu0 0.0
  %448 = vmatpush1.msra.mxu0 0.0
  %449 = vmatprep.subr.mxu0 0.0
  %450 = vmatpush1.msra.mxu0 0.0
  %451 = vmatprep.subr.mxu0 0.0
  %452 = vmatpush1.msra.mxu0 0.0
  %453 = vmatprep.subr.mxu0 0.0
  %454 = vmatpush1.msra.mxu0 0.0
  %455 = vmatprep.subr.mxu0 0.0
  %456 = vmatpush1.msra.mxu0 0.0
  %457 = vmatprep.subr.mxu0 0.0
  %458 = vmatpush1.msra.mxu0 0.0
  %459 = vmatprep.subr.mxu0 0.0
  %460 = vmatpush1.msra.mxu0 0.0
  %461 = vmatprep.subr.mxu0 0.0
  %462 = vmatpush1.msra.mxu0 0.0
  %463 = vmatprep.subr.mxu0 0.0
  %464 = vmatpush1.msra.mxu0 0.0
  %465 = vmatprep.mubr.f32.mxu0 0.0
  %466 = vmatmul.mubr.f32.gmra.mrb[0].mxu0 %v399
  %v467 = vpop.f32.mrb[0].mxu0
  %v468 = vadd.f32 0.0, %v467
  %v469 = vpop.f32.mrb[0].mxu0
  %470 = vdwg.mxu0
  %472 = vrot.lane.b32.xlu0 %v468, 8
  %v473 = vpop.permute.xlu0 %472
  %vm475 = vcmask 130112
  %476 = vst.msk [vmem:[#allocation2] sm:$0xff] %vm475, %v473
  %477 = vrot.lane.b32.xlu0 %v138, 112
  %v478 = vpop.permute.xlu0 %477
  %479 = vrot.lane.b32.xlu0 %v135, 80
  %v480 = vpop.permute.xlu0 %479
  %v481 = vsel %vm142, %v478, 0
  %v483 = vsel %vm142, %v480, 0
  %485 = vmatprep.subr.mxu0 0.0
  %486 = vmatpush1.xpose.msra.mxu0 %v483
  %487 = vmatprep.subr.mxu0 0.0
  %488 = vmatpush1.xpose.msra.mxu0 0.0
  %489 = vmatprep.subr.mxu0 0.0
  %490 = vmatpush1.xpose.msra.mxu0 0.0
  %491 = vmatprep.subr.mxu0 0.0
  %492 = vmatpush1.xpose.msra.mxu0 0.0
  %493 = vmatprep.subr.mxu0 0.0
  %494 = vmatpush1.xpose.msra.mxu0 0.0
  %495 = vmatprep.subr.mxu0 0.0
  %496 = vmatpush1.xpose.msra.mxu0 0.0
  %497 = vmatprep.subr.mxu0 0.0
  %498 = vmatpush1.xpose.msra.mxu0 0.0
  %499 = vmatprep.subr.mxu0 0.0
  %500 = vmatpush1.xpose.msra.mxu0 0.0
  %501 = vmatprep.subr.mxu0 0.0
  %502 = vmatpush1.xpose.msra.mxu0 0.0
  %503 = vmatprep.subr.mxu0 0.0
  %504 = vmatpush1.xpose.msra.mxu0 0.0
  %505 = vmatprep.subr.mxu0 0.0
  %506 = vmatpush1.xpose.msra.mxu0 0.0
  %507 = vmatprep.subr.mxu0 0.0
  %508 = vmatpush1.xpose.msra.mxu0 0.0
  %509 = vmatprep.subr.mxu0 0.0
  %510 = vmatpush1.xpose.msra.mxu0 0.0
  %511 = vmatprep.subr.mxu0 0.0
  %512 = vmatpush1.xpose.msra.mxu0 0.0
  %513 = vmatprep.subr.mxu0 0.0
  %514 = vmatpush1.xpose.msra.mxu0 0.0
  %515 = vmatprep.subr.mxu0 0.0
  %516 = vmatpush1.xpose.msra.mxu0 0.0
  %517 = vmatprep.subr.mxu0 0.0
  %518 = vmatpush1.xpose.msra.mxu0 0.0
  %519 = vmatprep.subr.mxu0 0.0
  %520 = vmatpush1.xpose.msra.mxu0 0.0
  %521 = vmatprep.subr.mxu0 0.0
  %522 = vmatpush1.xpose.msra.mxu0 0.0
  %523 = vmatprep.subr.mxu0 0.0
  %524 = vmatpush1.xpose.msra.mxu0 0.0
  %525 = vmatprep.subr.mxu0 0.0
  %526 = vmatpush1.xpose.msra.mxu0 0.0
  %527 = vmatprep.subr.mxu0 0.0
  %528 = vmatpush1.xpose.msra.mxu0 0.0
  %529 = vmatprep.subr.mxu0 0.0
  %530 = vmatpush1.xpose.msra.mxu0 0.0
  %531 = vmatprep.subr.mxu0 0.0
  %532 = vmatpush1.xpose.msra.mxu0 0.0
  %533 = vmatprep.subr.mxu0 0.0
  %534 = vmatpush1.xpose.msra.mxu0 0.0
  %535 = vmatprep.subr.mxu0 0.0
  %536 = vmatpush1.xpose.msra.mxu0 0.0
  %537 = vmatprep.subr.mxu0 0.0
  %538 = vmatpush1.xpose.msra.mxu0 0.0
  %539 = vmatprep.subr.mxu0 0.0
  %540 = vmatpush1.xpose.msra.mxu0 0.0
  %541 = vmatprep.subr.mxu0 0.0
  %542 = vmatpush1.xpose.msra.mxu0 0.0
  %543 = vmatprep.subr.mxu0 0.0
  %544 = vmatpush1.xpose.msra.mxu0 0.0
  %545 = vmatprep.subr.mxu0 0.0
  %546 = vmatpush1.xpose.msra.mxu0 0.0
  %547 = vmatprep.subr.mxu0 0.0
  %548 = vmatpush1.xpose.msra.mxu0 0.0
  %549 = vmatprep.mubr.f32.mxu0 0.0
  %550 = vmatmul.mubr.f32.gmra.mrb[0].mxu0 %v481
  %v551 = vpop.f32.mrb[0].mxu0
  %v552 = vadd.f32 0.0, %v551
  %v553 = vpop.f32.mrb[0].mxu0
  %554 = vdwg.mxu0
  %v555 = vsel %vm142, %v552, -inf
  %556 = vmax.xlane.f32.xlu0 %v555
  %v557 = vpop.xlane.xlu0 %556
  %v558 = vsub.f32 %v552, %v557
  %v559 = vmul.f32 %v558, 1.442695
  %v560 = vpow.pop %v559
  %v561 = vsel %vm142, %v560, 0.0
  %562 = vadd.xlane.f32.xlu0 %v561
  %v563 = vpop.xlane.xlu0 %562
  %v564 = vrcp.pop %v563
  %v565 = vmul.f32 %v560, %v564
  %566 = vrot.lane.b32.xlu0 %v135, 48
  %v567 = vpop.permute.xlu0 %566
  %v570 = vsel %vm142, %v565, 0
  %572 = vmatprep.subr.mxu0 0.0
  %573 = vmatpush1.msra.mxu0 %v567
  %574 = vmatprep.subr.mxu0 0.0
  %575 = vmatpush1.msra.mxu0 0.0
  %576 = vmatprep.subr.mxu0 0.0
  %577 = vmatpush1.msra.mxu0 0.0
  %578 = vmatprep.subr.mxu0 0.0
  %579 = vmatpush1.msra.mxu0 0.0
  %580 = vmatprep.subr.mxu0 0.0
  %581 = vmatpush1.msra.mxu0 0.0
  %582 = vmatprep.subr.mxu0 0.0
  %583 = vmatpush1.msra.mxu0 0.0
  %584 = vmatprep.subr.mxu0 0.0
  %585 = vmatpush1.msra.mxu0 0.0
  %586 = vmatprep.subr.mxu0 0.0
  %587 = vmatpush1.msra.mxu0 0.0
  %588 = vmatprep.subr.mxu0 0.0
  %589 = vmatpush1.msra.mxu0 0.0
  %590 = vmatprep.subr.mxu0 0.0
  %591 = vmatpush1.msra.mxu0 0.0
  %592 = vmatprep.subr.mxu0 0.0
  %593 = vmatpush1.msra.mxu0 0.0
  %594 = vmatprep.subr.mxu0 0.0
  %595 = vmatpush1.msra.mxu0 0.0
  %596 = vmatprep.subr.mxu0 0.0
  %597 = vmatpush1.msra.mxu0 0.0
  %598 = vmatprep.subr.mxu0 0.0
  %599 = vmatpush1.msra.mxu0 0.0
  %600 = vmatprep.subr.mxu0 0.0
  %601 = vmatpush1.msra.mxu0 0.0
  %602 = vmatprep.subr.mxu0 0.0
  %603 = vmatpush1.msra.mxu0 0.0
  %604 = vmatprep.subr.mxu0 0.0
  %605 = vmatpush1.msra.mxu0 0.0
  %606 = vmatprep.subr.mxu0 0.0
  %607 = vmatpush1.msra.mxu0 0.0
  %608 = vmatprep.subr.mxu0 0.0
  %609 = vmatpush1.msra.mxu0 0.0
  %610 = vmatprep.subr.mxu0 0.0
  %611 = vmatpush1.msra.mxu0 0.0
  %612 = vmatprep.subr.mxu0 0.0
  %613 = vmatpush1.msra.mxu0 0.0
  %614 = vmatprep.subr.mxu0 0.0
  %615 = vmatpush1.msra.mxu0 0.0
  %616 = vmatprep.subr.mxu0 0.0
  %617 = vmatpush1.msra.mxu0 0.0
  %618 = vmatprep.subr.mxu0 0.0
  %619 = vmatpush1.msra.mxu0 0.0
  %620 = vmatprep.subr.mxu0 0.0
  %621 = vmatpush1.msra.mxu0 0.0
  %622 = vmatprep.subr.mxu0 0.0
  %623 = vmatpush1.msra.mxu0 0.0
  %624 = vmatprep.subr.mxu0 0.0
  %625 = vmatpush1.msra.mxu0 0.0
  %626 = vmatprep.subr.mxu0 0.0
  %627 = vmatpush1.msra.mxu0 0.0
  %628 = vmatprep.subr.mxu0 0.0
  %629 = vmatpush1.msra.mxu0 0.0
  %630 = vmatprep.subr.mxu0 0.0
  %631 = vmatpush1.msra.mxu0 0.0
  %632 = vmatprep.subr.mxu0 0.0
  %633 = vmatpush1.msra.mxu0 0.0
  %634 = vmatprep.subr.mxu0 0.0
  %635 = vmatpush1.msra.mxu0 0.0
  %636 = vmatprep.mubr.f32.mxu0 0.0
  %637 = vmatmul.mubr.f32.gmra.mrb[0].mxu0 %v570
  %v638 = vpop.f32.mrb[0].mxu0
  %v639 = vadd.f32 0.0, %v638
  %v640 = vpop.f32.mrb[0].mxu0
  %641 = vdwg.mxu0
  %643 = vrot.lane.b32.xlu0 %v639, 16
  %v644 = vpop.permute.xlu0 %643
  %vm646 = vcmask 195712
  %647 = vst.msk [vmem:[#allocation2] sm:$0xff] %vm646, %v644
  %648 = vrot.lane.b32.xlu0 %v138, 104
  %v649 = vpop.permute.xlu0 %648
  %650 = vrot.lane.b32.xlu0 %v135, 72
  %v651 = vpop.permute.xlu0 %650
  %v652 = vsel %vm142, %v649, 0
  %v654 = vsel %vm142, %v651, 0
  %656 = vmatprep.subr.mxu0 0.0
  %657 = vmatpush1.xpose.msra.mxu0 %v654
  %658 = vmatprep.subr.mxu0 0.0
  %659 = vmatpush1.xpose.msra.mxu0 0.0
  %660 = vmatprep.subr.mxu0 0.0
  %661 = vmatpush1.xpose.msra.mxu0 0.0
  %662 = vmatprep.subr.mxu0 0.0
  %663 = vmatpush1.xpose.msra.mxu0 0.0
  %664 = vmatprep.subr.mxu0 0.0
  %665 = vmatpush1.xpose.msra.mxu0 0.0
  %666 = vmatprep.subr.mxu0 0.0
  %667 = vmatpush1.xpose.msra.mxu0 0.0
  %668 = vmatprep.subr.mxu0 0.0
  %669 = vmatpush1.xpose.msra.mxu0 0.0
  %670 = vmatprep.subr.mxu0 0.0
  %671 = vmatpush1.xpose.msra.mxu0 0.0
  %672 = vmatprep.subr.mxu0 0.0
  %673 = vmatpush1.xpose.msra.mxu0 0.0
  %674 = vmatprep.subr.mxu0 0.0
  %675 = vmatpush1.xpose.msra.mxu0 0.0
  %676 = vmatprep.subr.mxu0 0.0
  %677 = vmatpush1.xpose.msra.mxu0 0.0
  %678 = vmatprep.subr.mxu0 0.0
  %679 = vmatpush1.xpose.msra.mxu0 0.0
  %680 = vmatprep.subr.mxu0 0.0
  %681 = vmatpush1.xpose.msra.mxu0 0.0
  %682 = vmatprep.subr.mxu0 0.0
  %683 = vmatpush1.xpose.msra.mxu0 0.0
  %684 = vmatprep.subr.mxu0 0.0
  %685 = vmatpush1.xpose.msra.mxu0 0.0
  %686 = vmatprep.subr.mxu0 0.0
  %687 = vmatpush1.xpose.msra.mxu0 0.0
  %688 = vmatprep.subr.mxu0 0.0
  %689 = vmatpush1.xpose.msra.mxu0 0.0
  %690 = vmatprep.subr.mxu0 0.0
  %691 = vmatpush1.xpose.msra.mxu0 0.0
  %692 = vmatprep.subr.mxu0 0.0
  %693 = vmatpush1.xpose.msra.mxu0 0.0
  %694 = vmatprep.subr.mxu0 0.0
  %695 = vmatpush1.xpose.msra.mxu0 0.0
  %696 = vmatprep.subr.mxu0 0.0
  %697 = vmatpush1.xpose.msra.mxu0 0.0
  %698 = vmatprep.subr.mxu0 0.0
  %699 = vmatpush1.xpose.msra.mxu0 0.0
  %700 = vmatprep.subr.mxu0 0.0
  %701 = vmatpush1.xpose.msra.mxu0 0.0
  %702 = vmatprep.subr.mxu0 0.0
  %703 = vmatpush1.xpose.msra.mxu0 0.0
  %704 = vmatprep.subr.mxu0 0.0
  %705 = vmatpush1.xpose.msra.mxu0 0.0
  %706 = vmatprep.subr.mxu0 0.0
  %707 = vmatpush1.xpose.msra.mxu0 0.0
  %708 = vmatprep.subr.mxu0 0.0
  %709 = vmatpush1.xpose.msra.mxu0 0.0
  %710 = vmatprep.subr.mxu0 0.0
  %711 = vmatpush1.xpose.msra.mxu0 0.0
  %712 = vmatprep.subr.mxu0 0.0
  %713 = vmatpush1.xpose.msra.mxu0 0.0
  %714 = vmatprep.subr.mxu0 0.0
  %715 = vmatpush1.xpose.msra.mxu0 0.0
  %716 = vmatprep.subr.mxu0 0.0
  %717 = vmatpush1.xpose.msra.mxu0 0.0
  %718 = vmatprep.subr.mxu0 0.0
  %719 = vmatpush1.xpose.msra.mxu0 0.0
  %720 = vmatprep.mubr.f32.mxu0 0.0
  %721 = vmatmul.mubr.f32.gmra.mrb[0].mxu0 %v652
  %v722 = vpop.f32.mrb[0].mxu0
  %v723 = vadd.f32 0.0, %v722
  %v724 = vpop.f32.mrb[0].mxu0
  %725 = vdwg.mxu0
  %v726 = vsel %vm142, %v723, -inf
  %727 = vmax.xlane.f32.xlu0 %v726
  %v728 = vpop.xlane.xlu0 %727
  %v729 = vsub.f32 %v723, %v728
  %v730 = vmul.f32 %v729, 1.442695
  %v731 = vpow.pop %v730
  %v732 = vsel %vm142, %v731, 0.0
  %733 = vadd.xlane.f32.xlu0 %v732
  %v734 = vpop.xlane.xlu0 %733
  %v735 = vrcp.pop %v734
  %v736 = vmul.f32 %v731, %v735
  %737 = vrot.lane.b32.xlu0 %v135, 40
  %v738 = vpop.permute.xlu0 %737
  %v741 = vsel %vm142, %v736, 0
  %743 = vmatprep.subr.mxu0 0.0
  %744 = vmatpush1.msra.mxu0 %v738
  %745 = vmatprep.subr.mxu0 0.0
  %746 = vmatpush1.msra.mxu0 0.0
  %747 = vmatprep.subr.mxu0 0.0
  %748 = vmatpush1.msra.mxu0 0.0
  %749 = vmatprep.subr.mxu0 0.0
  %750 = vmatpush1.msra.mxu0 0.0
  %751 = vmatprep.subr.mxu0 0.0
  %752 = vmatpush1.msra.mxu0 0.0
  %753 = vmatprep.subr.mxu0 0.0
  %754 = vmatpush1.msra.mxu0 0.0
  %755 = vmatprep.subr.mxu0 0.0
  %756 = vmatpush1.msra.mxu0 0.0
  %757 = vmatprep.subr.mxu0 0.0
  %758 = vmatpush1.msra.mxu0 0.0
  %759 = vmatprep.subr.mxu0 0.0
  %760 = vmatpush1.msra.mxu0 0.0
  %761 = vmatprep.subr.mxu0 0.0
  %762 = vmatpush1.msra.mxu0 0.0
  %763 = vmatprep.subr.mxu0 0.0
  %764 = vmatpush1.msra.mxu0 0.0
  %765 = vmatprep.subr.mxu0 0.0
  %766 = vmatpush1.msra.mxu0 0.0
  %767 = vmatprep.subr.mxu0 0.0
  %768 = vmatpush1.msra.mxu0 0.0
  %769 = vmatprep.subr.mxu0 0.0
  %770 = vmatpush1.msra.mxu0 0.0
  %771 = vmatprep.subr.mxu0 0.0
  %772 = vmatpush1.msra.mxu0 0.0
  %773 = vmatprep.subr.mxu0 0.0
  %774 = vmatpush1.msra.mxu0 0.0
  %775 = vmatprep.subr.mxu0 0.0
  %776 = vmatpush1.msra.mxu0 0.0
  %777 = vmatprep.subr.mxu0 0.0
  %778 = vmatpush1.msra.mxu0 0.0
  %779 = vmatprep.subr.mxu0 0.0
  %780 = vmatpush1.msra.mxu0 0.0
  %781 = vmatprep.subr.mxu0 0.0
  %782 = vmatpush1.msra.mxu0 0.0
  %783 = vmatprep.subr.mxu0 0.0
  %784 = vmatpush1.msra.mxu0 0.0
  %785 = vmatprep.subr.mxu0 0.0
  %786 = vmatpush1.msra.mxu0 0.0
  %787 = vmatprep.subr.mxu0 0.0
  %788 = vmatpush1.msra.mxu0 0.0
  %789 = vmatprep.subr.mxu0 0.0
  %790 = vmatpush1.msra.mxu0 0.0
  %791 = vmatprep.subr.mxu0 0.0
  %792 = vmatpush1.msra.mxu0 0.0
  %793 = vmatprep.subr.mxu0 0.0
  %794 = vmatpush1.msra.mxu0 0.0
  %795 = vmatprep.subr.mxu0 0.0
  %796 = vmatpush1.msra.mxu0 0.0
  %797 = vmatprep.subr.mxu0 0.0
  %798 = vmatpush1.msra.mxu0 0.0
  %799 = vmatprep.subr.mxu0 0.0
  %800 = vmatpush1.msra.mxu0 0.0
  %801 = vmatprep.subr.mxu0 0.0
  %802 = vmatpush1.msra.mxu0 0.0
  %803 = vmatprep.subr.mxu0 0.0
  %804 = vmatpush1.msra.mxu0 0.0
  %805 = vmatprep.subr.mxu0 0.0
  %806 = vmatpush1.msra.mxu0 0.0
  %807 = vmatprep.mubr.f32.mxu0 0.0
  %808 = vmatmul.mubr.f32.gmra.mrb[0].mxu0 %v741
  %v809 = vpop.f32.mrb[0].mxu0
  %v810 = vadd.f32 0.0, %v809
  %v811 = vpop.f32.mrb[0].mxu0
  %812 = vdwg.mxu0
  %814 = vrot.lane.b32.xlu0 %v810, 24
  %v815 = vpop.permute.xlu0 %814
  %vm817 = vcmask 261312
  %818 = vst.msk [vmem:[#allocation2] sm:$0xff] %vm817, %v815
  %v819 = vld [vmem:[#allocation2] sm:$0xff]
  %v820 = vld [vmem:[%s2] sm:$0xff]
  %v821 = vld [vmem:[%s2 + $0x8] sm:$0xff]
  %v822 = vld [vmem:[%s2 + $0x10] sm:$0xff]
  %v823 = vld [vmem:[%s2 + $0x18] sm:$0xff]
  %v824 = vlaneseq
  %v825 = vshrl.u32 %v824, 7
  %v826 = vsub.s32 1, %v825
  %v827 = vrot.slane %v55, %v826
  %v829 = vsel %vm64, %v819, 0
  %831 = vmatprep.subr.mxu0 0.0
  %832 = vmatpush1.msra.mxu0 %v820
  %833 = vmatprep.subr.mxu0 0.0
  %834 = vmatpush1.msra.mxu0 %v821
  %835 = vmatprep.subr.mxu0 0.0
  %836 = vmatpush1.msra.mxu0 %v822
  %837 = vmatprep.subr.mxu0 0.0
  %838 = vmatpush1.msra.mxu0 %v823
  %839 = vmatprep.subr.mxu0 0.0
  %840 = vmatpush1.msra.mxu0 0.0
  %841 = vmatprep.subr.mxu0 0.0
  %842 = vmatpush1.msra.mxu0 0.0
  %843 = vmatprep.subr.mxu0 0.0
  %844 = vmatpush1.msra.mxu0 0.0
  %845 = vmatprep.subr.mxu0 0.0
  %846 = vmatpush1.msra.mxu0 0.0
  %847 = vmatprep.subr.mxu0 0.0
  %848 = vmatpush1.msra.mxu0 0.0
  %849 = vmatprep.subr.mxu0 0.0
  %850 = vmatpush1.msra.mxu0 0.0
  %851 = vmatprep.subr.mxu0 0.0
  %852 = vmatpush1.msra.mxu0 0.0
  %853 = vmatprep.subr.mxu0 0.0
  %854 = vmatpush1.msra.mxu0 0.0
  %855 = vmatprep.subr.mxu0 0.0
  %856 = vmatpush1.msra.mxu0 0.0
  %857 = vmatprep.subr.mxu0 0.0
  %858 = vmatpush1.msra.mxu0 0.0
  %859 = vmatprep.subr.mxu0 0.0
  %860 = vmatpush1.msra.mxu0 0.0
  %861 = vmatprep.subr.mxu0 0.0
  %862 = vmatpush1.msra.mxu0 0.0
  %863 = vmatprep.subr.mxu0 0.0
  %864 = vmatpush1.msra.mxu0 0.0
  %865 = vmatprep.subr.mxu0 0.0
  %866 = vmatpush1.msra.mxu0 0.0
  %867 = vmatprep.subr.mxu0 0.0
  %868 = vmatpush1.msra.mxu0 0.0
  %869 = vmatprep.subr.mxu0 0.0
  %870 = vmatpush1.msra.mxu0 0.0
  %871 = vmatprep.subr.mxu0 0.0
  %872 = vmatpush1.msra.mxu0 0.0
  %873 = vmatprep.subr.mxu0 0.0
  %874 = vmatpush1.msra.mxu0 0.0
  %875 = vmatprep.subr.mxu0 0.0
  %876 = vmatpush1.msra.mxu0 0.0
  %877 = vmatprep.subr.mxu0 0.0
  %878 = vmatpush1.msra.mxu0 0.0
  %879 = vmatprep.subr.mxu0 0.0
  %880 = vmatpush1.msra.mxu0 0.0
  %881 = vmatprep.subr.mxu0 0.0
  %882 = vmatpush1.msra.mxu0 0.0
  %883 = vmatprep.subr.mxu0 0.0
  %884 = vmatpush1.msra.mxu0 0.0
  %885 = vmatprep.subr.mxu0 0.0
  %886 = vmatpush1.msra.mxu0 0.0
  %887 = vmatprep.subr.mxu0 0.0
  %888 = vmatpush1.msra.mxu0 0.0
  %889 = vmatprep.subr.mxu0 0.0
  %890 = vmatpush1.msra.mxu0 0.0
  %891 = vmatprep.subr.mxu0 0.0
  %892 = vmatpush1.msra.mxu0 0.0
  %893 = vmatprep.subr.mxu0 0.0
  %894 = vmatpush1.msra.mxu0 0.0
  %895 = vmatprep.mubr.f32.mxu0 0.0
  %896 = vmatmul.mubr.f32.gmra.mrb[0].mxu0 %v829
  %v897 = vpop.f32.mrb[0].mxu0
  %v898 = vadd.f32 %v827, %v897
  %v899 = vpop.f32.mrb[0].mxu0
  %900 = vdwg.mxu0
  %v901 = vadd.f32 %v898, %v54
  %v902 = vsel %vm64, %v901, 0.0
  %903 = vadd.xlane.f32.xlu0 %v902
  %v904 = vpop.xlane.xlu0 %903
  %v905 = vrcp.pop 32.0
  %v906 = vmul.f32 %v904, %v905
  %v907 = vsub.f32 %v901, %v906
  %v908 = vmul.f32 %v907, %v907
  %v909 = vsel %vm64, %v908, 0.0
  %910 = vadd.xlane.f32.xlu0 %v909
  %v911 = vpop.xlane.xlu0 %910
  %v912 = vmul.f32 %v911, %v905
  %v913 = vadd.f32 %v912, 1e-05
  %v914 = vrsqrt.pop %v913
  %v915 = vmul.f32 %v907, %v914
  %v916 = vlaneseq
  %v917 = vshrl.u32 %v916, 7
  %v918 = vsub.s32 2, %v917
  %v919 = vrot.slane %v55, %v918
  %v920 = vmul.f32 %v915, %v919
  %v921 = vlaneseq
  %v922 = vshrl.u32 %v921, 7
  %v923 = vsub.s32 3, %v922
  %v924 = vrot.slane %v55, %v923
  %v925 = vadd.f32 %v920, %v924
  %v926 = vld [vmem:[%s3] sm:$0xff]
  %v927 = vld [vmem:[%s3 + $0x8] sm:$0xff]
  %v928 = vld [vmem:[%s3 + $0x10] sm:$0xff]
  %v929 = vld [vmem:[%s3 + $0x18] sm:$0xff]
  %v930 = vlaneseq
  %v931 = vshrl.u32 %v930, 7
  %v932 = vsub.s32 4, %v931
  %v933 = vrot.slane %v55, %v932
  %v935 = vsel %vm64, %v925, 0
  %937 = vmatprep.subr.mxu0 0.0
  %938 = vmatpush1.msra.mxu0 %v926
  %939 = vmatprep.subr.mxu0 0.0
  %940 = vmatpush1.msra.mxu0 %v927
  %941 = vmatprep.subr.mxu0 0.0
  %942 = vmatpush1.msra.mxu0 %v928
  %943 = vmatprep.subr.mxu0 0.0
  %944 = vmatpush1.msra.mxu0 %v929
  %945 = vmatprep.subr.mxu0 0.0
  %946 = vmatpush1.msra.mxu0 0.0
  %947 = vmatprep.subr.mxu0 0.0
  %948 = vmatpush1.msra.mxu0 0.0
  %949 = vmatprep.subr.mxu0 0.0
  %950 = vmatpush1.msra.mxu0 0.0
  %951 = vmatprep.subr.mxu0 0.0
  %952 = vmatpush1.msra.mxu0 0.0
  %953 = vmatprep.subr.mxu0 0.0
  %954 = vmatpush1.msra.mxu0 0.0
  %955 = vmatprep.subr.mxu0 0.0
  %956 = vmatpush1.msra.mxu0 0.0
  %957 = vmatprep.subr.mxu0 0.0
  %958 = vmatpush1.msra.mxu0 0.0
  %959 = vmatprep.subr.mxu0 0.0
  %960 = vmatpush1.msra.mxu0 0.0
  %961 = vmatprep.subr.mxu0 0.0
  %962 = vmatpush1.msra.mxu0 0.0
  %963 = vmatprep.subr.mxu0 0.0
  %964 = vmatpush1.msra.mxu0 0.0
  %965 = vmatprep.subr.mxu0 0.0
  %966 = vmatpush1.msra.mxu0 0.0
  %967 = vmatprep.subr.mxu0 0.0
  %968 = vmatpush1.msra.mxu0 0.0
  %969 = vmatprep.subr.mxu0 0.0
  %970 = vmatpush1.msra.mxu0 0.0
  %971 = vmatprep.subr.mxu0 0.0
  %972 = vmatpush1.msra.mxu0 0.0
  %973 = vmatprep.subr.mxu0 0.0
  %974 = vmatpush1.msra.mxu0 0.0
  %975 = vmatprep.subr.mxu0 0.0
  %976 = vmatpush1.msra.mxu0 0.0
  %977 = vmatprep.subr.mxu0 0.0
  %978 = vmatpush1.msra.mxu0 0.0
  %979 = vmatprep.subr.mxu0 0.0
  %980 = vmatpush1.msra.mxu0 0.0
  %981 = vmatprep.subr.mxu0 0.0
  %982 = vmatpush1.msra.mxu0 0.0
  %983 = vmatprep.subr.mxu0 0.0
  %984 = vmatpush1.msra.mxu0 0.0
  %985 = vmatprep.subr.mxu0 0.0
  %986 = vmatpush1.msra.mxu0 0.0
  %987 = vmatprep.subr.mxu0 0.0
  %988 = vmatpush1.msra.mxu0 0.0
  %989 = vmatprep.subr.mxu0 0.0
  %990 = vmatpush1.msra.mxu0 0.0
  %991 = vmatprep.subr.mxu0 0.0
  %992 = vmatpush1.msra.mxu0 0.0
  %993 = vmatprep.subr.mxu0 0.0
  %994 = vmatpush1.msra.mxu0 0.0
  %995 = vmatprep.subr.mxu0 0.0
  %996 = vmatpush1.msra.mxu0 0.0
  %997 = vmatprep.subr.mxu0 0.0
  %998 = vmatpush1.msra.mxu0 0.0
  %999 = vmatprep.subr.mxu0 0.0
  %1000 = vmatpush1.msra.mxu0 0.0
  %1001 = vmatprep.mubr.f32.mxu0 0.0
  %1002 = vmatmul.mubr.f32.gmra.mrb[0].mxu0 %v935
  %v1003 = vpop.f32.mrb[0].mxu0
  %v1004 = vadd.f32 %v933, %v1003
  %v1005 = vpop.f32.mrb[0].mxu0
  %1006 = vdwg.mxu0
  %v1007 = vmax.f32 %v1004, 0.0
  %v1008 = vld [vmem:[%s4] sm:$0xff]
  %v1009 = vld [vmem:[%s4 + $0x8] sm:$0xff]
  %v1010 = vld [vmem:[%s4 + $0x10] sm:$0xff]
  %v1011 = vld [vmem:[%s4 + $0x18] sm:$0xff]
  %v1012 = vld [vmem:[%s4 + $0x20] sm:$0xff]
  %v1013 = vld [vmem:[%s4 + $0x28] sm:$0xff]
  %v1014 = vld [vmem:[%s4 + $0x30] sm:$0xff]
  %v1015 = vld [vmem:[%s4 + $0x38] sm:$0xff]
  %v1016 = vld [vmem:[%s4 + $0x40] sm:$0xff]
  %v1017 = vld [vmem:[%s4 + $0x48] sm:$0xff]
  %v1018 = vld [vmem:[%s4 + $0x50] sm:$0xff]
  %v1019 = vld [vmem:[%s4 + $0x58] sm:$0xff]
  %v1020 = vld [vmem:[%s4 + $0x60] sm:$0xff]
  %v1021 = vld [vmem:[%s4 + $0x68] sm:$0xff]
  %v1022 = vld [vmem:[%s4 + $0x70] sm:$0xff]
  %v1023 = vld [vmem:[%s4 + $0x78] sm:$0xff]
  %v1024 = vlaneseq
  %v1025 = vshrl.u32 %v1024, 7
  %v1026 = vsub.s32 5, %v1025
  %v1027 = vrot.slane %v55, %v1026
  %1028 = vmatprep.subr.mxu0 0.0
  %1029 = vmatpush1.msra.mxu0 %v1008
  %1030 = vmatprep.subr.mxu0 0.0
  %1031 = vmatpush1.msra.mxu0 %v1009
  %1032 = vmatprep.subr.mxu0 0.0
  %1033 = vmatpush1.msra.mxu0 %v1010
  %1034 = vmatprep.subr.mxu0 0.0
  %1035 = vmatpush1.msra.mxu0 %v1011
  %1036 = vmatprep.subr.mxu0 0.0
  %1037 = vmatpush1.msra.mxu0 %v1012
  %1038 = vmatprep.subr.mxu0 0.0
  %1039 = vmatpush1.msra.mxu0 %v1013
  %1040 = vmatprep.subr.mxu0 0.0
  %1041 = vmatpush1.msra.mxu0 %v1014
  %1042 = vmatprep.subr.mxu0 0.0
  %1043 = vmatpush1.msra.mxu0 %v1015
  %1044 = vmatprep.subr.mxu0 0.0
  %1045 = vmatpush1.msra.mxu0 %v1016
  %1046 = vmatprep.subr.mxu0 0.0
  %1047 = vmatpush1.msra.mxu0 %v1017
  %1048 = vmatprep.subr.mxu0 0.0
  %1049 = vmatpush1.msra.mxu0 %v1018
  %1050 = vmatprep.subr.mxu0 0.0
  %1051 = vmatpush1.msra.mxu0 %v1019
  %1052 = vmatprep.subr.mxu0 0.0
  %1053 = vmatpush1.msra.mxu0 %v1020
  %1054 = vmatprep.subr.mxu0 0.0
  %1055 = vmatpush1.msra.mxu0 %v1021
  %1056 = vmatprep.subr.mxu0 0.0
  %1057 = vmatpush1.msra.mxu0 %v1022
  %1058 = vmatprep.subr.mxu0 0.0
  %1059 = vmatpush1.msra.mxu0 %v1023
  %1060 = vmatprep.subr.mxu0 0.0
  %1061 = vmatpush1.msra.mxu0 0.0
  %1062 = vmatprep.subr.mxu0 0.0
  %1063 = vmatpush1.msra.mxu0 0.0
  %1064 = vmatprep.subr.mxu0 0.0
  %1065 = vmatpush1.msra.mxu0 0.0
  %1066 = vmatprep.subr.mxu0 0.0
  %1067 = vmatpush1.msra.mxu0 0.0
  %1068 = vmatprep.subr.mxu0 0.0
  %1069 = vmatpush1.msra.mxu0 0.0
  %1070 = vmatprep.subr.mxu0 0.0
  %1071 = vmatpush1.msra.mxu0 0.0
  %1072 = vmatprep.subr.mxu0 0.0
  %1073 = vmatpush1.msra.mxu0 0.0
  %1074 = vmatprep.subr.mxu0 0.0
  %1075 = vmatpush1.msra.mxu0 0.0
  %1076 = vmatprep.subr.mxu0 0.0
  %1077 = vmatpush1.msra.mxu0 0.0
  %1078 = vmatprep.subr.mxu0 0.0
  %1079 = vmatpush1.msra.mxu0 0.0
  %1080 = vmatprep.subr.mxu0 0.0
  %1081 = vmatpush1.msra.mxu0 0.0
  %1082 = vmatprep.subr.mxu0 0.0
  %1083 = vmatpush1.msra.mxu0 0.0
  %1084 = vmatprep.subr.mxu0 0.0
  %1085 = vmatpush1.msra.mxu0 0.0
  %1086 = vmatprep.subr.mxu0 0.0
  %1087 = vmatpush1.msra.mxu0 0.0
  %1088 = vmatprep.subr.mxu0 0.0
  %1089 = vmatpush1.msra.mxu0 0.0
  %1090 = vmatprep.subr.mxu0 0.0
  %1091 = vmatpush1.msra.mxu0 0.0
  %1092 = vmatprep.mubr.f32.mxu0 0.0
  %1093 = vmatmul.mubr.f32.gmra.mrb[0].mxu0 %v1007
  %v1094 = vpop.f32.mrb[0].mxu0
  %v1095 = vadd.f32 %v1027, %v1094
  %v1096 = vpop.f32.mrb[0].mxu0
  %1097 = vdwg.mxu0
  %v1098 = vadd.f32 %v1095, %v925
  %v1099 = vsel %vm64, %v1098, 0.0
  %1100 = vadd.xlane.f32.xlu0 %v1099
  %v1101 = vpop.xlane.xlu0 %1100
  %v1102 = vmul.f32 %v1101, %v905
  %v1103 = vsub.f32 %v1098, %v1102
  %v1104 = vmul.f32 %v1103, %v1103
  %v1105 = vsel %vm64, %v1104, 0.0
  %1106 = vadd.xlane.f32.xlu0 %v1105
  %v1107 = vpop.xlane.xlu0 %1106
  %v1108 = vmul.f32 %v1107, %v905
  %v1109 = vadd.f32 %v1108, 1e-05
  %v1110 = vrsqrt.pop %v1109
  %v1111 = vmul.f32 %v1103, %v1110
  %v1112 = vlaneseq
  %v1113 = vshrl.u32 %v1112, 7
  %v1114 = vsub.s32 6, %v1113
  %v1115 = vrot.slane %v55, %v1114
  %v1116 = vmul.f32 %v1111, %v1115
  %v1117 = vlaneseq
  %v1118 = vshrl.u32 %v1117, 7
  %v1119 = vsub.s32 7, %v1118
  %v1120 = vrot.slane %v55, %v1119
  %v1121 = vadd.f32 %v1116, %v1120
  %s1122 = scalar_lea.vmem %s5, 8
  %v1123 = vld [vmem:[%s1122] sm:$0xff]
  %s1124 = scalar_lea.vmem %s1, 32
  %v1125 = vld [vmem:[%s1124] sm:$0xff]
  %v1126 = vld [vmem:[%s1124 + $0x8] sm:$0xff]
  %v1127 = vld [vmem:[%s1124 + $0x10] sm:$0xff]
  %v1128 = vld [vmem:[%s1124 + $0x18] sm:$0xff]
  %v1129 = vlaneseq
  %v1130 = vshrl.u32 %v1129, 7
  %v1131 = vsub.s32 0, %v1130
  %v1132 = vrot.slane %v1123, %v1131
  %v1134 = vsel %vm64, %v1121, 0
  %1136 = vmatprep.subr.mxu0 0.0
  %1137 = vmatpush1.msra.mxu0 %v1125
  %1138 = vmatprep.subr.mxu0 0.0
  %1139 = vmatpush1.msra.mxu0 %v1126
  %1140 = vmatprep.subr.mxu0 0.0
  %1141 = vmatpush1.msra.mxu0 %v1127
  %1142 = vmatprep.subr.mxu0 0.0
  %1143 = vmatpush1.msra.mxu0 %v1128
  %1144 = vmatprep.subr.mxu0 0.0
  %1145 = vmatpush1.msra.mxu0 0.0
  %1146 = vmatprep.subr.mxu0 0.0
  %1147 = vmatpush1.msra.mxu0 0.0
  %1148 = vmatprep.subr.mxu0 0.0
  %1149 = vmatpush1.msra.mxu0 0.0
  %1150 = vmatprep.subr.mxu0 0.0
  %1151 = vmatpush1.msra.mxu0 0.0
  %1152 = vmatprep.subr.mxu0 0.0
  %1153 = vmatpush1.msra.mxu0 0.0
  %1154 = vmatprep.subr.mxu0 0.0
  %1155 = vmatpush1.msra.mxu0 0.0
  %1156 = vmatprep.subr.mxu0 0.0
  %1157 = vmatpush1.msra.mxu0 0.0
  %1158 = vmatprep.subr.mxu0 0.0
  %1159 = vmatpush1.msra.mxu0 0.0
  %1160 = vmatprep.subr.mxu0 0.0
  %1161 = vmatpush1.msra.mxu0 0.0
  %1162 = vmatprep.subr.mxu0 0.0
  %1163 = vmatpush1.msra.mxu0 0.0
  %1164 = vmatprep.subr.mxu0 0.0
  %1165 = vmatpush1.msra.mxu0 0.0
  %1166 = vmatprep.subr.mxu0 0.0
  %1167 = vmatpush1.msra.mxu0 0.0
  %1168 = vmatprep.subr.mxu0 0.0
  %1169 = vmatpush1.msra.mxu0 0.0
  %1170 = vmatprep.subr.mxu0 0.0
  %1171 = vmatpush1.msra.mxu0 0.0
  %1172 = vmatprep.subr.mxu0 0.0
  %1173 = vmatpush1.msra.mxu0 0.0
  %1174 = vmatprep.subr.mxu0 0.0
  %1175 = vmatpush1.msra.mxu0 0.0
  %1176 = vmatprep.subr.mxu0 0.0
  %1177 = vmatpush1.msra.mxu0 0.0
  %1178 = vmatprep.subr.mxu0 0.0
  %1179 = vmatpush1.msra.mxu0 0.0
  %1180 = vmatprep.subr.mxu0 0.0
  %1181 = vmatpush1.msra.mxu0 0.0
  %1182 = vmatprep.subr.mxu0 0.0
  %1183 = vmatpush1.msra.mxu0 0.0
  %1184 = vmatprep.subr.mxu0 0.0
  %1185 = vmatpush1.msra.mxu0 0.0
  %1186 = vmatprep.subr.mxu0 0.0
  %1187 = vmatpush1.msra.mxu0 0.0
  %1188 = vmatprep.subr.mxu0 0.0
  %1189 = vmatpush1.msra.mxu0 0.0
  %1190 = vmatprep.subr.mxu0 0.0
  %1191 = vmatpush1.msra.mxu0 0.0
  %1192 = vmatprep.subr.mxu0 0.0
  %1193 = vmatpush1.msra.mxu0 0.0
  %1194 = vmatprep.subr.mxu0 0.0
  %1195 = vmatpush1.msra.mxu0 0.0
  %1196 = vmatprep.subr.mxu0 0.0
  %1197 = vmatpush1.msra.mxu0 0.0
  %1198 = vmatprep.subr.mxu0 0.0
  %1199 = vmatpush1.msra.mxu0 0.0
  %1200 = vmatprep.mubr.f32.mxu0 0.0
  %1201 = vmatmul.mubr.f32.gmra.mrb[0].mxu0 %v1134
  %v1202 = vpop.f32.mrb[0].mxu0
  %v1203 = vadd.f32 %v1132, %v1202
  %v1204 = vpop.f32.mrb[0].mxu0
  %1205 = vdwg.mxu0
  %v1206 = vmul.f32 %v1203, 0.35355338
  %1208 = vrot.lane.b32.xlu0 %v1203, 96
  %v1209 = vpop.permute.xlu0 %1208
  %v1211 = vsel %vm142, %v1206, 0
  %v1213 = vsel %vm142, %v1209, 0
  %1215 = vmatprep.subr.mxu0 0.0
  %1216 = vmatpush1.xpose.msra.mxu0 %v1213
  %1217 = vmatprep.subr.mxu0 0.0
  %1218 = vmatpush1.xpose.msra.mxu0 0.0
  %1219 = vmatprep.subr.mxu0 0.0
  %1220 = vmatpush1.xpose.msra.mxu0 0.0
  %1221 = vmatprep.subr.mxu0 0.0
  %1222 = vmatpush1.xpose.msra.mxu0 0.0
  %1223 = vmatprep.subr.mxu0 0.0
  %1224 = vmatpush1.xpose.msra.mxu0 0.0
  %1225 = vmatprep.subr.mxu0 0.0
  %1226 = vmatpush1.xpose.msra.mxu0 0.0
  %1227 = vmatprep.subr.mxu0 0.0
  %1228 = vmatpush1.xpose.msra.mxu0 0.0
  %1229 = vmatprep.subr.mxu0 0.0
  %1230 = vmatpush1.xpose.msra.mxu0 0.0
  %1231 = vmatprep.subr.mxu0 0.0
  %1232 = vmatpush1.xpose.msra.mxu0 0.0
  %1233 = vmatprep.subr.mxu0 0.0
  %1234 = vmatpush1.xpose.msra.mxu0 0.0
  %1235 = vmatprep.subr.mxu0 0.0
  %1236 = vmatpush1.xpose.msra.mxu0 0.0
  %1237 = vmatprep.subr.mxu0 0.0
  %1238 = vmatpush1.xpose.msra.mxu0 0.0
  %1239 = vmatprep.subr.mxu0 0.0
  %1240 = vmatpush1.xpose.msra.mxu0 0.0
  %1241 = vmatprep.subr.mxu0 0.0
  %1242 = vmatpush1.xpose.msra.mxu0 0.0
  %1243 = vmatprep.subr.mxu0 0.0
  %1244 = vmatpush1.xpose.msra.mxu0 0.0
  %1245 = vmatprep.subr.mxu0 0.0
  %1246 = vmatpush1.xpose.msra.mxu0 0.0
  %1247 = vmatprep.subr.mxu0 0.0
  %1248 = vmatpush1.xpose.msra.mxu0 0.0
  %1249 = vmatprep.subr.mxu0 0.0
  %1250 = vmatpush1.xpose.msra.mxu0 0.0
  %1251 = vmatprep.subr.mxu0 0.0
  %1252 = vmatpush1.xpose.msra.mxu0 0.0
  %1253 = vmatprep.subr.mxu0 0.0
  %1254 = vmatpush1.xpose.msra.mxu0 0.0
  %1255 = vmatprep.subr.mxu0 0.0
  %1256 = vmatpush1.xpose.msra.mxu0 0.0
  %1257 = vmatprep.subr.mxu0 0.0
  %1258 = vmatpush1.xpose.msra.mxu0 0.0
  %1259 = vmatprep.subr.mxu0 0.0
  %1260 = vmatpush1.xpose.msra.mxu0 0.0
  %1261 = vmatprep.subr.mxu0 0.0
  %1262 = vmatpush1.xpose.msra.mxu0 0.0
  %1263 = vmatprep.subr.mxu0 0.0
  %1264 = vmatpush1.xpose.msra.mxu0 0.0
  %1265 = vmatprep.subr.mxu0 0.0
  %1266 = vmatpush1.xpose.msra.mxu0 0.0
  %1267 = vmatprep.subr.mxu0 0.0
  %1268 = vmatpush1.xpose.msra.mxu0 0.0
  %1269 = vmatprep.subr.mxu0 0.0
  %1270 = vmatpush1.xpose.msra.mxu0 0.0
  %1271 = vmatprep.subr.mxu0 0.0
  %1272 = vmatpush1.xpose.msra.mxu0 0.0
  %1273 = vmatprep.subr.mxu0 0.0
  %1274 = vmatpush1.xpose.msra.mxu0 0.0
  %1275 = vmatprep.subr.mxu0 0.0
  %1276 = vmatpush1.xpose.msra.mxu0 0.0
  %1277 = vmatprep.subr.mxu0 0.0
  %1278 = vmatpush1.xpose.msra.mxu0 0.0
  %1279 = vmatprep.mubr.f32.mxu0 0.0
  %1280 = vmatmul.mubr.f32.gmra.mrb[0].mxu0 %v1211
  %v1281 = vpop.f32.mrb[0].mxu0
  %v1282 = vadd.f32 0.0, %v1281
  %v1283 = vpop.f32.mrb[0].mxu0
  %1284 = vdwg.mxu0
  %v1285 = vsel %vm142, %v1282, -inf
  %1286 = vmax.xlane.f32.xlu0 %v1285
  %v1287 = vpop.xlane.xlu0 %1286
  %v1288 = vsub.f32 %v1282, %v1287
  %v1289 = vmul.f32 %v1288, 1.442695
  %v1290 = vpow.pop %v1289
  %v1291 = vsel %vm142, %v1290, 0.0
  %1292 = vadd.xlane.f32.xlu0 %v1291
  %v1293 = vpop.xlane.xlu0 %1292
  %v1294 = vrcp.pop %v1293
  %v1295 = vmul.f32 %v1290, %v1294
  %1296 = vrot.lane.b32.xlu0 %v1203, 64
  %v1297 = vpop.permute.xlu0 %1296
  %v1300 = vsel %vm142, %v1295, 0
  %1302 = vmatprep.subr.mxu0 0.0
  %1303 = vmatpush1.msra.mxu0 %v1297
  %1304 = vmatprep.subr.mxu0 0.0
  %1305 = vmatpush1.msra.mxu0 0.0
  %1306 = vmatprep.subr.mxu0 0.0
  %1307 = vmatpush1.msra.mxu0 0.0
  %1308 = vmatprep.subr.mxu0 0.0
  %1309 = vmatpush1.msra.mxu0 0.0
  %1310 = vmatprep.subr.mxu0 0.0
  %1311 = vmatpush1.msra.mxu0 0.0
  %1312 = vmatprep.subr.mxu0 0.0
  %1313 = vmatpush1.msra.mxu0 0.0
  %1314 = vmatprep.subr.mxu0 0.0
  %1315 = vmatpush1.msra.mxu0 0.0
  %1316 = vmatprep.subr.mxu0 0.0
  %1317 = vmatpush1.msra.mxu0 0.0
  %1318 = vmatprep.subr.mxu0 0.0
  %1319 = vmatpush1.msra.mxu0 0.0
  %1320 = vmatprep.subr.mxu0 0.0
  %1321 = vmatpush1.msra.mxu0 0.0
  %1322 = vmatprep.subr.mxu0 0.0
  %1323 = vmatpush1.msra.mxu0 0.0
  %1324 = vmatprep.subr.mxu0 0.0
  %1325 = vmatpush1.msra.mxu0 0.0
  %1326 = vmatprep.subr.mxu0 0.0
  %1327 = vmatpush1.msra.mxu0 0.0
  %1328 = vmatprep.subr.mxu0 0.0
  %1329 = vmatpush1.msra.mxu0 0.0
  %1330 = vmatprep.subr.mxu0 0.0
  %1331 = vmatpush1.msra.mxu0 0.0
  %1332 = vmatprep.subr.mxu0 0.0
  %1333 = vmatpush1.msra.mxu0 0.0
  %1334 = vmatprep.subr.mxu0 0.0
  %1335 = vmatpush1.msra.mxu0 0.0
  %1336 = vmatprep.subr.mxu0 0.0
  %1337 = vmatpush1.msra.mxu0 0.0
  %1338 = vmatprep.subr.mxu0 0.0
  %1339 = vmatpush1.msra.mxu0 0.0
  %1340 = vmatprep.subr.mxu0 0.0
  %1341 = vmatpush1.msra.mxu0 0.0
  %1342 = vmatprep.subr.mxu0 0.0
  %1343 = vmatpush1.msra.mxu0 0.0
  %1344 = vmatprep.subr.mxu0 0.0
  %1345 = vmatpush1.msra.mxu0 0.0
  %1346 = vmatprep.subr.mxu0 0.0
  %1347 = vmatpush1.msra.mxu0 0.0
  %1348 = vmatprep.subr.mxu0 0.0
  %1349 = vmatpush1.msra.mxu0 0.0
  %1350 = vmatprep.subr.mxu0 0.0
  %1351 = vmatpush1.msra.mxu0 0.0
  %1352 = vmatprep.subr.mxu0 0.0
  %1353 = vmatpush1.msra.mxu0 0.0
  %1354 = vmatprep.subr.mxu0 0.0
  %1355 = vmatpush1.msra.mxu0 0.0
  %1356 = vmatprep.subr.mxu0 0.0
  %1357 = vmatpush1.msra.mxu0 0.0
  %1358 = vmatprep.subr.mxu0 0.0
  %1359 = vmatpush1.msra.mxu0 0.0
  %1360 = vmatprep.subr.mxu0 0.0
  %1361 = vmatpush1.msra.mxu0 0.0
  %1362 = vmatprep.subr.mxu0 0.0
  %1363 = vmatpush1.msra.mxu0 0.0
  %1364 = vmatprep.subr.mxu0 0.0
  %1365 = vmatpush1.msra.mxu0 0.0
  %1366 = vmatprep.mubr.f32.mxu0 0.0
  %1367 = vmatmul.mubr.f32.gmra.mrb[0].mxu0 %v1300
  %v1368 = vpop.f32.mrb[0].mxu0
  %v1369 = vadd.f32 0.0, %v1368
  %v1370 = vpop.f32.mrb[0].mxu0
  %1371 = vdwg.mxu0
  %1372 = vst.msk [vmem:[#allocation2] sm:$0xff] %vm142, %v1369
  %1373 = vrot.lane.b32.xlu0 %v1206, 120
  %v1374 = vpop.permute.xlu0 %1373
  %1375 = vrot.lane.b32.xlu0 %v1203, 88
  %v1376 = vpop.permute.xlu0 %1375
  %v1377 = vsel %vm142, %v1374, 0
  %v1379 = vsel %vm142, %v1376, 0
  %1381 = vmatprep.subr.mxu0 0.0
  %1382 = vmatpush1.xpose.msra.mxu0 %v1379
  %1383 = vmatprep.subr.mxu0 0.0
  %1384 = vmatpush1.xpose.msra.mxu0 0.0
  %1385 = vmatprep.subr.mxu0 0.0
  %1386 = vmatpush1.xpose.msra.mxu0 0.0
  %1387 = vmatprep.subr.mxu0 0.0
  %1388 = vmatpush1.xpose.msra.mxu0 0.0
  %1389 = vmatprep.subr.mxu0 0.0
  %1390 = vmatpush1.xpose.msra.mxu0 0.0
  %1391 = vmatprep.subr.mxu0 0.0
  %1392 = vmatpush1.xpose.msra.mxu0 0.0
  %1393 = vmatprep.subr.mxu0 0.0
  %1394 = vmatpush1.xpose.msra.mxu0 0.0
  %1395 = vmatprep.subr.mxu0 0.0
  %1396 = vmatpush1.xpose.msra.mxu0 0.0
  %1397 = vmatprep.subr.mxu0 0.0
  %1398 = vmatpush1.xpose.msra.mxu0 0.0
  %1399 = vmatprep.subr.mxu0 0.0
  %1400 = vmatpush1.xpose.msra.mxu0 0.0
  %1401 = vmatprep.subr.mxu0 0.0
  %1402 = vmatpush1.xpose.msra.mxu0 0.0
  %1403 = vmatprep.subr.mxu0 0.0
  %1404 = vmatpush1.xpose.msra.mxu0 0.0
  %1405 = vmatprep.subr.mxu0 0.0
  %1406 = vmatpush1.xpose.msra.mxu0 0.0
  %1407 = vmatprep.subr.mxu0 0.0
  %1408 = vmatpush1.xpose.msra.mxu0 0.0
  %1409 = vmatprep.subr.mxu0 0.0
  %1410 = vmatpush1.xpose.msra.mxu0 0.0
  %1411 = vmatprep.subr.mxu0 0.0
  %1412 = vmatpush1.xpose.msra.mxu0 0.0
  %1413 = vmatprep.subr.mxu0 0.0
  %1414 = vmatpush1.xpose.msra.mxu0 0.0
  %1415 = vmatprep.subr.mxu0 0.0
  %1416 = vmatpush1.xpose.msra.mxu0 0.0
  %1417 = vmatprep.subr.mxu0 0.0
  %1418 = vmatpush1.xpose.msra.mxu0 0.0
  %1419 = vmatprep.subr.mxu0 0.0
  %1420 = vmatpush1.xpose.msra.mxu0 0.0
  %1421 = vmatprep.subr.mxu0 0.0
  %1422 = vmatpush1.xpose.msra.mxu0 0.0
  %1423 = vmatprep.subr.mxu0 0.0
  %1424 = vmatpush1.xpose.msra.mxu0 0.0
  %1425 = vmatprep.subr.mxu0 0.0
  %1426 = vmatpush1.xpose.msra.mxu0 0.0
  %1427 = vmatprep.subr.mxu0 0.0
  %1428 = vmatpush1.xpose.msra.mxu0 0.0
  %1429 = vmatprep.subr.mxu0 0.0
  %1430 = vmatpush1.xpose.msra.mxu0 0.0
  %1431 = vmatprep.subr.mxu0 0.0
  %1432 = vmatpush1.xpose.msra.mxu0 0.0
  %1433 = vmatprep.subr.mxu0 0.0
  %1434 = vmatpush1.xpose.msra.mxu0 0.0
  %1435 = vmatprep.subr.mxu0 0.0
  %1436 = vmatpush1.xpose.msra.mxu0 0.0
  %1437 = vmatprep.subr.mxu0 0.0
  %1438 = vmatpush1.xpose.msra.mxu0 0.0
  %1439 = vmatprep.subr.mxu0 0.0
  %1440 = vmatpush1.xpose.msra.mxu0 0.0
  %1441 = vmatprep.subr.mxu0 0.0
  %1442 = vmatpush1.xpose.msra.mxu0 0.0
  %1443 = vmatprep.subr.mxu0 0.0
  %1444 = vmatpush1.xpose.msra.mxu0 0.0
  %1445 = vmatprep.mubr.f32.mxu0 0.0
  %1446 = vmatmul.mubr.f32.gmra.mrb[0].mxu0 %v1377
  %v1447 = vpop.f32.mrb[0].mxu0
  %v1448 = vadd.f32 0.0, %v1447
  %v1449 = vpop.f32.mrb[0].mxu0
  %1450 = vdwg.mxu0
  %v1451 = vsel %vm142, %v1448, -inf
  %1452 = vmax.xlane.f32.xlu0 %v1451
  %v1453 = vpop.xlane.xlu0 %1452
  %v1454 = vsub.f32 %v1448, %v1453
  %v1455 = vmul.f32 %v1454, 1.442695
  %v1456 = vpow.pop %v1455
  %v1457 = vsel %vm142, %v1456, 0.0
  %1458 = vadd.xlane.f32.xlu0 %v1457
  %v1459 = vpop.xlane.xlu0 %1458
  %v1460 = vrcp.pop %v1459
  %v1461 = vmul.f32 %v1456, %v1460
  %1462 = vrot.lane.b32.xlu0 %v1203, 56
  %v1463 = vpop.permute.xlu0 %1462
  %v1466 = vsel %vm142, %v1461, 0
  %1468 = vmatprep.subr.mxu0 0.0
  %1469 = vmatpush1.msra.mxu0 %v1463
  %1470 = vmatprep.subr.mxu0 0.0
  %1471 = vmatpush1.msra.mxu0 0.0
  %1472 = vmatprep.subr.mxu0 0.0
  %1473 = vmatpush1.msra.mxu0 0.0
  %1474 = vmatprep.subr.mxu0 0.0
  %1475 = vmatpush1.msra.mxu0 0.0
  %1476 = vmatprep.subr.mxu0 0.0
  %1477 = vmatpush1.msra.mxu0 0.0
  %1478 = vmatprep.subr.mxu0 0.0
  %1479 = vmatpush1.msra.mxu0 0.0
  %1480 = vmatprep.subr.mxu0 0.0
  %1481 = vmatpush1.msra.mxu0 0.0
  %1482 = vmatprep.subr.mxu0 0.0
  %1483 = vmatpush1.msra.mxu0 0.0
  %1484 = vmatprep.subr.mxu0 0.0
  %1485 = vmatpush1.msra.mxu0 0.0
  %1486 = vmatprep.subr.mxu0 0.0
  %1487 = vmatpush1.msra.mxu0 0.0
  %1488 = vmatprep.subr.mxu0 0.0
  %1489 = vmatpush1.msra.mxu0 0.0
  %1490 = vmatprep.subr.mxu0 0.0
  %1491 = vmatpush1.msra.mxu0 0.0
  %1492 = vmatprep.subr.mxu0 0.0
  %1493 = vmatpush1.msra.mxu0 0.0
  %1494 = vmatprep.subr.mxu0 0.0
  %1495 = vmatpush1.msra.mxu0 0.0
  %1496 = vmatprep.subr.mxu0 0.0
  %1497 = vmatpush1.msra.mxu0 0.0
  %1498 = vmatprep.subr.mxu0 0.0
  %1499 = vmatpush1.msra.mxu0 0.0
  %1500 = vmatprep.subr.mxu0 0.0
  %1501 = vmatpush1.msra.mxu0 0.0
  %1502 = vmatprep.subr.mxu0 0.0
  %1503 = vmatpush1.msra.mxu0 0.0
  %1504 = vmatprep.subr.mxu0 0.0
  %1505 = vmatpush1.msra.mxu0 0.0
  %1506 = vmatprep.subr.mxu0 0.0
  %1507 = vmatpush1.msra.mxu0 0.0
  %1508 = vmatprep.subr.mxu0 0.0
  %1509 = vmatpush1.msra.mxu0 0.0
  %1510 = vmatprep.subr.mxu0 0.0
  %1511 = vmatpush1.msra.mxu0 0.0
  %1512 = vmatprep.subr.mxu0 0.0
  %1513 = vmatpush1.msra.mxu0 0.0
  %1514 = vmatprep.subr.mxu0 0.0
  %1515 = vmatpush1.msra.mxu0 0.0
  %1516 = vmatprep.subr.mxu0 0.0
  %1517 = vmatpush1.msra.mxu0 0.0
  %1518 = vmatprep.subr.mxu0 0.0
  %1519 = vmatpush1.msra.mxu0 0.0
  %1520 = vmatprep.subr.mxu0 0.0
  %1521 = vmatpush1.msra.mxu0 0.0
  %1522 = vmatprep.subr.mxu0 0.0
  %1523 = vmatpush1.msra.mxu0 0.0
  %1524 = vmatprep.subr.mxu0 0.0
  %1525 = vmatpush1.msra.mxu0 0.0
  %1526 = vmatprep.subr.mxu0 0.0
  %1527 = vmatpush1.msra.mxu0 0.0
  %1528 = vmatprep.subr.mxu0 0.0
  %1529 = vmatpush1.msra.mxu0 0.0
  %1530 = vmatprep.subr.mxu0 0.0
  %1531 = vmatpush1.msra.mxu0 0.0
  %1532 = vmatprep.mubr.f32.mxu0 0.0
  %1533 = vmatmul.mubr.f32.gmra.mrb[0].mxu0 %v1466
  %v1534 = vpop.f32.mrb[0].mxu0
  %v1535 = vadd.f32 0.0, %v1534
  %v1536 = vpop.f32.mrb[0].mxu0
  %1537 = vdwg.mxu0
  %1539 = vrot.lane.b32.xlu0 %v1535, 8
  %v1540 = vpop.permute.xlu0 %1539
  %1542 = vst.msk [vmem:[#allocation2] sm:$0xff] %vm475, %v1540
  %1543 = vrot.lane.b32.xlu0 %v1206, 112
  %v1544 = vpop.permute.xlu0 %1543
  %1545 = vrot.lane.b32.xlu0 %v1203, 80
  %v1546 = vpop.permute.xlu0 %1545
  %v1547 = vsel %vm142, %v1544, 0
  %v1549 = vsel %vm142, %v1546, 0
  %1551 = vmatprep.subr.mxu0 0.0
  %1552 = vmatpush1.xpose.msra.mxu0 %v1549
  %1553 = vmatprep.subr.mxu0 0.0
  %1554 = vmatpush1.xpose.msra.mxu0 0.0
  %1555 = vmatprep.subr.mxu0 0.0
  %1556 = vmatpush1.xpose.msra.mxu0 0.0
  %1557 = vmatprep.subr.mxu0 0.0
  %1558 = vmatpush1.xpose.msra.mxu0 0.0
  %1559 = vmatprep.subr.mxu0 0.0
  %1560 = vmatpush1.xpose.msra.mxu0 0.0
  %1561 = vmatprep.subr.mxu0 0.0
  %1562 = vmatpush1.xpose.msra.mxu0 0.0
  %1563 = vmatprep.subr.mxu0 0.0
  %1564 = vmatpush1.xpose.msra.mxu0 0.0
  %1565 = vmatprep.subr.mxu0 0.0
  %1566 = vmatpush1.xpose.msra.mxu0 0.0
  %1567 = vmatprep.subr.mxu0 0.0
  %1568 = vmatpush1.xpose.msra.mxu0 0.0
  %1569 = vmatprep.subr.mxu0 0.0
  %1570 = vmatpush1.xpose.msra.mxu0 0.0
  %1571 = vmatprep.subr.mxu0 0.0
  %1572 = vmatpush1.xpose.msra.mxu0 0.0
  %1573 = vmatprep.subr.mxu0 0.0
  %1574 = vmatpush1.xpose.msra.mxu0 0.0
  %1575 = vmatprep.subr.mxu0 0.0
  %1576 = vmatpush1.xpose.msra.mxu0 0.0
  %1577 = vmatprep.subr.mxu0 0.0
  %1578 = vmatpush1.xpose.msra.mxu0 0.0
  %1579 = vmatprep.subr.mxu0 0.0
  %1580 = vmatpush1.xpose.msra.mxu0 0.0
  %1581 = vmatprep.subr.mxu0 0.0
  %1582 = vmatpush1.xpose.msra.mxu0 0.0
  %1583 = vmatprep.subr.mxu0 0.0
  %1584 = vmatpush1.xpose.msra.mxu0 0.0
  %1585 = vmatprep.subr.mxu0 0.0
  %1586 = vmatpush1.xpose.msra.mxu0 0.0
  %1587 = vmatprep.subr.mxu0 0.0
  %1588 = vmatpush1.xpose.msra.mxu0 0.0
  %1589 = vmatprep.subr.mxu0 0.0
  %1590 = vmatpush1.xpose.msra.mxu0 0.0
  %1591 = vmatprep.subr.mxu0 0.0
  %1592 = vmatpush1.xpose.msra.mxu0 0.0
  %1593 = vmatprep.subr.mxu0 0.0
  %1594 = vmatpush1.xpose.msra.mxu0 0.0
  %1595 = vmatprep.subr.mxu0 0.0
  %1596 = vmatpush1.xpose.msra.mxu0 0.0
  %1597 = vmatprep.subr.mxu0 0.0
  %1598 = vmatpush1.xpose.msra.mxu0 0.0
  %1599 = vmatprep.subr.mxu0 0.0
  %1600 = vmatpush1.xpose.msra.mxu0 0.0
  %1601 = vmatprep.subr.mxu0 0.0
  %1602 = vmatpush1.xpose.msra.mxu0 0.0
  %1603 = vmatprep.subr.mxu0 0.0
  %1604 = vmatpush1.xpose.msra.mxu0 0.0
  %1605 = vmatprep.subr.mxu0 0.0
  %1606 = vmatpush1.xpose.msra.mxu0 0.0
  %1607 = vmatprep.subr.mxu0 0.0
  %1608 = vmatpush1.xpose.msra.mxu0 0.0
  %1609 = vmatprep.subr.mxu0 0.0
  %1610 = vmatpush1.xpose.msra.mxu0 0.0
  %1611 = vmatprep.subr.mxu0 0.0
  %1612 = vmatpush1.xpose.msra.mxu0 0.0
  %1613 = vmatprep.subr.mxu0 0.0
  %1614 = vmatpush1.xpose.msra.mxu0 0.0
  %1615 = vmatprep.mubr.f32.mxu0 0.0
  %1616 = vmatmul.mubr.f32.gmra.mrb[0].mxu0 %v1547
  %v1617 = vpop.f32.mrb[0].mxu0
  %v1618 = vadd.f32 0.0, %v1617
  %v1619 = vpop.f32.mrb[0].mxu0
  %1620 = vdwg.mxu0
  %v1621 = vsel %vm142, %v1618, -inf
  %1622 = vmax.xlane.f32.xlu0 %v1621
  %v1623 = vpop.xlane.xlu0 %1622
  %v1624 = vsub.f32 %v1618, %v1623
  %v1625 = vmul.f32 %v1624, 1.442695
  %v1626 = vpow.pop %v1625
  %v1627 = vsel %vm142, %v1626, 0.0
  %1628 = vadd.xlane.f32.xlu0 %v1627
  %v1629 = vpop.xlane.xlu0 %1628
  %v1630 = vrcp.pop %v1629
  %v1631 = vmul.f32 %v1626, %v1630
  %1632 = vrot.lane.b32.xlu0 %v1203, 48
  %v1633 = vpop.permute.xlu0 %1632
  %v1636 = vsel %vm142, %v1631, 0
  %1638 = vmatprep.subr.mxu0 0.0
  %1639 = vmatpush1.msra.mxu0 %v1633
  %1640 = vmatprep.subr.mxu0 0.0
  %1641 = vmatpush1.msra.mxu0 0.0
  %1642 = vmatprep.subr.mxu0 0.0
  %1643 = vmatpush1.msra.mxu0 0.0
  %1644 = vmatprep.subr.mxu0 0.0
  %1645 = vmatpush1.msra.mxu0 0.0
  %1646 = vmatprep.subr.mxu0 0.0
  %1647 = vmatpush1.msra.mxu0 0.0
  %1648 = vmatprep.subr.mxu0 0.0
  %1649 = vmatpush1.msra.mxu0 0.0
  %1650 = vmatprep.subr.mxu0 0.0
  %1651 = vmatpush1.msra.mxu0 0.0
  %1652 = vmatprep.subr.mxu0 0.0
  %1653 = vmatpush1.msra.mxu0 0.0
  %1654 = vmatprep.subr.mxu0 0.0
  %1655 = vmatpush1.msra.mxu0 0.0
  %1656 = vmatprep.subr.mxu0 0.0
  %1657 = vmatpush1.msra.mxu0 0.0
  %1658 = vmatprep.subr.mxu0 0.0
  %1659 = vmatpush1.msra.mxu0 0.0
  %1660 = vmatprep.subr.mxu0 0.0
  %1661 = vmatpush1.msra.mxu0 0.0
  %1662 = vmatprep.subr.mxu0 0.0
  %1663 = vmatpush1.msra.mxu0 0.0
  %1664 = vmatprep.subr.mxu0 0.0
  %1665 = vmatpush1.msra.mxu0 0.0
  %1666 = vmatprep.subr.mxu0 0.0
  %1667 = vmatpush1.msra.mxu0 0.0
  %1668 = vmatprep.subr.mxu0 0.0
  %1669 = vmatpush1.msra.mxu0 0.0
  %1670 = vmatprep.subr.mxu0 0.0
  %1671 = vmatpush1.msra.mxu0 0.0
  %1672 = vmatprep.subr.mxu0 0.0
  %1673 = vmatpush1.msra.mxu0 0.0
  %1674 = vmatprep.subr.mxu0 0.0
  %1675 = vmatpush1.msra.mxu0 0.0
  %1676 = vmatprep.subr.mxu0 0.0
  %1677 = vmatpush1.msra.mxu0 0.0
  %1678 = vmatprep.subr.mxu0 0.0
  %1679 = vmatpush1.msra.mxu0 0.0
  %1680 = vmatprep.subr.mxu0 0.0
  %1681 = vmatpush1.msra.mxu0 0.0
  %1682 = vmatprep.subr.mxu0 0.0
  %1683 = vmatpush1.msra.mxu0 0.0
  %1684 = vmatprep.subr.mxu0 0.0
  %1685 = vmatpush1.msra.mxu0 0.0
  %1686 = vmatprep.subr.mxu0 0.0
  %1687 = vmatpush1.msra.mxu0 0.0
  %1688 = vmatprep.subr.mxu0 0.0
  %1689 = vmatpush1.msra.mxu0 0.0
  %1690 = vmatprep.subr.mxu0 0.0
  %1691 = vmatpush1.msra.mxu0 0.0
  %1692 = vmatprep.subr.mxu0 0.0
  %1693 = vmatpush1.msra.mxu0 0.0
  %1694 = vmatprep.subr.mxu0 0.0
  %1695 = vmatpush1.msra.mxu0 0.0
  %1696 = vmatprep.subr.mxu0 0.0
  %1697 = vmatpush1.msra.mxu0 0.0
  %1698 = vmatprep.subr.mxu0 0.0
  %1699 = vmatpush1.msra.mxu0 0.0
  %1700 = vmatprep.subr.mxu0 0.0
  %1701 = vmatpush1.msra.mxu0 0.0
  %1702 = vmatprep.mubr.f32.mxu0 0.0
  %1703 = vmatmul.mubr.f32.gmra.mrb[0].mxu0 %v1636
  %v1704 = vpop.f32.mrb[0].mxu0
  %v1705 = vadd.f32 0.0, %v1704
  %v1706 = vpop.f32.mrb[0].mxu0
  %1707 = vdwg.mxu0
  %1709 = vrot.lane.b32.xlu0 %v1705, 16
  %v1710 = vpop.permute.xlu0 %1709
  %1712 = vst.msk [vmem:[#allocation2] sm:$0xff] %vm646, %v1710
  %1713 = vrot.lane.b32.xlu0 %v1206, 104
  %v1714 = vpop.permute.xlu0 %1713
  %1715 = vrot.lane.b32.xlu0 %v1203, 72
  %v1716 = vpop.permute.xlu0 %1715
  %v1717 = vsel %vm142, %v1714, 0
  %v1719 = vsel %vm142, %v1716, 0
  %1721 = vmatprep.subr.mxu0 0.0
  %1722 = vmatpush1.xpose.msra.mxu0 %v1719
  %1723 = vmatprep.subr.mxu0 0.0
  %1724 = vmatpush1.xpose.msra.mxu0 0.0
  %1725 = vmatprep.subr.mxu0 0.0
  %1726 = vmatpush1.xpose.msra.mxu0 0.0
  %1727 = vmatprep.subr.mxu0 0.0
  %1728 = vmatpush1.xpose.msra.mxu0 0.0
  %1729 = vmatprep.subr.mxu0 0.0
  %1730 = vmatpush1.xpose.msra.mxu0 0.0
  %1731 = vmatprep.subr.mxu0 0.0
  %1732 = vmatpush1.xpose.msra.mxu0 0.0
  %1733 = vmatprep.subr.mxu0 0.0
  %1734 = vmatpush1.xpose.msra.mxu0 0.0
  %1735 = vmatprep.subr.mxu0 0.0
  %1736 = vmatpush1.xpose.msra.mxu0 0.0
  %1737 = vmatprep.subr.mxu0 0.0
  %1738 = vmatpush1.xpose.msra.mxu0 0.0
  %1739 = vmatprep.subr.mxu0 0.0
  %1740 = vmatpush1.xpose.msra.mxu0 0.0
  %1741 = vmatprep.subr.mxu0 0.0
  %1742 = vmatpush1.xpose.msra.mxu0 0.0
  %1743 = vmatprep.subr.mxu0 0.0
  %1744 = vmatpush1.xpose.msra.mxu0 0.0
  %1745 = vmatprep.subr.mxu0 0.0
  %1746 = vmatpush1.xpose.msra.mxu0 0.0
  %1747 = vmatprep.subr.mxu0 0.0
  %1748 = vmatpush1.xpose.msra.mxu0 0.0
  %1749 = vmatprep.subr.mxu0 0.0
  %1750 = vmatpush1.xpose.msra.mxu0 0.0
  %1751 = vmatprep.subr.mxu0 0.0
  %1752 = vmatpush1.xpose.msra.mxu0 0.0
  %1753 = vmatprep.subr.mxu0 0.0
  %1754 = vmatpush1.xpose.msra.mxu0 0.0
  %1755 = vmatprep.subr.mxu0 0.0
  %1756 = vmatpush1.xpose.msra.mxu0 0.0
  %1757 = vmatprep.subr.mxu0 0.0
  %1758 = vmatpush1.xpose.msra.mxu0 0.0
  %1759 = vmatprep.subr.mxu0 0.0
  %1760 = vmatpush1.xpose.msra.mxu0 0.0
  %1761 = vmatprep.subr.mxu0 0.0
  %1762 = vmatpush1.xpose.msra.mxu0 0.0
  %1763 = vmatprep.subr.mxu0 0.0
  %1764 = vmatpush1.xpose.msra.mxu0 0.0
  %1765 = vmatprep.subr.mxu0 0.0
  %1766 = vmatpush1.xpose.msra.mxu0 0.0
  %1767 = vmatprep.subr.mxu0 0.0
  %1768 = vmatpush1.xpose.msra.mxu0 0.0
  %1769 = vmatprep.subr.mxu0 0.0
  %1770 = vmatpush1.xpose.msra.mxu0 0.0
  %1771 = vmatprep.subr.mxu0 0.0
  %1772 = vmatpush1.xpose.msra.mxu0 0.0
  %1773 = vmatprep.subr.mxu0 0.0
  %1774 = vmatpush1.xpose.msra.mxu0 0.0
  %1775 = vmatprep.subr.mxu0 0.0
  %1776 = vmatpush1.xpose.msra.mxu0 0.0
  %1777 = vmatprep.subr.mxu0 0.0
  %1778 = vmatpush1.xpose.msra.mxu0 0.0
  %1779 = vmatprep.subr.mxu0 0.0
  %1780 = vmatpush1.xpose.msra.mxu0 0.0
  %1781 = vmatprep.subr.mxu0 0.0
  %1782 = vmatpush1.xpose.msra.mxu0 0.0
  %1783 = vmatprep.subr.mxu0 0.0
  %1784 = vmatpush1.xpose.msra.mxu0 0.0
  %1785 = vmatprep.mubr.f32.mxu0 0.0
  %1786 = vmatmul.mubr.f32.gmra.mrb[0].mxu0 %v1717
  %v1787 = vpop.f32.mrb[0].mxu0
  %v1788 = vadd.f32 0.0, %v1787
  %v1789 = vpop.f32.mrb[0].mxu0
  %1790 = vdwg.mxu0
  %v1791 = vsel %vm142, %v1788, -inf
  %1792 = vmax.xlane.f32.xlu0 %v1791
  %v1793 = vpop.xlane.xlu0 %1792
  %v1794 = vsub.f32 %v1788, %v1793
  %v1795 = vmul.f32 %v1794, 1.442695
  %v1796 = vpow.pop %v1795
  %v1797 = vsel %vm142, %v1796, 0.0
  %1798 = vadd.xlane.f32.xlu0 %v1797
  %v1799 = vpop.xlane.xlu0 %1798
  %v1800 = vrcp.pop %v1799
  %v1801 = vmul.f32 %v1796, %v1800
  %1802 = vrot.lane.b32.xlu0 %v1203, 40
  %v1803 = vpop.permute.xlu0 %1802
  %v1806 = vsel %vm142, %v1801, 0
  %1808 = vmatprep.subr.mxu0 0.0
  %1809 = vmatpush1.msra.mxu0 %v1803
  %1810 = vmatprep.subr.mxu0 0.0
  %1811 = vmatpush1.msra.mxu0 0.0
  %1812 = vmatprep.subr.mxu0 0.0
  %1813 = vmatpush1.msra.mxu0 0.0
  %1814 = vmatprep.subr.mxu0 0.0
  %1815 = vmatpush1.msra.mxu0 0.0
  %1816 = vmatprep.subr.mxu0 0.0
  %1817 = vmatpush1.msra.mxu0 0.0
  %1818 = vmatprep.subr.mxu0 0.0
  %1819 = vmatpush1.msra.mxu0 0.0
  %1820 = vmatprep.subr.mxu0 0.0
  %1821 = vmatpush1.msra.mxu0 0.0
  %1822 = vmatprep.subr.mxu0 0.0
  %1823 = vmatpush1.msra.mxu0 0.0
  %1824 = vmatprep.subr.mxu0 0.0
  %1825 = vmatpush1.msra.mxu0 0.0
  %1826 = vmatprep.subr.mxu0 0.0
  %1827 = vmatpush1.msra.mxu0 0.0
  %1828 = vmatprep.subr.mxu0 0.0
  %1829 = vmatpush1.msra.mxu0 0.0
  %1830 = vmatprep.subr.mxu0 0.0
  %1831 = vmatpush1.msra.mxu0 0.0
  %1832 = vmatprep.subr.mxu0 0.0
  %1833 = vmatpush1.msra.mxu0 0.0
  %1834 = vmatprep.subr.mxu0 0.0
  %1835 = vmatpush1.msra.mxu0 0.0
  %1836 = vmatprep.subr.mxu0 0.0
  %1837 = vmatpush1.msra.mxu0 0.0
  %1838 = vmatprep.subr.mxu0 0.0
  %1839 = vmatpush1.msra.mxu0 0.0
  %1840 = vmatprep.subr.mxu0 0.0
  %1841 = vmatpush1.msra.mxu0 0.0
  %1842 = vmatprep.subr.mxu0 0.0
  %1843 = vmatpush1.msra.mxu0 0.0
  %1844 = vmatprep.subr.mxu0 0.0
  %1845 = vmatpush1.msra.mxu0 0.0
  %1846 = vmatprep.subr.mxu0 0.0
  %1847 = vmatpush1.msra.mxu0 0.0
  %1848 = vmatprep.subr.mxu0 0.0
  %1849 = vmatpush1.msra.mxu0 0.0
  %1850 = vmatprep.subr.mxu0 0.0
  %1851 = vmatpush1.msra.mxu0 0.0
  %1852 = vmatprep.subr.mxu0 0.0
  %1853 = vmatpush1.msra.mxu0 0.0
  %1854 = vmatprep.subr.mxu0 0.0
  %1855 = vmatpush1.msra.mxu0 0.0
  %1856 = vmatprep.subr.mxu0 0.0
  %1857 = vmatpush1.msra.mxu0 0.0
  %1858 = vmatprep.subr.mxu0 0.0
  %1859 = vmatpush1.msra.mxu0 0.0
  %1860 = vmatprep.subr.mxu0 0.0
  %1861 = vmatpush1.msra.mxu0 0.0
  %1862 = vmatprep.subr.mxu0 0.0
  %1863 = vmatpush1.msra.mxu0 0.0
  %1864 = vmatprep.subr.mxu0 0.0
  %1865 = vmatpush1.msra.mxu0 0.0
  %1866 = vmatprep.subr.mxu0 0.0
  %1867 = vmatpush1.msra.mxu0 0.0
  %1868 = vmatprep.subr.mxu0 0.0
  %1869 = vmatpush1.msra.mxu0 0.0
  %1870 = vmatprep.subr.mxu0 0.0
  %1871 = vmatpush1.msra.mxu0 0.0
  %1872 = vmatprep.mubr.f32.mxu0 0.0
  %1873 = vmatmul.mubr.f32.gmra.mrb[0].mxu0 %v1806
  %v1874 = vpop.f32.mrb[0].mxu0
  %v1875 = vadd.f32 0.0, %v1874
  %v1876 = vpop.f32.mrb[0].mxu0
  %1877 = vdwg.mxu0
  %1879 = vrot.lane.b32.xlu0 %v1875, 24
  %v1880 = vpop.permute.xlu0 %1879
  %1882 = vst.msk [vmem:[#allocation2] sm:$0xff] %vm817, %v1880
  %v1883 = vld [vmem:[#allocation2] sm:$0xff]
  %s1884 = scalar_lea.vmem %s2, 32
  %v1885 = vld [vmem:[%s1884] sm:$0xff]
  %v1886 = vld [vmem:[%s1884 + $0x8] sm:$0xff]
  %v1887 = vld [vmem:[%s1884 + $0x10] sm:$0xff]
  %v1888 = vld [vmem:[%s1884 + $0x18] sm:$0xff]
  %v1889 = vlaneseq
  %v1890 = vshrl.u32 %v1889, 7
  %v1891 = vsub.s32 1, %v1890
  %v1892 = vrot.slane %v1123, %v1891
  %v1894 = vsel %vm64, %v1883, 0
  %1896 = vmatprep.subr.mxu0 0.0
  %1897 = vmatpush1.msra.mxu0 %v1885
  %1898 = vmatprep.subr.mxu0 0.0
  %1899 = vmatpush1.msra.mxu0 %v1886
  %1900 = vmatprep.subr.mxu0 0.0
  %1901 = vmatpush1.msra.mxu0 %v1887
  %1902 = vmatprep.subr.mxu0 0.0
  %1903 = vmatpush1.msra.mxu0 %v1888
  %1904 = vmatprep.subr.mxu0 0.0
  %1905 = vmatpush1.msra.mxu0 0.0
  %1906 = vmatprep.subr.mxu0 0.0
  %1907 = vmatpush1.msra.mxu0 0.0
  %1908 = vmatprep.subr.mxu0 0.0
  %1909 = vmatpush1.msra.mxu0 0.0
  %1910 = vmatprep.subr.mxu0 0.0
  %1911 = vmatpush1.msra.mxu0 0.0
  %1912 = vmatprep.subr.mxu0 0.0
  %1913 = vmatpush1.msra.mxu0 0.0
  %1914 = vmatprep.subr.mxu0 0.0
  %1915 = vmatpush1.msra.mxu0 0.0
  %1916 = vmatprep.subr.mxu0 0.0
  %1917 = vmatpush1.msra.mxu0 0.0
  %1918 = vmatprep.subr.mxu0 0.0
  %1919 = vmatpush1.msra.mxu0 0.0
  %1920 = vmatprep.subr.mxu0 0.0
  %1921 = vmatpush1.msra.mxu0 0.0
  %1922 = vmatprep.subr.mxu0 0.0
  %1923 = vmatpush1.msra.mxu0 0.0
  %1924 = vmatprep.subr.mxu0 0.0
  %1925 = vmatpush1.msra.mxu0 0.0
  %1926 = vmatprep.subr.mxu0 0.0
  %1927 = vmatpush1.msra.mxu0 0.0
  %1928 = vmatprep.subr.mxu0 0.0
  %1929 = vmatpush1.msra.mxu0 0.0
  %1930 = vmatprep.subr.mxu0 0.0
  %1931 = vmatpush1.msra.mxu0 0.0
  %1932 = vmatprep.subr.mxu0 0.0
  %1933 = vmatpush1.msra.mxu0 0.0
  %1934 = vmatprep.subr.mxu0 0.0
  %1935 = vmatpush1.msra.mxu0 0.0
  %1936 = vmatprep.subr.mxu0 0.0
  %1937 = vmatpush1.msra.mxu0 0.0
  %1938 = vmatprep.subr.mxu0 0.0
  %1939 = vmatpush1.msra.mxu0 0.0
  %1940 = vmatprep.subr.mxu0 0.0
  %1941 = vmatpush1.msra.mxu0 0.0
  %1942 = vmatprep.subr.mxu0 0.0
  %1943 = vmatpush1.msra.mxu0 0.0
  %1944 = vmatprep.subr.mxu0 0.0
  %1945 = vmatpush1.msra.mxu0 0.0
  %1946 = vmatprep.subr.mxu0 0.0
  %1947 = vmatpush1.msra.mxu0 0.0
  %1948 = vmatprep.subr.mxu0 0.0
  %1949 = vmatpush1.msra.mxu0 0.0
  %1950 = vmatprep.subr.mxu0 0.0
  %1951 = vmatpush1.msra.mxu0 0.0
  %1952 = vmatprep.subr.mxu0 0.0
  %1953 = vmatpush1.msra.mxu0 0.0
  %1954 = vmatprep.subr.mxu0 0.0
  %1955 = vmatpush1.msra.mxu0 0.0
  %1956 = vmatprep.subr.mxu0 0.0
  %1957 = vmatpush1.msra.mxu0 0.0
  %1958 = vmatprep.subr.mxu0 0.0
  %1959 = vmatpush1.msra.mxu0 0.0
  %1960 = vmatprep.mubr.f32.mxu0 0.0
  %1961 = vmatmul.mubr.f32.gmra.mrb[0].mxu0 %v1894
  %v1962 = vpop.f32.mrb[0].mxu0
  %v1963 = vadd.f32 %v1892, %v1962
  %v1964 = vpop.f32.mrb[0].mxu0
  %1965 = vdwg.mxu0
  %v1966 = vadd.f32 %v1963, %v1121
  %v1967 = vsel %vm64, %v1966, 0.0
  %1968 = vadd.xlane.f32.xlu0 %v1967
  %v1969 = vpop.xlane.xlu0 %1968
  %v1970 = vmul.f32 %v1969, %v905
  %v1971 = vsub.f32 %v1966, %v1970
  %v1972 = vmul.f32 %v1971, %v1971
  %v1973 = vsel %vm64, %v1972, 0.0
  %1974 = vadd.xlane.f32.xlu0 %v1973
  %v1975 = vpop.xlane.xlu0 %1974
  %v1976 = vmul.f32 %v1975, %v905
  %v1977 = vadd.f32 %v1976, 1e-05
  %v1978 = vrsqrt.pop %v1977
  %v1979 = vmul.f32 %v1971, %v1978
  %v1980 = vlaneseq
  %v1981 = vshrl.u32 %v1980, 7
  %v1982 = vsub.s32 2, %v1981
  %v1983 = vrot.slane %v1123, %v1982
  %v1984 = vmul.f32 %v1979, %v1983
  %v1985 = vlaneseq
  %v1986 = vshrl.u32 %v1985, 7
  %v1987 = vsub.s32 3, %v1986
  %v1988 = vrot.slane %v1123, %v1987
  %v1989 = vadd.f32 %v1984, %v1988
  %s1990 = scalar_lea.vmem %s3, 32
  %v1991 = vld [vmem:[%s1990] sm:$0xff]
  %v1992 = vld [vmem:[%s1990 + $0x8] sm:$0xff]
  %v1993 = vld [vmem:[%s1990 + $0x10] sm:$0xff]
  %v1994 = vld [vmem:[%s1990 + $0x18] sm:$0xff]
  %v1995 = vlaneseq
  %v1996 = vshrl.u32 %v1995, 7
  %v1997 = vsub.s32 4, %v1996
  %v1998 = vrot.slane %v1123, %v1997
  %v2000 = vsel %vm64, %v1989, 0
  %2002 = vmatprep.subr.mxu0 0.0
  %2003 = vmatpush1.msra.mxu0 %v1991
  %2004 = vmatprep.subr.mxu0 0.0
  %2005 = vmatpush1.msra.mxu0 %v1992
  %2006 = vmatprep.subr.mxu0 0.0
  %2007 = vmatpush1.msra.mxu0 %v1993
  %2008 = vmatprep.subr.mxu0 0.0
  %2009 = vmatpush1.msra.mxu0 %v1994
  %2010 = vmatprep.subr.mxu0 0.0
  %2011 = vmatpush1.msra.mxu0 0.0
  %2012 = vmatprep.subr.mxu0 0.0
  %2013 = vmatpush1.msra.mxu0 0.0
  %2014 = vmatprep.subr.mxu0 0.0
  %2015 = vmatpush1.msra.mxu0 0.0
  %2016 = vmatprep.subr.mxu0 0.0
  %2017 = vmatpush1.msra.mxu0 0.0
  %2018 = vmatprep.subr.mxu0 0.0
  %2019 = vmatpush1.msra.mxu0 0.0
  %2020 = vmatprep.subr.mxu0 0.0
  %2021 = vmatpush1.msra.mxu0 0.0
  %2022 = vmatprep.subr.mxu0 0.0
  %2023 = vmatpush1.msra.mxu0 0.0
  %2024 = vmatprep.subr.mxu0 0.0
  %2025 = vmatpush1.msra.mxu0 0.0
  %2026 = vmatprep.subr.mxu0 0.0
  %2027 = vmatpush1.msra.mxu0 0.0
  %2028 = vmatprep.subr.mxu0 0.0
  %2029 = vmatpush1.msra.mxu0 0.0
  %2030 = vmatprep.subr.mxu0 0.0
  %2031 = vmatpush1.msra.mxu0 0.0
  %2032 = vmatprep.subr.mxu0 0.0
  %2033 = vmatpush1.msra.mxu0 0.0
  %2034 = vmatprep.subr.mxu0 0.0
  %2035 = vmatpush1.msra.mxu0 0.0
  %2036 = vmatprep.subr.mxu0 0.0
  %2037 = vmatpush1.msra.mxu0 0.0
  %2038 = vmatprep.subr.mxu0 0.0
  %2039 = vmatpush1.msra.mxu0 0.0
  %2040 = vmatprep.subr.mxu0 0.0
  %2041 = vmatpush1.msra.mxu0 0.0
  %2042 = vmatprep.subr.mxu0 0.0
  %2043 = vmatpush1.msra.mxu0 0.0
  %2044 = vmatprep.subr.mxu0 0.0
  %2045 = vmatpush1.msra.mxu0 0.0
  %2046 = vmatprep.subr.mxu0 0.0
  %2047 = vmatpush1.msra.mxu0 0.0
  %2048 = vmatprep.subr.mxu0 0.0
  %2049 = vmatpush1.msra.mxu0 0.0
  %2050 = vmatprep.subr.mxu0 0.0
  %2051 = vmatpush1.msra.mxu0 0.0
  %2052 = vmatprep.subr.mxu0 0.0
  %2053 = vmatpush1.msra.mxu0 0.0
  %2054 = vmatprep.subr.mxu0 0.0
  %2055 = vmatpush1.msra.mxu0 0.0
  %2056 = vmatprep.subr.mxu0 0.0
  %2057 = vmatpush1.msra.mxu0 0.0
  %2058 = vmatprep.subr.mxu0 0.0
  %2059 = vmatpush1.msra.mxu0 0.0
  %2060 = vmatprep.subr.mxu0 0.0
  %2061 = vmatpush1.msra.mxu0 0.0
  %2062 = vmatprep.subr.mxu0 0.0
  %2063 = vmatpush1.msra.mxu0 0.0
  %2064 = vmatprep.subr.mxu0 0.0
  %2065 = vmatpush1.msra.mxu0 0.0
  %2066 = vmatprep.mubr.f32.mxu0 0.0
  %2067 = vmatmul.mubr.f32.gmra.mrb[0].mxu0 %v2000
  %v2068 = vpop.f32.mrb[0].mxu0
  %v2069 = vadd.f32 %v1998, %v2068
  %v2070 = vpop.f32.mrb[0].mxu0
  %2071 = vdwg.mxu0
  %v2072 = vmax.f32 %v2069, 0.0
  %s2073 = scalar_lea.vmem %s4, 128
  %v2074 = vld [vmem:[%s2073] sm:$0xff]
  %v2075 = vld [vmem:[%s2073 + $0x8] sm:$0xff]
  %v2076 = vld [vmem:[%s2073 + $0x10] sm:$0xff]
  %v2077 = vld [vmem:[%s2073 + $0x18] sm:$0xff]
  %v2078 = vld [vmem:[%s2073 + $0x20] sm:$0xff]
  %v2079 = vld [vmem:[%s2073 + $0x28] sm:$0xff]
  %v2080 = vld [vmem:[%s2073 + $0x30] sm:$0xff]
  %v2081 = vld [vmem:[%s2073 + $0x38] sm:$0xff]
  %v2082 = vld [vmem:[%s2073 + $0x40] sm:$0xff]
  %v2083 = vld [vmem:[%s2073 + $0x48] sm:$0xff]
  %v2084 = vld [vmem:[%s2073 + $0x50] sm:$0xff]
  %v2085 = vld [vmem:[%s2073 + $0x58] sm:$0xff]
  %v2086 = vld [vmem:[%s2073 + $0x60] sm:$0xff]
  %v2087 = vld [vmem:[%s2073 + $0x68] sm:$0xff]
  %v2088 = vld [vmem:[%s2073 + $0x70] sm:$0xff]
  %v2089 = vld [vmem:[%s2073 + $0x78] sm:$0xff]
  %v2090 = vlaneseq
  %v2091 = vshrl.u32 %v2090, 7
  %v2092 = vsub.s32 5, %v2091
  %v2093 = vrot.slane %v1123, %v2092
  %2094 = vmatprep.subr.mxu0 0.0
  %2095 = vmatpush1.msra.mxu0 %v2074
  %2096 = vmatprep.subr.mxu0 0.0
  %2097 = vmatpush1.msra.mxu0 %v2075
  %2098 = vmatprep.subr.mxu0 0.0
  %2099 = vmatpush1.msra.mxu0 %v2076
  %2100 = vmatprep.subr.mxu0 0.0
  %2101 = vmatpush1.msra.mxu0 %v2077
  %2102 = vmatprep.subr.mxu0 0.0
  %2103 = vmatpush1.msra.mxu0 %v2078
  %2104 = vmatprep.subr.mxu0 0.0
  %2105 = vmatpush1.msra.mxu0 %v2079
  %2106 = vmatprep.subr.mxu0 0.0
  %2107 = vmatpush1.msra.mxu0 %v2080
  %2108 = vmatprep.subr.mxu0 0.0
  %2109 = vmatpush1.msra.mxu0 %v2081
  %2110 = vmatprep.subr.mxu0 0.0
  %2111 = vmatpush1.msra.mxu0 %v2082
  %2112 = vmatprep.subr.mxu0 0.0
  %2113 = vmatpush1.msra.mxu0 %v2083
  %2114 = vmatprep.subr.mxu0 0.0
  %2115 = vmatpush1.msra.mxu0 %v2084
  %2116 = vmatprep.subr.mxu0 0.0
  %2117 = vmatpush1.msra.mxu0 %v2085
  %2118 = vmatprep.subr.mxu0 0.0
  %2119 = vmatpush1.msra.mxu0 %v2086
  %2120 = vmatprep.subr.mxu0 0.0
  %2121 = vmatpush1.msra.mxu0 %v2087
  %2122 = vmatprep.subr.mxu0 0.0
  %2123 = vmatpush1.msra.mxu0 %v2088
  %2124 = vmatprep.subr.mxu0 0.0
  %2125 = vmatpush1.msra.mxu0 %v2089
  %2126 = vmatprep.subr.mxu0 0.0
  %2127 = vmatpush1.msra.mxu0 0.0
  %2128 = vmatprep.subr.mxu0 0.0
  %2129 = vmatpush1.msra.mxu0 0.0
  %2130 = vmatprep.subr.mxu0 0.0
  %2131 = vmatpush1.msra.mxu0 0.0
  %2132 = vmatprep.subr.mxu0 0.0
  %2133 = vmatpush1.msra.mxu0 0.0
  %2134 = vmatprep.subr.mxu0 0.0
  %2135 = vmatpush1.msra.mxu0 0.0
  %2136 = vmatprep.subr.mxu0 0.0
  %2137 = vmatpush1.msra.mxu0 0.0
  %2138 = vmatprep.subr.mxu0 0.0
  %2139 = vmatpush1.msra.mxu0 0.0
  %2140 = vmatprep.subr.mxu0 0.0
  %2141 = vmatpush1.msra.mxu0 0.0
  %2142 = vmatprep.subr.mxu0 0.0
  %2143 = vmatpush1.msra.mxu0 0.0
  %2144 = vmatprep.subr.mxu0 0.0
  %2145 = vmatpush1.msra.mxu0 0.0
  %2146 = vmatprep.subr.mxu0 0.0
  %2147 = vmatpush1.msra.mxu0 0.0
  %2148 = vmatprep.subr.mxu0 0.0
  %2149 = vmatpush1.msra.mxu0 0.0
  %2150 = vmatprep.subr.mxu0 0.0
  %2151 = vmatpush1.msra.mxu0 0.0
  %2152 = vmatprep.subr.mxu0 0.0
  %2153 = vmatpush1.msra.mxu0 0.0
  %2154 = vmatprep.subr.mxu0 0.0
  %2155 = vmatpush1.msra.mxu0 0.0
  %2156 = vmatprep.subr.mxu0 0.0
  %2157 = vmatpush1.msra.mxu0 0.0
  %2158 = vmatprep.mubr.f32.mxu0 0.0
  %2159 = vmatmul.mubr.f32.gmra.mrb[0].mxu0 %v2072
  %v2160 = vpop.f32.mrb[0].mxu0
  %v2161 = vadd.f32 %v2093, %v2160
  %v2162 = vpop.f32.mrb[0].mxu0
  %2163 = vdwg.mxu0
  %v2164 = vadd.f32 %v2161, %v1989
  %v2165 = vsel %vm64, %v2164, 0.0
  %2166 = vadd.xlane.f32.xlu0 %v2165
  %v2167 = vpop.xlane.xlu0 %2166
  %v2168 = vmul.f32 %v2167, %v905
  %v2169 = vsub.f32 %v2164, %v2168
  %v2170 = vmul.f32 %v2169, %v2169
  %v2171 = vsel %vm64, %v2170, 0.0
  %2172 = vadd.xlane.f32.xlu0 %v2171
  %v2173 = vpop.xlane.xlu0 %2172
  %v2174 = vmul.f32 %v2173, %v905
  %v2175 = vadd.f32 %v2174, 1e-05
  %v2176 = vrsqrt.pop %v2175
  %v2177 = vmul.f32 %v2169, %v2176
  %v2178 = vlaneseq
  %v2179 = vshrl.u32 %v2178, 7
  %v2180 = vsub.s32 6, %v2179
  %v2181 = vrot.slane %v1123, %v2180
  %v2182 = vmul.f32 %v2177, %v2181
  %v2183 = vlaneseq
  %v2184 = vshrl.u32 %v2183, 7
  %v2185 = vsub.s32 7, %v2184
  %v2186 = vrot.slane %v1123, %v2185
  %v2187 = vadd.f32 %v2182, %v2186
  %v2188 = vld [vmem:[%s9] sm:$0xff]
  %v2189 = vld [vmem:[%s9 + $0x8] sm:$0xff]
  %v2190 = vld [vmem:[%s9 + $0x10] sm:$0xff]
  %v2191 = vld [vmem:[%s9 + $0x18] sm:$0xff]
  %v2193 = vsel %vm64, %v2187, 0
  %2195 = vmatprep.subr.mxu0 0.0
  %2196 = vmatpush1.msra.mxu0 %v2188
  %2197 = vmatprep.subr.mxu0 0.0
  %2198 = vmatpush1.msra.mxu0 %v2189
  %2199 = vmatprep.subr.mxu0 0.0
  %2200 = vmatpush1.msra.mxu0 %v2190
  %2201 = vmatprep.subr.mxu0 0.0
  %2202 = vmatpush1.msra.mxu0 %v2191
  %2203 = vmatprep.subr.mxu0 0.0
  %2204 = vmatpush1.msra.mxu0 0.0
  %2205 = vmatprep.subr.mxu0 0.0
  %2206 = vmatpush1.msra.mxu0 0.0
  %2207 = vmatprep.subr.mxu0 0.0
  %2208 = vmatpush1.msra.mxu0 0.0
  %2209 = vmatprep.subr.mxu0 0.0
  %2210 = vmatpush1.msra.mxu0 0.0
  %2211 = vmatprep.subr.mxu0 0.0
  %2212 = vmatpush1.msra.mxu0 0.0
  %2213 = vmatprep.subr.mxu0 0.0
  %2214 = vmatpush1.msra.mxu0 0.0
  %2215 = vmatprep.subr.mxu0 0.0
  %2216 = vmatpush1.msra.mxu0 0.0
  %2217 = vmatprep.subr.mxu0 0.0
  %2218 = vmatpush1.msra.mxu0 0.0
  %2219 = vmatprep.subr.mxu0 0.0
  %2220 = vmatpush1.msra.mxu0 0.0
  %2221 = vmatprep.subr.mxu0 0.0
  %2222 = vmatpush1.msra.mxu0 0.0
  %2223 = vmatprep.subr.mxu0 0.0
  %2224 = vmatpush1.msra.mxu0 0.0
  %2225 = vmatprep.subr.mxu0 0.0
  %2226 = vmatpush1.msra.mxu0 0.0
  %2227 = vmatprep.subr.mxu0 0.0
  %2228 = vmatpush1.msra.mxu0 0.0
  %2229 = vmatprep.subr.mxu0 0.0
  %2230 = vmatpush1.msra.mxu0 0.0
  %2231 = vmatprep.subr.mxu0 0.0
  %2232 = vmatpush1.msra.mxu0 0.0
  %2233 = vmatprep.subr.mxu0 0.0
  %2234 = vmatpush1.msra.mxu0 0.0
  %2235 = vmatprep.subr.mxu0 0.0
  %2236 = vmatpush1.msra.mxu0 0.0
  %2237 = vmatprep.subr.mxu0 0.0
  %2238 = vmatpush1.msra.mxu0 0.0
  %2239 = vmatprep.subr.mxu0 0.0
  %2240 = vmatpush1.msra.mxu0 0.0
  %2241 = vmatprep.subr.mxu0 0.0
  %2242 = vmatpush1.msra.mxu0 0.0
  %2243 = vmatprep.subr.mxu0 0.0
  %2244 = vmatpush1.msra.mxu0 0.0
  %2245 = vmatprep.subr.mxu0 0.0
  %2246 = vmatpush1.msra.mxu0 0.0
  %2247 = vmatprep.subr.mxu0 0.0
  %2248 = vmatpush1.msra.mxu0 0.0
  %2249 = vmatprep.subr.mxu0 0.0
  %2250 = vmatpush1.msra.mxu0 0.0
  %2251 = vmatprep.subr.mxu0 0.0
  %2252 = vmatpush1.msra.mxu0 0.0
  %2253 = vmatprep.subr.mxu0 0.0
  %2254 = vmatpush1.msra.mxu0 0.0
  %2255 = vmatprep.subr.mxu0 0.0
  %2256 = vmatpush1.msra.mxu0 0.0
  %2257 = vmatprep.subr.mxu0 0.0
  %2258 = vmatpush1.msra.mxu0 0.0
  %2259 = vmatprep.mubr.f32.mxu0 0.0
  %2260 = vmatmul.mubr.f32.gmra.mrb[0].mxu0 %v2193
  %v2261 = vpop.f32.mrb[0].mxu0
  %v2262 = vadd.f32 0.0, %v2261
  %v2263 = vpop.f32.mrb[0].mxu0
  %2264 = vdwg.mxu0
  %v2265 = vld [vmem:[%s15] sm:$0x1]
  %v2266 = vld [vmem:[%s13] sm:$0xff]
  %v2267 = vld [vmem:[%s13 + $0x8] sm:$0x3f]
  %v2268 = vld [vmem:[%s6] sm:$0xff]
  %v2269 = vld [vmem:[%s6 + $0x8] sm:$0xff]
  %v2270 = vld [vmem:[%s6 + $0x10] sm:$0xff]
  %v2271 = vld [vmem:[%s6 + $0x18] sm:$0xff]
  %v2273 = vsel %vm64, %v2265, 0
  %2275 = vmatprep.subr.mxu0 0.0
  %2276 = vmatpush1.msra.mxu0 %v2268
  %2277 = vmatprep.subr.mxu0 0.0
  %2278 = vmatpush1.msra.mxu0 %v2269
  %2279 = vmatprep.subr.mxu0 0.0
  %2280 = vmatpush1.msra.mxu0 %v2270
  %2281 = vmatprep.subr.mxu0 0.0
  %2282 = vmatpush1.msra.mxu0 %v2271
  %2283 = vmatprep.subr.mxu0 0.0
  %2284 = vmatpush1.msra.mxu0 0.0
  %2285 = vmatprep.subr.mxu0 0.0
  %2286 = vmatpush1.msra.mxu0 0.0
  %2287 = vmatprep.subr.mxu0 0.0
  %2288 = vmatpush1.msra.mxu0 0.0
  %2289 = vmatprep.subr.mxu0 0.0
  %2290 = vmatpush1.msra.mxu0 0.0
  %2291 = vmatprep.subr.mxu0 0.0
  %2292 = vmatpush1.msra.mxu0 0.0
  %2293 = vmatprep.subr.mxu0 0.0
  %2294 = vmatpush1.msra.mxu0 0.0
  %2295 = vmatprep.subr.mxu0 0.0
  %2296 = vmatpush1.msra.mxu0 0.0
  %2297 = vmatprep.subr.mxu0 0.0
  %2298 = vmatpush1.msra.mxu0 0.0
  %2299 = vmatprep.subr.mxu0 0.0
  %2300 = vmatpush1.msra.mxu0 0.0
  %2301 = vmatprep.subr.mxu0 0.0
  %2302 = vmatpush1.msra.mxu0 0.0
  %2303 = vmatprep.subr.mxu0 0.0
  %2304 = vmatpush1.msra.mxu0 0.0
  %2305 = vmatprep.subr.mxu0 0.0
  %2306 = vmatpush1.msra.mxu0 0.0
  %2307 = vmatprep.subr.mxu0 0.0
  %2308 = vmatpush1.msra.mxu0 0.0
  %2309 = vmatprep.subr.mxu0 0.0
  %2310 = vmatpush1.msra.mxu0 0.0
  %2311 = vmatprep.subr.mxu0 0.0
  %2312 = vmatpush1.msra.mxu0 0.0
  %2313 = vmatprep.subr.mxu0 0.0
  %2314 = vmatpush1.msra.mxu0 0.0
  %2315 = vmatprep.subr.mxu0 0.0
  %2316 = vmatpush1.msra.mxu0 0.0
  %2317 = vmatprep.subr.mxu0 0.0
  %2318 = vmatpush1.msra.mxu0 0.0
  %2319 = vmatprep.subr.mxu0 0.0
  %2320 = vmatpush1.msra.mxu0 0.0
  %2321 = vmatprep.subr.mxu0 0.0
  %2322 = vmatpush1.msra.mxu0 0.0
  %2323 = vmatprep.subr.mxu0 0.0
  %2324 = vmatpush1.msra.mxu0 0.0
  %2325 = vmatprep.subr.mxu0 0.0
  %2326 = vmatpush1.msra.mxu0 0.0
  %2327 = vmatprep.subr.mxu0 0.0
  %2328 = vmatpush1.msra.mxu0 0.0
  %2329 = vmatprep.subr.mxu0 0.0
  %2330 = vmatpush1.msra.mxu0 0.0
  %2331 = vmatprep.subr.mxu0 0.0
  %2332 = vmatpush1.msra.mxu0 0.0
  %2333 = vmatprep.subr.mxu0 0.0
  %2334 = vmatpush1.msra.mxu0 0.0
  %2335 = vmatprep.subr.mxu0 0.0
  %2336 = vmatpush1.msra.mxu0 0.0
  %2337 = vmatprep.subr.mxu0 0.0
  %2338 = vmatpush1.msra.mxu0 0.0
  %2339 = vmatprep.mubr.f32.mxu0 0.0
  %2340 = vmatmul.mubr.f32.gmra.mrb[0].mxu0 %v2273
  %v2341 = vpop.f32.mrb[0].mxu0
  %v2342 = vadd.f32 %v2266, %v2341
  %v2343 = vpop.f32.mrb[0].mxu0
  %2344 = vdwg.mxu0
  %v2345 = vld [vmem:[%s7] sm:$0xff]
  %v2346 = vld [vmem:[%s7 + $0x8] sm:$0xff]
  %v2347 = vld [vmem:[%s7 + $0x10] sm:$0xff]
  %v2348 = vld [vmem:[%s7 + $0x18] sm:$0xff]
  %v2350 = vrot.slane %v2266, 1
  %v2353 = vsel %vm64, %v2342, 0
  %2355 = vmatprep.subr.mxu0 0.0
  %2356 = vmatpush1.msra.mxu0 %v2345
  %2357 = vmatprep.subr.mxu0 0.0
  %2358 = vmatpush1.msra.mxu0 %v2346
  %2359 = vmatprep.subr.mxu0 0.0
  %2360 = vmatpush1.msra.mxu0 %v2347
  %2361 = vmatprep.subr.mxu0 0.0
  %2362 = vmatpush1.msra.mxu0 %v2348
  %2363 = vmatprep.subr.mxu0 0.0
  %2364 = vmatpush1.msra.mxu0 0.0
  %2365 = vmatprep.subr.mxu0 0.0
  %2366 = vmatpush1.msra.mxu0 0.0
  %2367 = vmatprep.subr.mxu0 0.0
  %2368 = vmatpush1.msra.mxu0 0.0
  %2369 = vmatprep.subr.mxu0 0.0
  %2370 = vmatpush1.msra.mxu0 0.0
  %2371 = vmatprep.subr.mxu0 0.0
  %2372 = vmatpush1.msra.mxu0 0.0
  %2373 = vmatprep.subr.mxu0 0.0
  %2374 = vmatpush1.msra.mxu0 0.0
  %2375 = vmatprep.subr.mxu0 0.0
  %2376 = vmatpush1.msra.mxu0 0.0
  %2377 = vmatprep.subr.mxu0 0.0
  %2378 = vmatpush1.msra.mxu0 0.0
  %2379 = vmatprep.subr.mxu0 0.0
  %2380 = vmatpush1.msra.mxu0 0.0
  %2381 = vmatprep.subr.mxu0 0.0
  %2382 = vmatpush1.msra.mxu0 0.0
  %2383 = vmatprep.subr.mxu0 0.0
  %2384 = vmatpush1.msra.mxu0 0.0
  %2385 = vmatprep.subr.mxu0 0.0
  %2386 = vmatpush1.msra.mxu0 0.0
  %2387 = vmatprep.subr.mxu0 0.0
  %2388 = vmatpush1.msra.mxu0 0.0
  %2389 = vmatprep.subr.mxu0 0.0
  %2390 = vmatpush1.msra.mxu0 0.0
  %2391 = vmatprep.subr.mxu0 0.0
  %2392 = vmatpush1.msra.mxu0 0.0
  %2393 = vmatprep.subr.mxu0 0.0
  %2394 = vmatpush1.msra.mxu0 0.0
  %2395 = vmatprep.subr.mxu0 0.0
  %2396 = vmatpush1.msra.mxu0 0.0
  %2397 = vmatprep.subr.mxu0 0.0
  %2398 = vmatpush1.msra.mxu0 0.0
  %2399 = vmatprep.subr.mxu0 0.0
  %2400 = vmatpush1.msra.mxu0 0.0
  %2401 = vmatprep.subr.mxu0 0.0
  %2402 = vmatpush1.msra.mxu0 0.0
  %2403 = vmatprep.subr.mxu0 0.0
  %2404 = vmatpush1.msra.mxu0 0.0
  %2405 = vmatprep.subr.mxu0 0.0
  %2406 = vmatpush1.msra.mxu0 0.0
  %2407 = vmatprep.subr.mxu0 0.0
  %2408 = vmatpush1.msra.mxu0 0.0
  %2409 = vmatprep.subr.mxu0 0.0
  %2410 = vmatpush1.msra.mxu0 0.0
  %2411 = vmatprep.subr.mxu0 0.0
  %2412 = vmatpush1.msra.mxu0 0.0
  %2413 = vmatprep.subr.mxu0 0.0
  %2414 = vmatpush1.msra.mxu0 0.0
  %2415 = vmatprep.subr.mxu0 0.0
  %2416 = vmatpush1.msra.mxu0 0.0
  %2417 = vmatprep.subr.mxu0 0.0
  %2418 = vmatpush1.msra.mxu0 0.0
  %2419 = vmatprep.mubr.f32.mxu0 0.0
  %2420 = vmatmul.mubr.f32.gmra.mrb[0].mxu0 %v2353
  %v2421 = vpop.f32.mrb[0].mxu0
  %v2422 = vadd.f32 %v2350, %v2421
  %v2423 = vpop.f32.mrb[0].mxu0
  %2424 = vdwg.mxu0
  %v2425 = vadd.f32 %v2422, %v2265
  %vm2426 = vcmask 253952
  %v2427 = vsel %vm2426, %v2425, 0.0
  %2428 = vadd.xlane.f32.xlu0 %v2427
  %v2429 = vpop.xlane.xlu0 %2428
  %v2430 = vmul.f32 %v2429, %v905
  %v2431 = vsub.f32 %v2425, %v2430
  %v2432 = vmul.f32 %v2431, %v2431
  %v2433 = vsel %vm2426, %v2432, 0.0
  %2434 = vadd.xlane.f32.xlu0 %v2433
  %v2435 = vpop.xlane.xlu0 %2434
  %v2436 = vmul.f32 %v2435, %v905
  %v2437 = vadd.f32 %v2436, 1e-05
  %v2438 = vrsqrt.pop %v2437
  %v2439 = vmul.f32 %v2431, %v2438
  %v2440 = vrot.slane %v2266, 2
  %v2442 = vmul.f32 %v2439, %v2440
  %v2443 = vrot.slane %v2266, 3
  %v2445 = vadd.f32 %v2442, %v2443
  %v2446 = vld [vmem:[%s8] sm:$0xff]
  %v2447 = vld [vmem:[%s8 + $0x8] sm:$0xff]
  %v2448 = vld [vmem:[%s8 + $0x10] sm:$0xff]
  %v2449 = vld [vmem:[%s8 + $0x18] sm:$0xff]
  %v2450 = vrot.slane %v2266, 4
  %v2453 = vsel %vm64, %v2445, 0
  %2455 = vmatprep.subr.mxu0 0.0
  %2456 = vmatpush1.msra.mxu0 %v2446
  %2457 = vmatprep.subr.mxu0 0.0
  %2458 = vmatpush1.msra.mxu0 %v2447
  %2459 = vmatprep.subr.mxu0 0.0
  %2460 = vmatpush1.msra.mxu0 %v2448
  %2461 = vmatprep.subr.mxu0 0.0
  %2462 = vmatpush1.msra.mxu0 %v2449
  %2463 = vmatprep.subr.mxu0 0.0
  %2464 = vmatpush1.msra.mxu0 0.0
  %2465 = vmatprep.subr.mxu0 0.0
  %2466 = vmatpush1.msra.mxu0 0.0
  %2467 = vmatprep.subr.mxu0 0.0
  %2468 = vmatpush1.msra.mxu0 0.0
  %2469 = vmatprep.subr.mxu0 0.0
  %2470 = vmatpush1.msra.mxu0 0.0
  %2471 = vmatprep.subr.mxu0 0.0
  %2472 = vmatpush1.msra.mxu0 0.0
  %2473 = vmatprep.subr.mxu0 0.0
  %2474 = vmatpush1.msra.mxu0 0.0
  %2475 = vmatprep.subr.mxu0 0.0
  %2476 = vmatpush1.msra.mxu0 0.0
  %2477 = vmatprep.subr.mxu0 0.0
  %2478 = vmatpush1.msra.mxu0 0.0
  %2479 = vmatprep.subr.mxu0 0.0
  %2480 = vmatpush1.msra.mxu0 0.0
  %2481 = vmatprep.subr.mxu0 0.0
  %2482 = vmatpush1.msra.mxu0 0.0
  %2483 = vmatprep.subr.mxu0 0.0
  %2484 = vmatpush1.msra.mxu0 0.0
  %2485 = vmatprep.subr.mxu0 0.0
  %2486 = vmatpush1.msra.mxu0 0.0
  %2487 = vmatprep.subr.mxu0 0.0
  %2488 = vmatpush1.msra.mxu0 0.0
  %2489 = vmatprep.subr.mxu0 0.0
  %2490 = vmatpush1.msra.mxu0 0.0
  %2491 = vmatprep.subr.mxu0 0.0
  %2492 = vmatpush1.msra.mxu0 0.0
  %2493 = vmatprep.subr.mxu0 0.0
  %2494 = vmatpush1.msra.mxu0 0.0
  %2495 = vmatprep.subr.mxu0 0.0
  %2496 = vmatpush1.msra.mxu0 0.0
  %2497 = vmatprep.subr.mxu0 0.0
  %2498 = vmatpush1.msra.mxu0 0.0
  %2499 = vmatprep.subr.mxu0 0.0
  %2500 = vmatpush1.msra.mxu0 0.0
  %2501 = vmatprep.subr.mxu0 0.0
  %2502 = vmatpush1.msra.mxu0 0.0
  %2503 = vmatprep.subr.mxu0 0.0
  %2504 = vmatpush1.msra.mxu0 0.0
  %2505 = vmatprep.subr.mxu0 0.0
  %2506 = vmatpush1.msra.mxu0 0.0
  %2507 = vmatprep.subr.mxu0 0.0
  %2508 = vmatpush1.msra.mxu0 0.0
  %2509 = vmatprep.subr.mxu0 0.0
  %2510 = vmatpush1.msra.mxu0 0.0
  %2511 = vmatprep.subr.mxu0 0.0
  %2512 = vmatpush1.msra.mxu0 0.0
  %2513 = vmatprep.subr.mxu0 0.0
  %2514 = vmatpush1.msra.mxu0 0.0
  %2515 = vmatprep.subr.mxu0 0.0
  %2516 = vmatpush1.msra.mxu0 0.0
  %2517 = vmatprep.subr.mxu0 0.0
  %2518 = vmatpush1.msra.mxu0 0.0
  %2519 = vmatprep.mubr.f32.mxu0 0.0
  %2520 = vmatmul.mubr.f32.gmra.mrb[0].mxu0 %v2453
  %v2521 = vpop.f32.mrb[0].mxu0
  %v2522 = vadd.f32 %v2450, %v2521
  %v2523 = vpop.f32.mrb[0].mxu0
  %2524 = vdwg.mxu0
  %v2525 = vlaneseq
  %v2526 = vshrl.u32 %v2525, 7
  %v2527 = vsub.s32 5, %v2526
  %v2528 = vrot.slane %v2266, %v2527
  %v2529 = vadd.f32 %v2262, %v2528
  %v2530 = vlaneseq
  %v2531 = vshrl.u32 %v2530, 7
  %v2532 = vsub.s32 6, %v2531
  %v2533 = vrot.slane %v2266, %v2532
  %2535 = vrot.lane.b32.xlu0 %v2533, 32
  %v2536 = vpop.permute.xlu0 %2535
  %v2538 = vadd.f32 %v2262, %v2536
  %v2539 = vmul.f32 %v2522, 0.35355338
  %v2541 = vsel %vm142, %v2539, 0
  %v2544 = vsel %vm142, %v2529, 0
  %2546 = vmatprep.subr.mxu0 0.0
  %2547 = vmatpush1.xpose.msra.mxu0 %v2544
  %2548 = vmatprep.subr.mxu0 0.0
  %2549 = vmatpush1.xpose.msra.mxu0 0.0
  %2550 = vmatprep.subr.mxu0 0.0
  %2551 = vmatpush1.xpose.msra.mxu0 0.0
  %2552 = vmatprep.subr.mxu0 0.0
  %2553 = vmatpush1.xpose.msra.mxu0 0.0
  %2554 = vmatprep.subr.mxu0 0.0
  %2555 = vmatpush1.xpose.msra.mxu0 0.0
  %2556 = vmatprep.subr.mxu0 0.0
  %2557 = vmatpush1.xpose.msra.mxu0 0.0
  %2558 = vmatprep.subr.mxu0 0.0
  %2559 = vmatpush1.xpose.msra.mxu0 0.0
  %2560 = vmatprep.subr.mxu0 0.0
  %2561 = vmatpush1.xpose.msra.mxu0 0.0
  %2562 = vmatprep.subr.mxu0 0.0
  %2563 = vmatpush1.xpose.msra.mxu0 0.0
  %2564 = vmatprep.subr.mxu0 0.0
  %2565 = vmatpush1.xpose.msra.mxu0 0.0
  %2566 = vmatprep.subr.mxu0 0.0
  %2567 = vmatpush1.xpose.msra.mxu0 0.0
  %2568 = vmatprep.subr.mxu0 0.0
  %2569 = vmatpush1.xpose.msra.mxu0 0.0
  %2570 = vmatprep.subr.mxu0 0.0
  %2571 = vmatpush1.xpose.msra.mxu0 0.0
  %2572 = vmatprep.subr.mxu0 0.0
  %2573 = vmatpush1.xpose.msra.mxu0 0.0
  %2574 = vmatprep.subr.mxu0 0.0
  %2575 = vmatpush1.xpose.msra.mxu0 0.0
  %2576 = vmatprep.subr.mxu0 0.0
  %2577 = vmatpush1.xpose.msra.mxu0 0.0
  %2578 = vmatprep.subr.mxu0 0.0
  %2579 = vmatpush1.xpose.msra.mxu0 0.0
  %2580 = vmatprep.subr.mxu0 0.0
  %2581 = vmatpush1.xpose.msra.mxu0 0.0
  %2582 = vmatprep.subr.mxu0 0.0
  %2583 = vmatpush1.xpose.msra.mxu0 0.0
  %2584 = vmatprep.subr.mxu0 0.0
  %2585 = vmatpush1.xpose.msra.mxu0 0.0
  %2586 = vmatprep.subr.mxu0 0.0
  %2587 = vmatpush1.xpose.msra.mxu0 0.0
  %2588 = vmatprep.subr.mxu0 0.0
  %2589 = vmatpush1.xpose.msra.mxu0 0.0
  %2590 = vmatprep.subr.mxu0 0.0
  %2591 = vmatpush1.xpose.msra.mxu0 0.0
  %2592 = vmatprep.subr.mxu0 0.0
  %2593 = vmatpush1.xpose.msra.mxu0 0.0
  %2594 = vmatprep.subr.mxu0 0.0
  %2595 = vmatpush1.xpose.msra.mxu0 0.0
  %2596 = vmatprep.subr.mxu0 0.0
  %2597 = vmatpush1.xpose.msra.mxu0 0.0
  %2598 = vmatprep.subr.mxu0 0.0
  %2599 = vmatpush1.xpose.msra.mxu0 0.0
  %2600 = vmatprep.subr.mxu0 0.0
  %2601 = vmatpush1.xpose.msra.mxu0 0.0
  %2602 = vmatprep.subr.mxu0 0.0
  %2603 = vmatpush1.xpose.msra.mxu0 0.0
  %2604 = vmatprep.subr.mxu0 0.0
  %2605 = vmatpush1.xpose.msra.mxu0 0.0
  %2606 = vmatprep.subr.mxu0 0.0
  %2607 = vmatpush1.xpose.msra.mxu0 0.0
  %2608 = vmatprep.subr.mxu0 0.0
  %2609 = vmatpush1.xpose.msra.mxu0 0.0
  %2610 = vmatprep.mubr.f32.mxu0 0.0
  %2611 = vmatmul.mubr.f32.gmra.mrb[0].mxu0 %v2541
  %v2612 = vpop.f32.mrb[0].mxu0
  %v2613 = vadd.f32 0.0, %v2612
  %v2614 = vpop.f32.mrb[0].mxu0
  %2615 = vdwg.mxu0
  %vm2616 = vcmask 57344
  %v2617 = vsel %vm2616, %v2613, -inf
  %2618 = vmax.xlane.f32.xlu0 %v2617
  %v2619 = vpop.xlane.xlu0 %2618
  %v2620 = vsub.f32 %v2613, %v2619
  %v2621 = vmul.f32 %v2620, 1.442695
  %v2622 = vpow.pop %v2621
  %v2623 = vsel %vm2616, %v2622, 0.0
  %2624 = vadd.xlane.f32.xlu0 %v2623
  %v2625 = vpop.xlane.xlu0 %2624
  %v2626 = vrcp.pop %v2625
  %v2627 = vmul.f32 %v2622, %v2626
  %2629 = vrot.lane.b32.xlu0 %v2538, 96
  %v2630 = vpop.permute.xlu0 %2629
  %v2633 = vsel %vm142, %v2627, 0
  %2635 = vmatprep.subr.mxu0 0.0
  %2636 = vmatpush1.msra.mxu0 %v2630
  %2637 = vmatprep.subr.mxu0 0.0
  %2638 = vmatpush1.msra.mxu0 0.0
  %2639 = vmatprep.subr.mxu0 0.0
  %2640 = vmatpush1.msra.mxu0 0.0
  %2641 = vmatprep.subr.mxu0 0.0
  %2642 = vmatpush1.msra.mxu0 0.0
  %2643 = vmatprep.subr.mxu0 0.0
  %2644 = vmatpush1.msra.mxu0 0.0
  %2645 = vmatprep.subr.mxu0 0.0
  %2646 = vmatpush1.msra.mxu0 0.0
  %2647 = vmatprep.subr.mxu0 0.0
  %2648 = vmatpush1.msra.mxu0 0.0
  %2649 = vmatprep.subr.mxu0 0.0
  %2650 = vmatpush1.msra.mxu0 0.0
  %2651 = vmatprep.subr.mxu0 0.0
  %2652 = vmatpush1.msra.mxu0 0.0
  %2653 = vmatprep.subr.mxu0 0.0
  %2654 = vmatpush1.msra.mxu0 0.0
  %2655 = vmatprep.subr.mxu0 0.0
  %2656 = vmatpush1.msra.mxu0 0.0
  %2657 = vmatprep.subr.mxu0 0.0
  %2658 = vmatpush1.msra.mxu0 0.0
  %2659 = vmatprep.subr.mxu0 0.0
  %2660 = vmatpush1.msra.mxu0 0.0
  %2661 = vmatprep.subr.mxu0 0.0
  %2662 = vmatpush1.msra.mxu0 0.0
  %2663 = vmatprep.subr.mxu0 0.0
  %2664 = vmatpush1.msra.mxu0 0.0
  %2665 = vmatprep.subr.mxu0 0.0
  %2666 = vmatpush1.msra.mxu0 0.0
  %2667 = vmatprep.subr.mxu0 0.0
  %2668 = vmatpush1.msra.mxu0 0.0
  %2669 = vmatprep.subr.mxu0 0.0
  %2670 = vmatpush1.msra.mxu0 0.0
  %2671 = vmatprep.subr.mxu0 0.0
  %2672 = vmatpush1.msra.mxu0 0.0
  %2673 = vmatprep.subr.mxu0 0.0
  %2674 = vmatpush1.msra.mxu0 0.0
  %2675 = vmatprep.subr.mxu0 0.0
  %2676 = vmatpush1.msra.mxu0 0.0
  %2677 = vmatprep.subr.mxu0 0.0
  %2678 = vmatpush1.msra.mxu0 0.0
  %2679 = vmatprep.subr.mxu0 0.0
  %2680 = vmatpush1.msra.mxu0 0.0
  %2681 = vmatprep.subr.mxu0 0.0
  %2682 = vmatpush1.msra.mxu0 0.0
  %2683 = vmatprep.subr.mxu0 0.0
  %2684 = vmatpush1.msra.mxu0 0.0
  %2685 = vmatprep.subr.mxu0 0.0
  %2686 = vmatpush1.msra.mxu0 0.0
  %2687 = vmatprep.subr.mxu0 0.0
  %2688 = vmatpush1.msra.mxu0 0.0
  %2689 = vmatprep.subr.mxu0 0.0
  %2690 = vmatpush1.msra.mxu0 0.0
  %2691 = vmatprep.subr.mxu0 0.0
  %2692 = vmatpush1.msra.mxu0 0.0
  %2693 = vmatprep.subr.mxu0 0.0
  %2694 = vmatpush1.msra.mxu0 0.0
  %2695 = vmatprep.subr.mxu0 0.0
  %2696 = vmatpush1.msra.mxu0 0.0
  %2697 = vmatprep.subr.mxu0 0.0
  %2698 = vmatpush1.msra.mxu0 0.0
  %2699 = vmatprep.mubr.f32.mxu0 0.0
  %2700 = vmatmul.mubr.f32.gmra.mrb[0].mxu0 %v2633
  %v2701 = vpop.f32.mrb[0].mxu0
  %v2702 = vadd.f32 0.0, %v2701
  %v2703 = vpop.f32.mrb[0].mxu0
  %2704 = vdwg.mxu0
  %2705 = vst.msk [vmem:[#allocation2] sm:$0x1] %vm2616, %v2702
  %2706 = vrot.lane.b32.xlu0 %v2539, 120
  %v2707 = vpop.permute.xlu0 %2706
  %2708 = vrot.lane.b32.xlu0 %v2529, 120
  %v2709 = vpop.permute.xlu0 %2708
  %v2710 = vsel %vm142, %v2707, 0
  %v2712 = vsel %vm142, %v2709, 0
  %2714 = vmatprep.subr.mxu0 0.0
  %2715 = vmatpush1.xpose.msra.mxu0 %v2712
  %2716 = vmatprep.subr.mxu0 0.0
  %2717 = vmatpush1.xpose.msra.mxu0 0.0
  %2718 = vmatprep.subr.mxu0 0.0
  %2719 = vmatpush1.xpose.msra.mxu0 0.0
  %2720 = vmatprep.subr.mxu0 0.0
  %2721 = vmatpush1.xpose.msra.mxu0 0.0
  %2722 = vmatprep.subr.mxu0 0.0
  %2723 = vmatpush1.xpose.msra.mxu0 0.0
  %2724 = vmatprep.subr.mxu0 0.0
  %2725 = vmatpush1.xpose.msra.mxu0 0.0
  %2726 = vmatprep.subr.mxu0 0.0
  %2727 = vmatpush1.xpose.msra.mxu0 0.0
  %2728 = vmatprep.subr.mxu0 0.0
  %2729 = vmatpush1.xpose.msra.mxu0 0.0
  %2730 = vmatprep.subr.mxu0 0.0
  %2731 = vmatpush1.xpose.msra.mxu0 0.0
  %2732 = vmatprep.subr.mxu0 0.0
  %2733 = vmatpush1.xpose.msra.mxu0 0.0
  %2734 = vmatprep.subr.mxu0 0.0
  %2735 = vmatpush1.xpose.msra.mxu0 0.0
  %2736 = vmatprep.subr.mxu0 0.0
  %2737 = vmatpush1.xpose.msra.mxu0 0.0
  %2738 = vmatprep.subr.mxu0 0.0
  %2739 = vmatpush1.xpose.msra.mxu0 0.0
  %2740 = vmatprep.subr.mxu0 0.0
  %2741 = vmatpush1.xpose.msra.mxu0 0.0
  %2742 = vmatprep.subr.mxu0 0.0
  %2743 = vmatpush1.xpose.msra.mxu0 0.0
  %2744 = vmatprep.subr.mxu0 0.0
  %2745 = vmatpush1.xpose.msra.mxu0 0.0
  %2746 = vmatprep.subr.mxu0 0.0
  %2747 = vmatpush1.xpose.msra.mxu0 0.0
  %2748 = vmatprep.subr.mxu0 0.0
  %2749 = vmatpush1.xpose.msra.mxu0 0.0
  %2750 = vmatprep.subr.mxu0 0.0
  %2751 = vmatpush1.xpose.msra.mxu0 0.0
  %2752 = vmatprep.subr.mxu0 0.0
  %2753 = vmatpush1.xpose.msra.mxu0 0.0
  %2754 = vmatprep.subr.mxu0 0.0
  %2755 = vmatpush1.xpose.msra.mxu0 0.0
  %2756 = vmatprep.subr.mxu0 0.0
  %2757 = vmatpush1.xpose.msra.mxu0 0.0
  %2758 = vmatprep.subr.mxu0 0.0
  %2759 = vmatpush1.xpose.msra.mxu0 0.0
  %2760 = vmatprep.subr.mxu0 0.0
  %2761 = vmatpush1.xpose.msra.mxu0 0.0
  %2762 = vmatprep.subr.mxu0 0.0
  %2763 = vmatpush1.xpose.msra.mxu0 0.0
  %2764 = vmatprep.subr.mxu0 0.0
  %2765 = vmatpush1.xpose.msra.mxu0 0.0
  %2766 = vmatprep.subr.mxu0 0.0
  %2767 = vmatpush1.xpose.msra.mxu0 0.0
  %2768 = vmatprep.subr.mxu0 0.0
  %2769 = vmatpush1.xpose.msra.mxu0 0.0
  %2770 = vmatprep.subr.mxu0 0.0
  %2771 = vmatpush1.xpose.msra.mxu0 0.0
  %2772 = vmatprep.subr.mxu0 0.0
  %2773 = vmatpush1.xpose.msra.mxu0 0.0
  %2774 = vmatprep.subr.mxu0 0.0
  %2775 = vmatpush1.xpose.msra.mxu0 0.0
  %2776 = vmatprep.subr.mxu0 0.0
  %2777 = vmatpush1.xpose.msra.mxu0 0.0
  %2778 = vmatprep.mubr.f32.mxu0 0.0
  %2779 = vmatmul.mubr.f32.gmra.mrb[0].mxu0 %v2710
  %v2780 = vpop.f32.mrb[0].mxu0
  %v2781 = vadd.f32 0.0, %v2780
  %v2782 = vpop.f32.mrb[0].mxu0
  %2783 = vdwg.mxu0
  %v2784 = vsel %vm2616, %v2781, -inf
  %2785 = vmax.xlane.f32.xlu0 %v2784
  %v2786 = vpop.xlane.xlu0 %2785
  %v2787 = vsub.f32 %v2781, %v2786
  %v2788 = vmul.f32 %v2787, 1.442695
  %v2789 = vpow.pop %v2788
  %v2790 = vsel %vm2616, %v2789, 0.0
  %2791 = vadd.xlane.f32.xlu0 %v2790
  %v2792 = vpop.xlane.xlu0 %2791
  %v2793 = vrcp.pop %v2792
  %v2794 = vmul.f32 %v2789, %v2793
  %2795 = vrot.lane.b32.xlu0 %v2538, 88
  %v2796 = vpop.permute.xlu0 %2795
  %v2799 = vsel %vm142, %v2794, 0
  %2801 = vmatprep.subr.mxu0 0.0
  %2802 = vmatpush1.msra.mxu0 %v2796
  %2803 = vmatprep.subr.mxu0 0.0
  %2804 = vmatpush1.msra.mxu0 0.0
  %2805 = vmatprep.subr.mxu0 0.0
  %2806 = vmatpush1.msra.mxu0 0.0
  %2807 = vmatprep.subr.mxu0 0.0
  %2808 = vmatpush1.msra.mxu0 0.0
  %2809 = vmatprep.subr.mxu0 0.0
  %2810 = vmatpush1.msra.mxu0 0.0
  %2811 = vmatprep.subr.mxu0 0.0
  %2812 = vmatpush1.msra.mxu0 0.0
  %2813 = vmatprep.subr.mxu0 0.0
  %2814 = vmatpush1.msra.mxu0 0.0
  %2815 = vmatprep.subr.mxu0 0.0
  %2816 = vmatpush1.msra.mxu0 0.0
  %2817 = vmatprep.subr.mxu0 0.0
  %2818 = vmatpush1.msra.mxu0 0.0
  %2819 = vmatprep.subr.mxu0 0.0
  %2820 = vmatpush1.msra.mxu0 0.0
  %2821 = vmatprep.subr.mxu0 0.0
  %2822 = vmatpush1.msra.mxu0 0.0
  %2823 = vmatprep.subr.mxu0 0.0
  %2824 = vmatpush1.msra.mxu0 0.0
  %2825 = vmatprep.subr.mxu0 0.0
  %2826 = vmatpush1.msra.mxu0 0.0
  %2827 = vmatprep.subr.mxu0 0.0
  %2828 = vmatpush1.msra.mxu0 0.0
  %2829 = vmatprep.subr.mxu0 0.0
  %2830 = vmatpush1.msra.mxu0 0.0
  %2831 = vmatprep.subr.mxu0 0.0
  %2832 = vmatpush1.msra.mxu0 0.0
  %2833 = vmatprep.subr.mxu0 0.0
  %2834 = vmatpush1.msra.mxu0 0.0
  %2835 = vmatprep.subr.mxu0 0.0
  %2836 = vmatpush1.msra.mxu0 0.0
  %2837 = vmatprep.subr.mxu0 0.0
  %2838 = vmatpush1.msra.mxu0 0.0
  %2839 = vmatprep.subr.mxu0 0.0
  %2840 = vmatpush1.msra.mxu0 0.0
  %2841 = vmatprep.subr.mxu0 0.0
  %2842 = vmatpush1.msra.mxu0 0.0
  %2843 = vmatprep.subr.mxu0 0.0
  %2844 = vmatpush1.msra.mxu0 0.0
  %2845 = vmatprep.subr.mxu0 0.0
  %2846 = vmatpush1.msra.mxu0 0.0
  %2847 = vmatprep.subr.mxu0 0.0
  %2848 = vmatpush1.msra.mxu0 0.0
  %2849 = vmatprep.subr.mxu0 0.0
  %2850 = vmatpush1.msra.mxu0 0.0
  %2851 = vmatprep.subr.mxu0 0.0
  %2852 = vmatpush1.msra.mxu0 0.0
  %2853 = vmatprep.subr.mxu0 0.0
  %2854 = vmatpush1.msra.mxu0 0.0
  %2855 = vmatprep.subr.mxu0 0.0
  %2856 = vmatpush1.msra.mxu0 0.0
  %2857 = vmatprep.subr.mxu0 0.0
  %2858 = vmatpush1.msra.mxu0 0.0
  %2859 = vmatprep.subr.mxu0 0.0
  %2860 = vmatpush1.msra.mxu0 0.0
  %2861 = vmatprep.subr.mxu0 0.0
  %2862 = vmatpush1.msra.mxu0 0.0
  %2863 = vmatprep.subr.mxu0 0.0
  %2864 = vmatpush1.msra.mxu0 0.0
  %2865 = vmatprep.mubr.f32.mxu0 0.0
  %2866 = vmatmul.mubr.f32.gmra.mrb[0].mxu0 %v2799
  %v2867 = vpop.f32.mrb[0].mxu0
  %v2868 = vadd.f32 0.0, %v2867
  %v2869 = vpop.f32.mrb[0].mxu0
  %2870 = vdwg.mxu0
  %2872 = vrot.lane.b32.xlu0 %v2868, 8
  %v2873 = vpop.permute.xlu0 %2872
  %vm2875 = vcmask 122944
  %2876 = vst.msk [vmem:[#allocation2] sm:$0x1] %vm2875, %v2873
  %2877 = vrot.lane.b32.xlu0 %v2539, 112
  %v2878 = vpop.permute.xlu0 %2877
  %2879 = vrot.lane.b32.xlu0 %v2529, 112
  %v2880 = vpop.permute.xlu0 %2879
  %v2881 = vsel %vm142, %v2878, 0
  %v2883 = vsel %vm142, %v2880, 0
  %2885 = vmatprep.subr.mxu0 0.0
  %2886 = vmatpush1.xpose.msra.mxu0 %v2883
  %2887 = vmatprep.subr.mxu0 0.0
  %2888 = vmatpush1.xpose.msra.mxu0 0.0
  %2889 = vmatprep.subr.mxu0 0.0
  %2890 = vmatpush1.xpose.msra.mxu0 0.0
  %2891 = vmatprep.subr.mxu0 0.0
  %2892 = vmatpush1.xpose.msra.mxu0 0.0
  %2893 = vmatprep.subr.mxu0 0.0
  %2894 = vmatpush1.xpose.msra.mxu0 0.0
  %2895 = vmatprep.subr.mxu0 0.0
  %2896 = vmatpush1.xpose.msra.mxu0 0.0
  %2897 = vmatprep.subr.mxu0 0.0
  %2898 = vmatpush1.xpose.msra.mxu0 0.0
  %2899 = vmatprep.subr.mxu0 0.0
  %2900 = vmatpush1.xpose.msra.mxu0 0.0
  %2901 = vmatprep.subr.mxu0 0.0
  %2902 = vmatpush1.xpose.msra.mxu0 0.0
  %2903 = vmatprep.subr.mxu0 0.0
  %2904 = vmatpush1.xpose.msra.mxu0 0.0
  %2905 = vmatprep.subr.mxu0 0.0
  %2906 = vmatpush1.xpose.msra.mxu0 0.0
  %2907 = vmatprep.subr.mxu0 0.0
  %2908 = vmatpush1.xpose.msra.mxu0 0.0
  %2909 = vmatprep.subr.mxu0 0.0
  %2910 = vmatpush1.xpose.msra.mxu0 0.0
  %2911 = vmatprep.subr.mxu0 0.0
  %2912 = vmatpush1.xpose.msra.mxu0 0.0
  %2913 = vmatprep.subr.mxu0 0.0
  %2914 = vmatpush1.xpose.msra.mxu0 0.0
  %2915 = vmatprep.subr.mxu0 0.0
  %2916 = vmatpush1.xpose.msra.mxu0 0.0
  %2917 = vmatprep.subr.mxu0 0.0
  %2918 = vmatpush1.xpose.msra.mxu0 0.0
  %2919 = vmatprep.subr.mxu0 0.0
  %2920 = vmatpush1.xpose.msra.mxu0 0.0
  %2921 = vmatprep.subr.mxu0 0.0
  %2922 = vmatpush1.xpose.msra.mxu0 0.0
  %2923 = vmatprep.subr.mxu0 0.0
  %2924 = vmatpush1.xpose.msra.mxu0 0.0
  %2925 = vmatprep.subr.mxu0 0.0
  %2926 = vmatpush1.xpose.msra.mxu0 0.0
  %2927 = vmatprep.subr.mxu0 0.0
  %2928 = vmatpush1.xpose.msra.mxu0 0.0
  %2929 = vmatprep.subr.mxu0 0.0
  %2930 = vmatpush1.xpose.msra.mxu0 0.0
  %2931 = vmatprep.subr.mxu0 0.0
  %2932 = vmatpush1.xpose.msra.mxu0 0.0
  %2933 = vmatprep.subr.mxu0 0.0
  %2934 = vmatpush1.xpose.msra.mxu0 0.0
  %2935 = vmatprep.subr.mxu0 0.0
  %2936 = vmatpush1.xpose.msra.mxu0 0.0
  %2937 = vmatprep.subr.mxu0 0.0
  %2938 = vmatpush1.xpose.msra.mxu0 0.0
  %2939 = vmatprep.subr.mxu0 0.0
  %2940 = vmatpush1.xpose.msra.mxu0 0.0
  %2941 = vmatprep.subr.mxu0 0.0
  %2942 = vmatpush1.xpose.msra.mxu0 0.0
  %2943 = vmatprep.subr.mxu0 0.0
  %2944 = vmatpush1.xpose.msra.mxu0 0.0
  %2945 = vmatprep.subr.mxu0 0.0
  %2946 = vmatpush1.xpose.msra.mxu0 0.0
  %2947 = vmatprep.subr.mxu0 0.0
  %2948 = vmatpush1.xpose.msra.mxu0 0.0
  %2949 = vmatprep.mubr.f32.mxu0 0.0
  %2950 = vmatmul.mubr.f32.gmra.mrb[0].mxu0 %v2881
  %v2951 = vpop.f32.mrb[0].mxu0
  %v2952 = vadd.f32 0.0, %v2951
  %v2953 = vpop.f32.mrb[0].mxu0
  %2954 = vdwg.mxu0
  %v2955 = vsel %vm2616, %v2952, -inf
  %2956 = vmax.xlane.f32.xlu0 %v2955
  %v2957 = vpop.xlane.xlu0 %2956
  %v2958 = vsub.f32 %v2952, %v2957
  %v2959 = vmul.f32 %v2958, 1.442695
  %v2960 = vpow.pop %v2959
  %v2961 = vsel %vm2616, %v2960, 0.0
  %2962 = vadd.xlane.f32.xlu0 %v2961
  %v2963 = vpop.xlane.xlu0 %2962
  %v2964 = vrcp.pop %v2963
  %v2965 = vmul.f32 %v2960, %v2964
  %2966 = vrot.lane.b32.xlu0 %v2538, 80
  %v2967 = vpop.permute.xlu0 %2966
  %v2970 = vsel %vm142, %v2965, 0
  %2972 = vmatprep.subr.mxu0 0.0
  %2973 = vmatpush1.msra.mxu0 %v2967
  %2974 = vmatprep.subr.mxu0 0.0
  %2975 = vmatpush1.msra.mxu0 0.0
  %2976 = vmatprep.subr.mxu0 0.0
  %2977 = vmatpush1.msra.mxu0 0.0
  %2978 = vmatprep.subr.mxu0 0.0
  %2979 = vmatpush1.msra.mxu0 0.0
  %2980 = vmatprep.subr.mxu0 0.0
  %2981 = vmatpush1.msra.mxu0 0.0
  %2982 = vmatprep.subr.mxu0 0.0
  %2983 = vmatpush1.msra.mxu0 0.0
  %2984 = vmatprep.subr.mxu0 0.0
  %2985 = vmatpush1.msra.mxu0 0.0
  %2986 = vmatprep.subr.mxu0 0.0
  %2987 = vmatpush1.msra.mxu0 0.0
  %2988 = vmatprep.subr.mxu0 0.0
  %2989 = vmatpush1.msra.mxu0 0.0
  %2990 = vmatprep.subr.mxu0 0.0
  %2991 = vmatpush1.msra.mxu0 0.0
  %2992 = vmatprep.subr.mxu0 0.0
  %2993 = vmatpush1.msra.mxu0 0.0
  %2994 = vmatprep.subr.mxu0 0.0
  %2995 = vmatpush1.msra.mxu0 0.0
  %2996 = vmatprep.subr.mxu0 0.0
  %2997 = vmatpush1.msra.mxu0 0.0
  %2998 = vmatprep.subr.mxu0 0.0
  %2999 = vmatpush1.msra.mxu0 0.0
  %3000 = vmatprep.subr.mxu0 0.0
  %3001 = vmatpush1.msra.mxu0 0.0
  %3002 = vmatprep.subr.mxu0 0.0
  %3003 = vmatpush1.msra.mxu0 0.0
  %3004 = vmatprep.subr.mxu0 0.0
  %3005 = vmatpush1.msra.mxu0 0.0
  %3006 = vmatprep.subr.mxu0 0.0
  %3007 = vmatpush1.msra.mxu0 0.0
  %3008 = vmatprep.subr.mxu0 0.0
  %3009 = vmatpush1.msra.mxu0 0.0
  %3010 = vmatprep.subr.mxu0 0.0
  %3011 = vmatpush1.msra.mxu0 0.0
  %3012 = vmatprep.subr.mxu0 0.0
  %3013 = vmatpush1.msra.mxu0 0.0
  %3014 = vmatprep.subr.mxu0 0.0
  %3015 = vmatpush1.msra.mxu0 0.0
  %3016 = vmatprep.subr.mxu0 0.0
  %3017 = vmatpush1.msra.mxu0 0.0
  %3018 = vmatprep.subr.mxu0 0.0
  %3019 = vmatpush1.msra.mxu0 0.0
  %3020 = vmatprep.subr.mxu0 0.0
  %3021 = vmatpush1.msra.mxu0 0.0
  %3022 = vmatprep.subr.mxu0 0.0
  %3023 = vmatpush1.msra.mxu0 0.0
  %3024 = vmatprep.subr.mxu0 0.0
  %3025 = vmatpush1.msra.mxu0 0.0
  %3026 = vmatprep.subr.mxu0 0.0
  %3027 = vmatpush1.msra.mxu0 0.0
  %3028 = vmatprep.subr.mxu0 0.0
  %3029 = vmatpush1.msra.mxu0 0.0
  %3030 = vmatprep.subr.mxu0 0.0
  %3031 = vmatpush1.msra.mxu0 0.0
  %3032 = vmatprep.subr.mxu0 0.0
  %3033 = vmatpush1.msra.mxu0 0.0
  %3034 = vmatprep.subr.mxu0 0.0
  %3035 = vmatpush1.msra.mxu0 0.0
  %3036 = vmatprep.mubr.f32.mxu0 0.0
  %3037 = vmatmul.mubr.f32.gmra.mrb[0].mxu0 %v2970
  %v3038 = vpop.f32.mrb[0].mxu0
  %v3039 = vadd.f32 0.0, %v3038
  %v3040 = vpop.f32.mrb[0].mxu0
  %3041 = vdwg.mxu0
  %3043 = vrot.lane.b32.xlu0 %v3039, 16
  %v3044 = vpop.permute.xlu0 %3043
  %vm3046 = vcmask 188544
  %3047 = vst.msk [vmem:[#allocation2] sm:$0x1] %vm3046, %v3044
  %3048 = vrot.lane.b32.xlu0 %v2539, 104
  %v3049 = vpop.permute.xlu0 %3048
  %3050 = vrot.lane.b32.xlu0 %v2529, 104
  %v3051 = vpop.permute.xlu0 %3050
  %v3052 = vsel %vm142, %v3049, 0
  %v3054 = vsel %vm142, %v3051, 0
  %3056 = vmatprep.subr.mxu0 0.0
  %3057 = vmatpush1.xpose.msra.mxu0 %v3054
  %3058 = vmatprep.subr.mxu0 0.0
  %3059 = vmatpush1.xpose.msra.mxu0 0.0
  %3060 = vmatprep.subr.mxu0 0.0
  %3061 = vmatpush1.xpose.msra.mxu0 0.0
  %3062 = vmatprep.subr.mxu0 0.0
  %3063 = vmatpush1.xpose.msra.mxu0 0.0
  %3064 = vmatprep.subr.mxu0 0.0
  %3065 = vmatpush1.xpose.msra.mxu0 0.0
  %3066 = vmatprep.subr.mxu0 0.0
  %3067 = vmatpush1.xpose.msra.mxu0 0.0
  %3068 = vmatprep.subr.mxu0 0.0
  %3069 = vmatpush1.xpose.msra.mxu0 0.0
  %3070 = vmatprep.subr.mxu0 0.0
  %3071 = vmatpush1.xpose.msra.mxu0 0.0
  %3072 = vmatprep.subr.mxu0 0.0
  %3073 = vmatpush1.xpose.msra.mxu0 0.0
  %3074 = vmatprep.subr.mxu0 0.0
  %3075 = vmatpush1.xpose.msra.mxu0 0.0
  %3076 = vmatprep.subr.mxu0 0.0
  %3077 = vmatpush1.xpose.msra.mxu0 0.0
  %3078 = vmatprep.subr.mxu0 0.0
  %3079 = vmatpush1.xpose.msra.mxu0 0.0
  %3080 = vmatprep.subr.mxu0 0.0
  %3081 = vmatpush1.xpose.msra.mxu0 0.0
  %3082 = vmatprep.subr.mxu0 0.0
  %3083 = vmatpush1.xpose.msra.mxu0 0.0
  %3084 = vmatprep.subr.mxu0 0.0
  %3085 = vmatpush1.xpose.msra.mxu0 0.0
  %3086 = vmatprep.subr.mxu0 0.0
  %3087 = vmatpush1.xpose.msra.mxu0 0.0
  %3088 = vmatprep.subr.mxu0 0.0
  %3089 = vmatpush1.xpose.msra.mxu0 0.0
  %3090 = vmatprep.subr.mxu0 0.0
  %3091 = vmatpush1.xpose.msra.mxu0 0.0
  %3092 = vmatprep.subr.mxu0 0.0
  %3093 = vmatpush1.xpose.msra.mxu0 0.0
  %3094 = vmatprep.subr.mxu0 0.0
  %3095 = vmatpush1.xpose.msra.mxu0 0.0
  %3096 = vmatprep.subr.mxu0 0.0
  %3097 = vmatpush1.xpose.msra.mxu0 0.0
  %3098 = vmatprep.subr.mxu0 0.0
  %3099 = vmatpush1.xpose.msra.mxu0 0.0
  %3100 = vmatprep.subr.mxu0 0.0
  %3101 = vmatpush1.xpose.msra.mxu0 0.0
  %3102 = vmatprep.subr.mxu0 0.0
  %3103 = vmatpush1.xpose.msra.mxu0 0.0
  %3104 = vmatprep.subr.mxu0 0.0
  %3105 = vmatpush1.xpose.msra.mxu0 0.0
  %3106 = vmatprep.subr.mxu0 0.0
  %3107 = vmatpush1.xpose.msra.mxu0 0.0
  %3108 = vmatprep.subr.mxu0 0.0
  %3109 = vmatpush1.xpose.msra.mxu0 0.0
  %3110 = vmatprep.subr.mxu0 0.0
  %3111 = vmatpush1.xpose.msra.mxu0 0.0
  %3112 = vmatprep.subr.mxu0 0.0
  %3113 = vmatpush1.xpose.msra.mxu0 0.0
  %3114 = vmatprep.subr.mxu0 0.0
  %3115 = vmatpush1.xpose.msra.mxu0 0.0
  %3116 = vmatprep.subr.mxu0 0.0
  %3117 = vmatpush1.xpose.msra.mxu0 0.0
  %3118 = vmatprep.subr.mxu0 0.0
  %3119 = vmatpush1.xpose.msra.mxu0 0.0
  %3120 = vmatprep.mubr.f32.mxu0 0.0
  %3121 = vmatmul.mubr.f32.gmra.mrb[0].mxu0 %v3052
  %v3122 = vpop.f32.mrb[0].mxu0
  %v3123 = vadd.f32 0.0, %v3122
  %v3124 = vpop.f32.mrb[0].mxu0
  %3125 = vdwg.mxu0
  %v3126 = vsel %vm2616, %v3123, -inf
  %3127 = vmax.xlane.f32.xlu0 %v3126
  %v3128 = vpop.xlane.xlu0 %3127
  %v3129 = vsub.f32 %v3123, %v3128
  %v3130 = vmul.f32 %v3129, 1.442695
  %v3131 = vpow.pop %v3130
  %v3132 = vsel %vm2616, %v3131, 0.0
  %3133 = vadd.xlane.f32.xlu0 %v3132
  %v3134 = vpop.xlane.xlu0 %3133
  %v3135 = vrcp.pop %v3134
  %v3136 = vmul.f32 %v3131, %v3135
  %3137 = vrot.lane.b32.xlu0 %v2538, 72
  %v3138 = vpop.permute.xlu0 %3137
  %v3141 = vsel %vm142, %v3136, 0
  %3143 = vmatprep.subr.mxu0 0.0
  %3144 = vmatpush1.msra.mxu0 %v3138
  %3145 = vmatprep.subr.mxu0 0.0
  %3146 = vmatpush1.msra.mxu0 0.0
  %3147 = vmatprep.subr.mxu0 0.0
  %3148 = vmatpush1.msra.mxu0 0.0
  %3149 = vmatprep.subr.mxu0 0.0
  %3150 = vmatpush1.msra.mxu0 0.0
  %3151 = vmatprep.subr.mxu0 0.0
  %3152 = vmatpush1.msra.mxu0 0.0
  %3153 = vmatprep.subr.mxu0 0.0
  %3154 = vmatpush1.msra.mxu0 0.0
  %3155 = vmatprep.subr.mxu0 0.0
  %3156 = vmatpush1.msra.mxu0 0.0
  %3157 = vmatprep.subr.mxu0 0.0
  %3158 = vmatpush1.msra.mxu0 0.0
  %3159 = vmatprep.subr.mxu0 0.0
  %3160 = vmatpush1.msra.mxu0 0.0
  %3161 = vmatprep.subr.mxu0 0.0
  %3162 = vmatpush1.msra.mxu0 0.0
  %3163 = vmatprep.subr.mxu0 0.0
  %3164 = vmatpush1.msra.mxu0 0.0
  %3165 = vmatprep.subr.mxu0 0.0
  %3166 = vmatpush1.msra.mxu0 0.0
  %3167 = vmatprep.subr.mxu0 0.0
  %3168 = vmatpush1.msra.mxu0 0.0
  %3169 = vmatprep.subr.mxu0 0.0
  %3170 = vmatpush1.msra.mxu0 0.0
  %3171 = vmatprep.subr.mxu0 0.0
  %3172 = vmatpush1.msra.mxu0 0.0
  %3173 = vmatprep.subr.mxu0 0.0
  %3174 = vmatpush1.msra.mxu0 0.0
  %3175 = vmatprep.subr.mxu0 0.0
  %3176 = vmatpush1.msra.mxu0 0.0
  %3177 = vmatprep.subr.mxu0 0.0
  %3178 = vmatpush1.msra.mxu0 0.0
  %3179 = vmatprep.subr.mxu0 0.0
  %3180 = vmatpush1.msra.mxu0 0.0
  %3181 = vmatprep.subr.mxu0 0.0
  %3182 = vmatpush1.msra.mxu0 0.0
  %3183 = vmatprep.subr.mxu0 0.0
  %3184 = vmatpush1.msra.mxu0 0.0
  %3185 = vmatprep.subr.mxu0 0.0
  %3186 = vmatpush1.msra.mxu0 0.0
  %3187 = vmatprep.subr.mxu0 0.0
  %3188 = vmatpush1.msra.mxu0 0.0
  %3189 = vmatprep.subr.mxu0 0.0
  %3190 = vmatpush1.msra.mxu0 0.0
  %3191 = vmatprep.subr.mxu0 0.0
  %3192 = vmatpush1.msra.mxu0 0.0
  %3193 = vmatprep.subr.mxu0 0.0
  %3194 = vmatpush1.msra.mxu0 0.0
  %3195 = vmatprep.subr.mxu0 0.0
  %3196 = vmatpush1.msra.mxu0 0.0
  %3197 = vmatprep.subr.mxu0 0.0
  %3198 = vmatpush1.msra.mxu0 0.0
  %3199 = vmatprep.subr.mxu0 0.0
  %3200 = vmatpush1.msra.mxu0 0.0
  %3201 = vmatprep.subr.mxu0 0.0
  %3202 = vmatpush1.msra.mxu0 0.0
  %3203 = vmatprep.subr.mxu0 0.0
  %3204 = vmatpush1.msra.mxu0 0.0
  %3205 = vmatprep.subr.mxu0 0.0
  %3206 = vmatpush1.msra.mxu0 0.0
  %3207 = vmatprep.mubr.f32.mxu0 0.0
  %3208 = vmatmul.mubr.f32.gmra.mrb[0].mxu0 %v3141
  %v3209 = vpop.f32.mrb[0].mxu0
  %v3210 = vadd.f32 0.0, %v3209
  %v3211 = vpop.f32.mrb[0].mxu0
  %3212 = vdwg.mxu0
  %3214 = vrot.lane.b32.xlu0 %v3210, 24
  %v3215 = vpop.permute.xlu0 %3214
  %vm3217 = vcmask 254144
  %3218 = vst.msk [vmem:[#allocation2] sm:$0x1] %vm3217, %v3215
  %v3219 = vld [vmem:[#allocation2] sm:$0x1]
  %v3220 = vld [vmem:[%s10] sm:$0xff]
  %v3221 = vld [vmem:[%s10 + $0x8] sm:$0xff]
  %v3222 = vld [vmem:[%s10 + $0x10] sm:$0xff]
  %v3223 = vld [vmem:[%s10 + $0x18] sm:$0xff]
  %v3224 = vrot.slane %v2266, 7
  %v3227 = vsel %vm64, %v3219, 0
  %3229 = vmatprep.subr.mxu0 0.0
  %3230 = vmatpush1.msra.mxu0 %v3220
  %3231 = vmatprep.subr.mxu0 0.0
  %3232 = vmatpush1.msra.mxu0 %v3221
  %3233 = vmatprep.subr.mxu0 0.0
  %3234 = vmatpush1.msra.mxu0 %v3222
  %3235 = vmatprep.subr.mxu0 0.0
  %3236 = vmatpush1.msra.mxu0 %v3223
  %3237 = vmatprep.subr.mxu0 0.0
  %3238 = vmatpush1.msra.mxu0 0.0
  %3239 = vmatprep.subr.mxu0 0.0
  %3240 = vmatpush1.msra.mxu0 0.0
  %3241 = vmatprep.subr.mxu0 0.0
  %3242 = vmatpush1.msra.mxu0 0.0
  %3243 = vmatprep.subr.mxu0 0.0
  %3244 = vmatpush1.msra.mxu0 0.0
  %3245 = vmatprep.subr.mxu0 0.0
  %3246 = vmatpush1.msra.mxu0 0.0
  %3247 = vmatprep.subr.mxu0 0.0
  %3248 = vmatpush1.msra.mxu0 0.0
  %3249 = vmatprep.subr.mxu0 0.0
  %3250 = vmatpush1.msra.mxu0 0.0
  %3251 = vmatprep.subr.mxu0 0.0
  %3252 = vmatpush1.msra.mxu0 0.0
  %3253 = vmatprep.subr.mxu0 0.0
  %3254 = vmatpush1.msra.mxu0 0.0
  %3255 = vmatprep.subr.mxu0 0.0
  %3256 = vmatpush1.msra.mxu0 0.0
  %3257 = vmatprep.subr.mxu0 0.0
  %3258 = vmatpush1.msra.mxu0 0.0
  %3259 = vmatprep.subr.mxu0 0.0
  %3260 = vmatpush1.msra.mxu0 0.0
  %3261 = vmatprep.subr.mxu0 0.0
  %3262 = vmatpush1.msra.mxu0 0.0
  %3263 = vmatprep.subr.mxu0 0.0
  %3264 = vmatpush1.msra.mxu0 0.0
  %3265 = vmatprep.subr.mxu0 0.0
  %3266 = vmatpush1.msra.mxu0 0.0
  %3267 = vmatprep.subr.mxu0 0.0
  %3268 = vmatpush1.msra.mxu0 0.0
  %3269 = vmatprep.subr.mxu0 0.0
  %3270 = vmatpush1.msra.mxu0 0.0
  %3271 = vmatprep.subr.mxu0 0.0
  %3272 = vmatpush1.msra.mxu0 0.0
  %3273 = vmatprep.subr.mxu0 0.0
  %3274 = vmatpush1.msra.mxu0 0.0
  %3275 = vmatprep.subr.mxu0 0.0
  %3276 = vmatpush1.msra.mxu0 0.0
  %3277 = vmatprep.subr.mxu0 0.0
  %3278 = vmatpush1.msra.mxu0 0.0
  %3279 = vmatprep.subr.mxu0 0.0
  %3280 = vmatpush1.msra.mxu0 0.0
  %3281 = vmatprep.subr.mxu0 0.0
  %3282 = vmatpush1.msra.mxu0 0.0
  %3283 = vmatprep.subr.mxu0 0.0
  %3284 = vmatpush1.msra.mxu0 0.0
  %3285 = vmatprep.subr.mxu0 0.0
  %3286 = vmatpush1.msra.mxu0 0.0
  %3287 = vmatprep.subr.mxu0 0.0
  %3288 = vmatpush1.msra.mxu0 0.0
  %3289 = vmatprep.subr.mxu0 0.0
  %3290 = vmatpush1.msra.mxu0 0.0
  %3291 = vmatprep.subr.mxu0 0.0
  %3292 = vmatpush1.msra.mxu0 0.0
  %3293 = vmatprep.mubr.f32.mxu0 0.0
  %3294 = vmatmul.mubr.f32.gmra.mrb[0].mxu0 %v3227
  %v3295 = vpop.f32.mrb[0].mxu0
  %v3296 = vadd.f32 %v3224, %v3295
  %v3297 = vpop.f32.mrb[0].mxu0
  %3298 = vdwg.mxu0
  %v3299 = vadd.f32 %v3296, %v2445
  %v3300 = vsel %vm2426, %v3299, 0.0
  %3301 = vadd.xlane.f32.xlu0 %v3300
  %v3302 = vpop.xlane.xlu0 %3301
  %v3303 = vmul.f32 %v3302, %v905
  %v3304 = vsub.f32 %v3299, %v3303
  %v3305 = vmul.f32 %v3304, %v3304
  %v3306 = vsel %vm2426, %v3305, 0.0
  %3307 = vadd.xlane.f32.xlu0 %v3306
  %v3308 = vpop.xlane.xlu0 %3307
  %v3309 = vmul.f32 %v3308, %v905
  %v3310 = vadd.f32 %v3309, 1e-05
  %v3311 = vrsqrt.pop %v3310
  %v3312 = vmul.f32 %v3304, %v3311
  %v3313 = vmul.f32 %v3312, %v2267
  %v3315 = vrot.slane %v2267, 1
  %v3317 = vadd.f32 %v3313, %v3315
  %v3318 = vld [vmem:[%s11] sm:$0xff]
  %v3319 = vld [vmem:[%s11 + $0x8] sm:$0xff]
  %v3320 = vld [vmem:[%s11 + $0x10] sm:$0xff]
  %v3321 = vld [vmem:[%s11 + $0x18] sm:$0xff]
  %v3322 = vrot.slane %v2267, 2
  %v3325 = vsel %vm64, %v3317, 0
  %3327 = vmatprep.subr.mxu0 0.0
  %3328 = vmatpush1.msra.mxu0 %v3318
  %3329 = vmatprep.subr.mxu0 0.0
  %3330 = vmatpush1.msra.mxu0 %v3319
  %3331 = vmatprep.subr.mxu0 0.0
  %3332 = vmatpush1.msra.mxu0 %v3320
  %3333 = vmatprep.subr.mxu0 0.0
  %3334 = vmatpush1.msra.mxu0 %v3321
  %3335 = vmatprep.subr.mxu0 0.0
  %3336 = vmatpush1.msra.mxu0 0.0
  %3337 = vmatprep.subr.mxu0 0.0
  %3338 = vmatpush1.msra.mxu0 0.0
  %3339 = vmatprep.subr.mxu0 0.0
  %3340 = vmatpush1.msra.mxu0 0.0
  %3341 = vmatprep.subr.mxu0 0.0
  %3342 = vmatpush1.msra.mxu0 0.0
  %3343 = vmatprep.subr.mxu0 0.0
  %3344 = vmatpush1.msra.mxu0 0.0
  %3345 = vmatprep.subr.mxu0 0.0
  %3346 = vmatpush1.msra.mxu0 0.0
  %3347 = vmatprep.subr.mxu0 0.0
  %3348 = vmatpush1.msra.mxu0 0.0
  %3349 = vmatprep.subr.mxu0 0.0
  %3350 = vmatpush1.msra.mxu0 0.0
  %3351 = vmatprep.subr.mxu0 0.0
  %3352 = vmatpush1.msra.mxu0 0.0
  %3353 = vmatprep.subr.mxu0 0.0
  %3354 = vmatpush1.msra.mxu0 0.0
  %3355 = vmatprep.subr.mxu0 0.0
  %3356 = vmatpush1.msra.mxu0 0.0
  %3357 = vmatprep.subr.mxu0 0.0
  %3358 = vmatpush1.msra.mxu0 0.0
  %3359 = vmatprep.subr.mxu0 0.0
  %3360 = vmatpush1.msra.mxu0 0.0
  %3361 = vmatprep.subr.mxu0 0.0
  %3362 = vmatpush1.msra.mxu0 0.0
  %3363 = vmatprep.subr.mxu0 0.0
  %3364 = vmatpush1.msra.mxu0 0.0
  %3365 = vmatprep.subr.mxu0 0.0
  %3366 = vmatpush1.msra.mxu0 0.0
  %3367 = vmatprep.subr.mxu0 0.0
  %3368 = vmatpush1.msra.mxu0 0.0
  %3369 = vmatprep.subr.mxu0 0.0
  %3370 = vmatpush1.msra.mxu0 0.0
  %3371 = vmatprep.subr.mxu0 0.0
  %3372 = vmatpush1.msra.mxu0 0.0
  %3373 = vmatprep.subr.mxu0 0.0
  %3374 = vmatpush1.msra.mxu0 0.0
  %3375 = vmatprep.subr.mxu0 0.0
  %3376 = vmatpush1.msra.mxu0 0.0
  %3377 = vmatprep.subr.mxu0 0.0
  %3378 = vmatpush1.msra.mxu0 0.0
  %3379 = vmatprep.subr.mxu0 0.0
  %3380 = vmatpush1.msra.mxu0 0.0
  %3381 = vmatprep.subr.mxu0 0.0
  %3382 = vmatpush1.msra.mxu0 0.0
  %3383 = vmatprep.subr.mxu0 0.0
  %3384 = vmatpush1.msra.mxu0 0.0
  %3385 = vmatprep.subr.mxu0 0.0
  %3386 = vmatpush1.msra.mxu0 0.0
  %3387 = vmatprep.subr.mxu0 0.0
  %3388 = vmatpush1.msra.mxu0 0.0
  %3389 = vmatprep.subr.mxu0 0.0
  %3390 = vmatpush1.msra.mxu0 0.0
  %3391 = vmatprep.mubr.f32.mxu0 0.0
  %3392 = vmatmul.mubr.f32.gmra.mrb[0].mxu0 %v3325
  %v3393 = vpop.f32.mrb[0].mxu0
  %v3394 = vadd.f32 %v3322, %v3393
  %v3395 = vpop.f32.mrb[0].mxu0
  %3396 = vdwg.mxu0
  %v3397 = vmax.f32 %v3394, 0.0
  %v3398 = vld [vmem:[%s12] sm:$0xff]
  %v3399 = vld [vmem:[%s12 + $0x8] sm:$0xff]
  %v3400 = vld [vmem:[%s12 + $0x10] sm:$0xff]
  %v3401 = vld [vmem:[%s12 + $0x18] sm:$0xff]
  %v3402 = vld [vmem:[%s12 + $0x20] sm:$0xff]
  %v3403 = vld [vmem:[%s12 + $0x28] sm:$0xff]
  %v3404 = vld [vmem:[%s12 + $0x30] sm:$0xff]
  %v3405 = vld [vmem:[%s12 + $0x38] sm:$0xff]
  %v3406 = vld [vmem:[%s12 + $0x40] sm:$0xff]
  %v3407 = vld [vmem:[%s12 + $0x48] sm:$0xff]
  %v3408 = vld [vmem:[%s12 + $0x50] sm:$0xff]
  %v3409 = vld [vmem:[%s12 + $0x58] sm:$0xff]
  %v3410 = vld [vmem:[%s12 + $0x60] sm:$0xff]
  %v3411 = vld [vmem:[%s12 + $0x68] sm:$0xff]
  %v3412 = vld [vmem:[%s12 + $0x70] sm:$0xff]
  %v3413 = vld [vmem:[%s12 + $0x78] sm:$0xff]
  %v3414 = vrot.slane %v2267, 3
  %3416 = vmatprep.subr.mxu0 0.0
  %3417 = vmatpush1.msra.mxu0 %v3398
  %3418 = vmatprep.subr.mxu0 0.0
  %3419 = vmatpush1.msra.mxu0 %v3399
  %3420 = vmatprep.subr.mxu0 0.0
  %3421 = vmatpush1.msra.mxu0 %v3400
  %3422 = vmatprep.subr.mxu0 0.0
  %3423 = vmatpush1.msra.mxu0 %v3401
  %3424 = vmatprep.subr.mxu0 0.0
  %3425 = vmatpush1.msra.mxu0 %v3402
  %3426 = vmatprep.subr.mxu0 0.0
  %3427 = vmatpush1.msra.mxu0 %v3403
  %3428 = vmatprep.subr.mxu0 0.0
  %3429 = vmatpush1.msra.mxu0 %v3404
  %3430 = vmatprep.subr.mxu0 0.0
  %3431 = vmatpush1.msra.mxu0 %v3405
  %3432 = vmatprep.subr.mxu0 0.0
  %3433 = vmatpush1.msra.mxu0 %v3406
  %3434 = vmatprep.subr.mxu0 0.0
  %3435 = vmatpush1.msra.mxu0 %v3407
  %3436 = vmatprep.subr.mxu0 0.0
  %3437 = vmatpush1.msra.mxu0 %v3408
  %3438 = vmatprep.subr.mxu0 0.0
  %3439 = vmatpush1.msra.mxu0 %v3409
  %3440 = vmatprep.subr.mxu0 0.0
  %3441 = vmatpush1.msra.mxu0 %v3410
  %3442 = vmatprep.subr.mxu0 0.0
  %3443 = vmatpush1.msra.mxu0 %v3411
  %3444 = vmatprep.subr.mxu0 0.0
  %3445 = vmatpush1.msra.mxu0 %v3412
  %3446 = vmatprep.subr.mxu0 0.0
  %3447 = vmatpush1.msra.mxu0 %v3413
  %3448 = vmatprep.subr.mxu0 0.0
  %3449 = vmatpush1.msra.mxu0 0.0
  %3450 = vmatprep.subr.mxu0 0.0
  %3451 = vmatpush1.msra.mxu0 0.0
  %3452 = vmatprep.subr.mxu0 0.0
  %3453 = vmatpush1.msra.mxu0 0.0
  %3454 = vmatprep.subr.mxu0 0.0
  %3455 = vmatpush1.msra.mxu0 0.0
  %3456 = vmatprep.subr.mxu0 0.0
  %3457 = vmatpush1.msra.mxu0 0.0
  %3458 = vmatprep.subr.mxu0 0.0
  %3459 = vmatpush1.msra.mxu0 0.0
  %3460 = vmatprep.subr.mxu0 0.0
  %3461 = vmatpush1.msra.mxu0 0.0
  %3462 = vmatprep.subr.mxu0 0.0
  %3463 = vmatpush1.msra.mxu0 0.0
  %3464 = vmatprep.subr.mxu0 0.0
  %3465 = vmatpush1.msra.mxu0 0.0
  %3466 = vmatprep.subr.mxu0 0.0
  %3467 = vmatpush1.msra.mxu0 0.0
  %3468 = vmatprep.subr.mxu0 0.0
  %3469 = vmatpush1.msra.mxu0 0.0
  %3470 = vmatprep.subr.mxu0 0.0
  %3471 = vmatpush1.msra.mxu0 0.0
  %3472 = vmatprep.subr.mxu0 0.0
  %3473 = vmatpush1.msra.mxu0 0.0
  %3474 = vmatprep.subr.mxu0 0.0
  %3475 = vmatpush1.msra.mxu0 0.0
  %3476 = vmatprep.subr.mxu0 0.0
  %3477 = vmatpush1.msra.mxu0 0.0
  %3478 = vmatprep.subr.mxu0 0.0
  %3479 = vmatpush1.msra.mxu0 0.0
  %3480 = vmatprep.mubr.f32.mxu0 0.0
  %3481 = vmatmul.mubr.f32.gmra.mrb[0].mxu0 %v3397
  %v3482 = vpop.f32.mrb[0].mxu0
  %v3483 = vadd.f32 %v3414, %v3482
  %v3484 = vpop.f32.mrb[0].mxu0
  %3485 = vdwg.mxu0
  %v3486 = vadd.f32 %v3483, %v3317
  %v3487 = vsel %vm2426, %v3486, 0.0
  %3488 = vadd.xlane.f32.xlu0 %v3487
  %v3489 = vpop.xlane.xlu0 %3488
  %v3490 = vmul.f32 %v3489, %v905
  %v3491 = vsub.f32 %v3486, %v3490
  %v3492 = vmul.f32 %v3491, %v3491
  %v3493 = vsel %vm2426, %v3492, 0.0
  %3494 = vadd.xlane.f32.xlu0 %v3493
  %v3495 = vpop.xlane.xlu0 %3494
  %v3496 = vmul.f32 %v3495, %v905
  %v3497 = vadd.f32 %v3496, 1e-05
  %v3498 = vrsqrt.pop %v3497
  %v3499 = vmul.f32 %v3491, %v3498
  %v3500 = vrot.slane %v2267, 4
  %v3502 = vmul.f32 %v3499, %v3500
  %v3503 = vrot.slane %v2267, 5
  %v3505 = vadd.f32 %v3502, %v3503
  %s3506 = scalar_lea.vmem %s13, 16
  %v3507 = vld [vmem:[%s3506] sm:$0xff]
  %v3508 = vld [vmem:[%s3506 + $0x8] sm:$0x3f]
  %s3509 = scalar_lea.vmem %s6, 32
  %v3510 = vld [vmem:[%s3509] sm:$0xff]
  %v3511 = vld [vmem:[%s3509 + $0x8] sm:$0xff]
  %v3512 = vld [vmem:[%s3509 + $0x10] sm:$0xff]
  %v3513 = vld [vmem:[%s3509 + $0x18] sm:$0xff]
  %v3515 = vsel %vm64, %v3505, 0
  %3517 = vmatprep.subr.mxu0 0.0
  %3518 = vmatpush1.msra.mxu0 %v3510
  %3519 = vmatprep.subr.mxu0 0.0
  %3520 = vmatpush1.msra.mxu0 %v3511
  %3521 = vmatprep.subr.mxu0 0.0
  %3522 = vmatpush1.msra.mxu0 %v3512
  %3523 = vmatprep.subr.mxu0 0.0
  %3524 = vmatpush1.msra.mxu0 %v3513
  %3525 = vmatprep.subr.mxu0 0.0
  %3526 = vmatpush1.msra.mxu0 0.0
  %3527 = vmatprep.subr.mxu0 0.0
  %3528 = vmatpush1.msra.mxu0 0.0
  %3529 = vmatprep.subr.mxu0 0.0
  %3530 = vmatpush1.msra.mxu0 0.0
  %3531 = vmatprep.subr.mxu0 0.0
  %3532 = vmatpush1.msra.mxu0 0.0
  %3533 = vmatprep.subr.mxu0 0.0
  %3534 = vmatpush1.msra.mxu0 0.0
  %3535 = vmatprep.subr.mxu0 0.0
  %3536 = vmatpush1.msra.mxu0 0.0
  %3537 = vmatprep.subr.mxu0 0.0
  %3538 = vmatpush1.msra.mxu0 0.0
  %3539 = vmatprep.subr.mxu0 0.0
  %3540 = vmatpush1.msra.mxu0 0.0
  %3541 = vmatprep.subr.mxu0 0.0
  %3542 = vmatpush1.msra.mxu0 0.0
  %3543 = vmatprep.subr.mxu0 0.0
  %3544 = vmatpush1.msra.mxu0 0.0
  %3545 = vmatprep.subr.mxu0 0.0
  %3546 = vmatpush1.msra.mxu0 0.0
  %3547 = vmatprep.subr.mxu0 0.0
  %3548 = vmatpush1.msra.mxu0 0.0
  %3549 = vmatprep.subr.mxu0 0.0
  %3550 = vmatpush1.msra.mxu0 0.0
  %3551 = vmatprep.subr.mxu0 0.0
  %3552 = vmatpush1.msra.mxu0 0.0
  %3553 = vmatprep.subr.mxu0 0.0
  %3554 = vmatpush1.msra.mxu0 0.0
  %3555 = vmatprep.subr.mxu0 0.0
  %3556 = vmatpush1.msra.mxu0 0.0
  %3557 = vmatprep.subr.mxu0 0.0
  %3558 = vmatpush1.msra.mxu0 0.0
  %3559 = vmatprep.subr.mxu0 0.0
  %3560 = vmatpush1.msra.mxu0 0.0
  %3561 = vmatprep.subr.mxu0 0.0
  %3562 = vmatpush1.msra.mxu0 0.0
  %3563 = vmatprep.subr.mxu0 0.0
  %3564 = vmatpush1.msra.mxu0 0.0
  %3565 = vmatprep.subr.mxu0 0.0
  %3566 = vmatpush1.msra.mxu0 0.0
  %3567 = vmatprep.subr.mxu0 0.0
  %3568 = vmatpush1.msra.mxu0 0.0
  %3569 = vmatprep.subr.mxu0 0.0
  %3570 = vmatpush1.msra.mxu0 0.0
  %3571 = vmatprep.subr.mxu0 0.0
  %3572 = vmatpush1.msra.mxu0 0.0
  %3573 = vmatprep.subr.mxu0 0.0
  %3574 = vmatpush1.msra.mxu0 0.0
  %3575 = vmatprep.subr.mxu0 0.0
  %3576 = vmatpush1.msra.mxu0 0.0
  %3577 = vmatprep.subr.mxu0 0.0
  %3578 = vmatpush1.msra.mxu0 0.0
  %3579 = vmatprep.subr.mxu0 0.0
  %3580 = vmatpush1.msra.mxu0 0.0
  %3581 = vmatprep.mubr.f32.mxu0 0.0
  %3582 = vmatmul.mubr.f32.gmra.mrb[0].mxu0 %v3515
  %v3583 = vpop.f32.mrb[0].mxu0
  %v3584 = vadd.f32 %v3507, %v3583
  %v3585 = vpop.f32.mrb[0].mxu0
  %3586 = vdwg.mxu0
  %s3587 = scalar_lea.vmem %s7, 32
  %v3588 = vld [vmem:[%s3587] sm:$0xff]
  %v3589 = vld [vmem:[%s3587 + $0x8] sm:$0xff]
  %v3590 = vld [vmem:[%s3587 + $0x10] sm:$0xff]
  %v3591 = vld [vmem:[%s3587 + $0x18] sm:$0xff]
  %v3593 = vrot.slane %v3507, 1
  %v3596 = vsel %vm64, %v3584, 0
  %3598 = vmatprep.subr.mxu0 0.0
  %3599 = vmatpush1.msra.mxu0 %v3588
  %3600 = vmatprep.subr.mxu0 0.0
  %3601 = vmatpush1.msra.mxu0 %v3589
  %3602 = vmatprep.subr.mxu0 0.0
  %3603 = vmatpush1.msra.mxu0 %v3590
  %3604 = vmatprep.subr.mxu0 0.0
  %3605 = vmatpush1.msra.mxu0 %v3591
  %3606 = vmatprep.subr.mxu0 0.0
  %3607 = vmatpush1.msra.mxu0 0.0
  %3608 = vmatprep.subr.mxu0 0.0
  %3609 = vmatpush1.msra.mxu0 0.0
  %3610 = vmatprep.subr.mxu0 0.0
  %3611 = vmatpush1.msra.mxu0 0.0
  %3612 = vmatprep.subr.mxu0 0.0
  %3613 = vmatpush1.msra.mxu0 0.0
  %3614 = vmatprep.subr.mxu0 0.0
  %3615 = vmatpush1.msra.mxu0 0.0
  %3616 = vmatprep.subr.mxu0 0.0
  %3617 = vmatpush1.msra.mxu0 0.0
  %3618 = vmatprep.subr.mxu0 0.0
  %3619 = vmatpush1.msra.mxu0 0.0
  %3620 = vmatprep.subr.mxu0 0.0
  %3621 = vmatpush1.msra.mxu0 0.0
  %3622 = vmatprep.subr.mxu0 0.0
  %3623 = vmatpush1.msra.mxu0 0.0
  %3624 = vmatprep.subr.mxu0 0.0
  %3625 = vmatpush1.msra.mxu0 0.0
  %3626 = vmatprep.subr.mxu0 0.0
  %3627 = vmatpush1.msra.mxu0 0.0
  %3628 = vmatprep.subr.mxu0 0.0
  %3629 = vmatpush1.msra.mxu0 0.0
  %3630 = vmatprep.subr.mxu0 0.0
  %3631 = vmatpush1.msra.mxu0 0.0
  %3632 = vmatprep.subr.mxu0 0.0
  %3633 = vmatpush1.msra.mxu0 0.0
  %3634 = vmatprep.subr.mxu0 0.0
  %3635 = vmatpush1.msra.mxu0 0.0
  %3636 = vmatprep.subr.mxu0 0.0
  %3637 = vmatpush1.msra.mxu0 0.0
  %3638 = vmatprep.subr.mxu0 0.0
  %3639 = vmatpush1.msra.mxu0 0.0
  %3640 = vmatprep.subr.mxu0 0.0
  %3641 = vmatpush1.msra.mxu0 0.0
  %3642 = vmatprep.subr.mxu0 0.0
  %3643 = vmatpush1.msra.mxu0 0.0
  %3644 = vmatprep.subr.mxu0 0.0
  %3645 = vmatpush1.msra.mxu0 0.0
  %3646 = vmatprep.subr.mxu0 0.0
  %3647 = vmatpush1.msra.mxu0 0.0
  %3648 = vmatprep.subr.mxu0 0.0
  %3649 = vmatpush1.msra.mxu0 0.0
  %3650 = vmatprep.subr.mxu0 0.0
  %3651 = vmatpush1.msra.mxu0 0.0
  %3652 = vmatprep.subr.mxu0 0.0
  %3653 = vmatpush1.msra.mxu0 0.0
  %3654 = vmatprep.subr.mxu0 0.0
  %3655 = vmatpush1.msra.mxu0 0.0
  %3656 = vmatprep.subr.mxu0 0.0
  %3657 = vmatpush1.msra.mxu0 0.0
  %3658 = vmatprep.subr.mxu0 0.0
  %3659 = vmatpush1.msra.mxu0 0.0
  %3660 = vmatprep.subr.mxu0 0.0
  %3661 = vmatpush1.msra.mxu0 0.0
  %3662 = vmatprep.mubr.f32.mxu0 0.0
  %3663 = vmatmul.mubr.f32.gmra.mrb[0].mxu0 %v3596
  %v3664 = vpop.f32.mrb[0].mxu0
  %v3665 = vadd.f32 %v3593, %v3664
  %v3666 = vpop.f32.mrb[0].mxu0
  %3667 = vdwg.mxu0
  %v3668 = vadd.f32 %v3665, %v3505
  %v3669 = vsel %vm2426, %v3668, 0.0
  %3670 = vadd.xlane.f32.xlu0 %v3669
  %v3671 = vpop.xlane.xlu0 %3670
  %v3672 = vmul.f32 %v3671, %v905
  %v3673 = vsub.f32 %v3668, %v3672
  %v3674 = vmul.f32 %v3673, %v3673
  %v3675 = vsel %vm2426, %v3674, 0.0
  %3676 = vadd.xlane.f32.xlu0 %v3675
  %v3677 = vpop.xlane.xlu0 %3676
  %v3678 = vmul.f32 %v3677, %v905
  %v3679 = vadd.f32 %v3678, 1e-05
  %v3680 = vrsqrt.pop %v3679
  %v3681 = vmul.f32 %v3673, %v3680
  %v3682 = vrot.slane %v3507, 2
  %v3684 = vmul.f32 %v3681, %v3682
  %v3685 = vrot.slane %v3507, 3
  %v3687 = vadd.f32 %v3684, %v3685
  %s3688 = scalar_lea.vmem %s8, 32
  %v3689 = vld [vmem:[%s3688] sm:$0xff]
  %v3690 = vld [vmem:[%s3688 + $0x8] sm:$0xff]
  %v3691 = vld [vmem:[%s3688 + $0x10] sm:$0xff]
  %v3692 = vld [vmem:[%s3688 + $0x18] sm:$0xff]
  %v3693 = vrot.slane %v3507, 4
  %v3696 = vsel %vm64, %v3687, 0
  %3698 = vmatprep.subr.mxu0 0.0
  %3699 = vmatpush1.msra.mxu0 %v3689
  %3700 = vmatprep.subr.mxu0 0.0
  %3701 = vmatpush1.msra.mxu0 %v3690
  %3702 = vmatprep.subr.mxu0 0.0
  %3703 = vmatpush1.msra.mxu0 %v3691
  %3704 = vmatprep.subr.mxu0 0.0
  %3705 = vmatpush1.msra.mxu0 %v3692
  %3706 = vmatprep.subr.mxu0 0.0
  %3707 = vmatpush1.msra.mxu0 0.0
  %3708 = vmatprep.subr.mxu0 0.0
  %3709 = vmatpush1.msra.mxu0 0.0
  %3710 = vmatprep.subr.mxu0 0.0
  %3711 = vmatpush1.msra.mxu0 0.0
  %3712 = vmatprep.subr.mxu0 0.0
  %3713 = vmatpush1.msra.mxu0 0.0
  %3714 = vmatprep.subr.mxu0 0.0
  %3715 = vmatpush1.msra.mxu0 0.0
  %3716 = vmatprep.subr.mxu0 0.0
  %3717 = vmatpush1.msra.mxu0 0.0
  %3718 = vmatprep.subr.mxu0 0.0
  %3719 = vmatpush1.msra.mxu0 0.0
  %3720 = vmatprep.subr.mxu0 0.0
  %3721 = vmatpush1.msra.mxu0 0.0
  %3722 = vmatprep.subr.mxu0 0.0
  %3723 = vmatpush1.msra.mxu0 0.0
  %3724 = vmatprep.subr.mxu0 0.0
  %3725 = vmatpush1.msra.mxu0 0.0
  %3726 = vmatprep.subr.mxu0 0.0
  %3727 = vmatpush1.msra.mxu0 0.0
  %3728 = vmatprep.subr.mxu0 0.0
  %3729 = vmatpush1.msra.mxu0 0.0
  %3730 = vmatprep.subr.mxu0 0.0
  %3731 = vmatpush1.msra.mxu0 0.0
  %3732 = vmatprep.subr.mxu0 0.0
  %3733 = vmatpush1.msra.mxu0 0.0
  %3734 = vmatprep.subr.mxu0 0.0
  %3735 = vmatpush1.msra.mxu0 0.0
  %3736 = vmatprep.subr.mxu0 0.0
  %3737 = vmatpush1.msra.mxu0 0.0
  %3738 = vmatprep.subr.mxu0 0.0
  %3739 = vmatpush1.msra.mxu0 0.0
  %3740 = vmatprep.subr.mxu0 0.0
  %3741 = vmatpush1.msra.mxu0 0.0
  %3742 = vmatprep.subr.mxu0 0.0
  %3743 = vmatpush1.msra.mxu0 0.0
  %3744 = vmatprep.subr.mxu0 0.0
  %3745 = vmatpush1.msra.mxu0 0.0
  %3746 = vmatprep.subr.mxu0 0.0
  %3747 = vmatpush1.msra.mxu0 0.0
  %3748 = vmatprep.subr.mxu0 0.0
  %3749 = vmatpush1.msra.mxu0 0.0
  %3750 = vmatprep.subr.mxu0 0.0
  %3751 = vmatpush1.msra.mxu0 0.0
  %3752 = vmatprep.subr.mxu0 0.0
  %3753 = vmatpush1.msra.mxu0 0.0
  %3754 = vmatprep.subr.mxu0 0.0
  %3755 = vmatpush1.msra.mxu0 0.0
  %3756 = vmatprep.subr.mxu0 0.0
  %3757 = vmatpush1.msra.mxu0 0.0
  %3758 = vmatprep.subr.mxu0 0.0
  %3759 = vmatpush1.msra.mxu0 0.0
  %3760 = vmatprep.subr.mxu0 0.0
  %3761 = vmatpush1.msra.mxu0 0.0
  %3762 = vmatprep.mubr.f32.mxu0 0.0
  %3763 = vmatmul.mubr.f32.gmra.mrb[0].mxu0 %v3696
  %v3764 = vpop.f32.mrb[0].mxu0
  %v3765 = vadd.f32 %v3693, %v3764
  %v3766 = vpop.f32.mrb[0].mxu0
  %3767 = vdwg.mxu0
  %v3768 = vlaneseq
  %v3769 = vshrl.u32 %v3768, 7
  %v3770 = vsub.s32 5, %v3769
  %v3771 = vrot.slane %v3507, %v3770
  %3773 = vrot.lane.b32.xlu0 %v3771, 64
  %v3774 = vpop.permute.xlu0 %3773
  %v3776 = vadd.f32 %v2262, %v3774
  %v3777 = vlaneseq
  %v3778 = vshrl.u32 %v3777, 7
  %v3779 = vsub.s32 6, %v3778
  %v3780 = vrot.slane %v3507, %v3779
  %3782 = vrot.lane.b32.xlu0 %v3780, 96
  %v3783 = vpop.permute.xlu0 %3782
  %v3785 = vadd.f32 %v2262, %v3783
  %v3786 = vmul.f32 %v3765, 0.35355338
  %3788 = vrot.lane.b32.xlu0 %v3776, 64
  %v3789 = vpop.permute.xlu0 %3788
  %v3791 = vsel %vm142, %v3786, 0
  %v3793 = vsel %vm142, %v3789, 0
  %3795 = vmatprep.subr.mxu0 0.0
  %3796 = vmatpush1.xpose.msra.mxu0 %v3793
  %3797 = vmatprep.subr.mxu0 0.0
  %3798 = vmatpush1.xpose.msra.mxu0 0.0
  %3799 = vmatprep.subr.mxu0 0.0
  %3800 = vmatpush1.xpose.msra.mxu0 0.0
  %3801 = vmatprep.subr.mxu0 0.0
  %3802 = vmatpush1.xpose.msra.mxu0 0.0
  %3803 = vmatprep.subr.mxu0 0.0
  %3804 = vmatpush1.xpose.msra.mxu0 0.0
  %3805 = vmatprep.subr.mxu0 0.0
  %3806 = vmatpush1.xpose.msra.mxu0 0.0
  %3807 = vmatprep.subr.mxu0 0.0
  %3808 = vmatpush1.xpose.msra.mxu0 0.0
  %3809 = vmatprep.subr.mxu0 0.0
  %3810 = vmatpush1.xpose.msra.mxu0 0.0
  %3811 = vmatprep.subr.mxu0 0.0
  %3812 = vmatpush1.xpose.msra.mxu0 0.0
  %3813 = vmatprep.subr.mxu0 0.0
  %3814 = vmatpush1.xpose.msra.mxu0 0.0
  %3815 = vmatprep.subr.mxu0 0.0
  %3816 = vmatpush1.xpose.msra.mxu0 0.0
  %3817 = vmatprep.subr.mxu0 0.0
  %3818 = vmatpush1.xpose.msra.mxu0 0.0
  %3819 = vmatprep.subr.mxu0 0.0
  %3820 = vmatpush1.xpose.msra.mxu0 0.0
  %3821 = vmatprep.subr.mxu0 0.0
  %3822 = vmatpush1.xpose.msra.mxu0 0.0
  %3823 = vmatprep.subr.mxu0 0.0
  %3824 = vmatpush1.xpose.msra.mxu0 0.0
  %3825 = vmatprep.subr.mxu0 0.0
  %3826 = vmatpush1.xpose.msra.mxu0 0.0
  %3827 = vmatprep.subr.mxu0 0.0
  %3828 = vmatpush1.xpose.msra.mxu0 0.0
  %3829 = vmatprep.subr.mxu0 0.0
  %3830 = vmatpush1.xpose.msra.mxu0 0.0
  %3831 = vmatprep.subr.mxu0 0.0
  %3832 = vmatpush1.xpose.msra.mxu0 0.0
  %3833 = vmatprep.subr.mxu0 0.0
  %3834 = vmatpush1.xpose.msra.mxu0 0.0
  %3835 = vmatprep.subr.mxu0 0.0
  %3836 = vmatpush1.xpose.msra.mxu0 0.0
  %3837 = vmatprep.subr.mxu0 0.0
  %3838 = vmatpush1.xpose.msra.mxu0 0.0
  %3839 = vmatprep.subr.mxu0 0.0
  %3840 = vmatpush1.xpose.msra.mxu0 0.0
  %3841 = vmatprep.subr.mxu0 0.0
  %3842 = vmatpush1.xpose.msra.mxu0 0.0
  %3843 = vmatprep.subr.mxu0 0.0
  %3844 = vmatpush1.xpose.msra.mxu0 0.0
  %3845 = vmatprep.subr.mxu0 0.0
  %3846 = vmatpush1.xpose.msra.mxu0 0.0
  %3847 = vmatprep.subr.mxu0 0.0
  %3848 = vmatpush1.xpose.msra.mxu0 0.0
  %3849 = vmatprep.subr.mxu0 0.0
  %3850 = vmatpush1.xpose.msra.mxu0 0.0
  %3851 = vmatprep.subr.mxu0 0.0
  %3852 = vmatpush1.xpose.msra.mxu0 0.0
  %3853 = vmatprep.subr.mxu0 0.0
  %3854 = vmatpush1.xpose.msra.mxu0 0.0
  %3855 = vmatprep.subr.mxu0 0.0
  %3856 = vmatpush1.xpose.msra.mxu0 0.0
  %3857 = vmatprep.subr.mxu0 0.0
  %3858 = vmatpush1.xpose.msra.mxu0 0.0
  %3859 = vmatprep.mubr.f32.mxu0 0.0
  %3860 = vmatmul.mubr.f32.gmra.mrb[0].mxu0 %v3791
  %v3861 = vpop.f32.mrb[0].mxu0
  %v3862 = vadd.f32 0.0, %v3861
  %v3863 = vpop.f32.mrb[0].mxu0
  %3864 = vdwg.mxu0
  %v3865 = vsel %vm2616, %v3862, -inf
  %3866 = vmax.xlane.f32.xlu0 %v3865
  %v3867 = vpop.xlane.xlu0 %3866
  %v3868 = vsub.f32 %v3862, %v3867
  %v3869 = vmul.f32 %v3868, 1.442695
  %v3870 = vpow.pop %v3869
  %v3871 = vsel %vm2616, %v3870, 0.0
  %3872 = vadd.xlane.f32.xlu0 %v3871
  %v3873 = vpop.xlane.xlu0 %3872
  %v3874 = vrcp.pop %v3873
  %v3875 = vmul.f32 %v3870, %v3874
  %3877 = vrot.lane.b32.xlu0 %v3785, 32
  %v3878 = vpop.permute.xlu0 %3877
  %v3881 = vsel %vm142, %v3875, 0
  %3883 = vmatprep.subr.mxu0 0.0
  %3884 = vmatpush1.msra.mxu0 %v3878
  %3885 = vmatprep.subr.mxu0 0.0
  %3886 = vmatpush1.msra.mxu0 0.0
  %3887 = vmatprep.subr.mxu0 0.0
  %3888 = vmatpush1.msra.mxu0 0.0
  %3889 = vmatprep.subr.mxu0 0.0
  %3890 = vmatpush1.msra.mxu0 0.0
  %3891 = vmatprep.subr.mxu0 0.0
  %3892 = vmatpush1.msra.mxu0 0.0
  %3893 = vmatprep.subr.mxu0 0.0
  %3894 = vmatpush1.msra.mxu0 0.0
  %3895 = vmatprep.subr.mxu0 0.0
  %3896 = vmatpush1.msra.mxu0 0.0
  %3897 = vmatprep.subr.mxu0 0.0
  %3898 = vmatpush1.msra.mxu0 0.0
  %3899 = vmatprep.subr.mxu0 0.0
  %3900 = vmatpush1.msra.mxu0 0.0
  %3901 = vmatprep.subr.mxu0 0.0
  %3902 = vmatpush1.msra.mxu0 0.0
  %3903 = vmatprep.subr.mxu0 0.0
  %3904 = vmatpush1.msra.mxu0 0.0
  %3905 = vmatprep.subr.mxu0 0.0
  %3906 = vmatpush1.msra.mxu0 0.0
  %3907 = vmatprep.subr.mxu0 0.0
  %3908 = vmatpush1.msra.mxu0 0.0
  %3909 = vmatprep.subr.mxu0 0.0
  %3910 = vmatpush1.msra.mxu0 0.0
  %3911 = vmatprep.subr.mxu0 0.0
  %3912 = vmatpush1.msra.mxu0 0.0
  %3913 = vmatprep.subr.mxu0 0.0
  %3914 = vmatpush1.msra.mxu0 0.0
  %3915 = vmatprep.subr.mxu0 0.0
  %3916 = vmatpush1.msra.mxu0 0.0
  %3917 = vmatprep.subr.mxu0 0.0
  %3918 = vmatpush1.msra.mxu0 0.0
  %3919 = vmatprep.subr.mxu0 0.0
  %3920 = vmatpush1.msra.mxu0 0.0
  %3921 = vmatprep.subr.mxu0 0.0
  %3922 = vmatpush1.msra.mxu0 0.0
  %3923 = vmatprep.subr.mxu0 0.0
  %3924 = vmatpush1.msra.mxu0 0.0
  %3925 = vmatprep.subr.mxu0 0.0
  %3926 = vmatpush1.msra.mxu0 0.0
  %3927 = vmatprep.subr.mxu0 0.0
  %3928 = vmatpush1.msra.mxu0 0.0
  %3929 = vmatprep.subr.mxu0 0.0
  %3930 = vmatpush1.msra.mxu0 0.0
  %3931 = vmatprep.subr.mxu0 0.0
  %3932 = vmatpush1.msra.mxu0 0.0
  %3933 = vmatprep.subr.mxu0 0.0
  %3934 = vmatpush1.msra.mxu0 0.0
  %3935 = vmatprep.subr.mxu0 0.0
  %3936 = vmatpush1.msra.mxu0 0.0
  %3937 = vmatprep.subr.mxu0 0.0
  %3938 = vmatpush1.msra.mxu0 0.0
  %3939 = vmatprep.subr.mxu0 0.0
  %3940 = vmatpush1.msra.mxu0 0.0
  %3941 = vmatprep.subr.mxu0 0.0
  %3942 = vmatpush1.msra.mxu0 0.0
  %3943 = vmatprep.subr.mxu0 0.0
  %3944 = vmatpush1.msra.mxu0 0.0
  %3945 = vmatprep.subr.mxu0 0.0
  %3946 = vmatpush1.msra.mxu0 0.0
  %3947 = vmatprep.mubr.f32.mxu0 0.0
  %3948 = vmatmul.mubr.f32.gmra.mrb[0].mxu0 %v3881
  %v3949 = vpop.f32.mrb[0].mxu0
  %v3950 = vadd.f32 0.0, %v3949
  %v3951 = vpop.f32.mrb[0].mxu0
  %3952 = vdwg.mxu0
  %3953 = vst.msk [vmem:[#allocation2] sm:$0x1] %vm2616, %v3950
  %3954 = vrot.lane.b32.xlu0 %v3786, 120
  %v3955 = vpop.permute.xlu0 %3954
  %3956 = vrot.lane.b32.xlu0 %v3776, 56
  %v3957 = vpop.permute.xlu0 %3956
  %v3958 = vsel %vm142, %v3955, 0
  %v3960 = vsel %vm142, %v3957, 0
  %3962 = vmatprep.subr.mxu0 0.0
  %3963 = vmatpush1.xpose.msra.mxu0 %v3960
  %3964 = vmatprep.subr.mxu0 0.0
  %3965 = vmatpush1.xpose.msra.mxu0 0.0
  %3966 = vmatprep.subr.mxu0 0.0
  %3967 = vmatpush1.xpose.msra.mxu0 0.0
  %3968 = vmatprep.subr.mxu0 0.0
  %3969 = vmatpush1.xpose.msra.mxu0 0.0
  %3970 = vmatprep.subr.mxu0 0.0
  %3971 = vmatpush1.xpose.msra.mxu0 0.0
  %3972 = vmatprep.subr.mxu0 0.0
  %3973 = vmatpush1.xpose.msra.mxu0 0.0
  %3974 = vmatprep.subr.mxu0 0.0
  %3975 = vmatpush1.xpose.msra.mxu0 0.0
  %3976 = vmatprep.subr.mxu0 0.0
  %3977 = vmatpush1.xpose.msra.mxu0 0.0
  %3978 = vmatprep.subr.mxu0 0.0
  %3979 = vmatpush1.xpose.msra.mxu0 0.0
  %3980 = vmatprep.subr.mxu0 0.0
  %3981 = vmatpush1.xpose.msra.mxu0 0.0
  %3982 = vmatprep.subr.mxu0 0.0
  %3983 = vmatpush1.xpose.msra.mxu0 0.0
  %3984 = vmatprep.subr.mxu0 0.0
  %3985 = vmatpush1.xpose.msra.mxu0 0.0
  %3986 = vmatprep.subr.mxu0 0.0
  %3987 = vmatpush1.xpose.msra.mxu0 0.0
  %3988 = vmatprep.subr.mxu0 0.0
  %3989 = vmatpush1.xpose.msra.mxu0 0.0
  %3990 = vmatprep.subr.mxu0 0.0
  %3991 = vmatpush1.xpose.msra.mxu0 0.0
  %3992 = vmatprep.subr.mxu0 0.0
  %3993 = vmatpush1.xpose.msra.mxu0 0.0
  %3994 = vmatprep.subr.mxu0 0.0
  %3995 = vmatpush1.xpose.msra.mxu0 0.0
  %3996 = vmatprep.subr.mxu0 0.0
  %3997 = vmatpush1.xpose.msra.mxu0 0.0
  %3998 = vmatprep.subr.mxu0 0.0
  %3999 = vmatpush1.xpose.msra.mxu0 0.0
  %4000 = vmatprep.subr.mxu0 0.0
  %4001 = vmatpush1.xpose.msra.mxu0 0.0
  %4002 = vmatprep.subr.mxu0 0.0
  %4003 = vmatpush1.xpose.msra.mxu0 0.0
  %4004 = vmatprep.subr.mxu0 0.0
  %4005 = vmatpush1.xpose.msra.mxu0 0.0
  %4006 = vmatprep.subr.mxu0 0.0
  %4007 = vmatpush1.xpose.msra.mxu0 0.0
  %4008 = vmatprep.subr.mxu0 0.0
  %4009 = vmatpush1.xpose.msra.mxu0 0.0
  %4010 = vmatprep.subr.mxu0 0.0
  %4011 = vmatpush1.xpose.msra.mxu0 0.0
  %4012 = vmatprep.subr.mxu0 0.0
  %4013 = vmatpush1.xpose.msra.mxu0 0.0
  %4014 = vmatprep.subr.mxu0 0.0
  %4015 = vmatpush1.xpose.msra.mxu0 0.0
  %4016 = vmatprep.subr.mxu0 0.0
  %4017 = vmatpush1.xpose.msra.mxu0 0.0
  %4018 = vmatprep.subr.mxu0 0.0
  %4019 = vmatpush1.xpose.msra.mxu0 0.0
  %4020 = vmatprep.subr.mxu0 0.0
  %4021 = vmatpush1.xpose.msra.mxu0 0.0
  %4022 = vmatprep.subr.mxu0 0.0
  %4023 = vmatpush1.xpose.msra.mxu0 0.0
  %4024 = vmatprep.subr.mxu0 0.0
  %4025 = vmatpush1.xpose.msra.mxu0 0.0
  %4026 = vmatprep.mubr.f32.mxu0 0.0
  %4027 = vmatmul.mubr.f32.gmra.mrb[0].mxu0 %v3958
  %v4028 = vpop.f32.mrb[0].mxu0
  %v4029 = vadd.f32 0.0, %v4028
  %v4030 = vpop.f32.mrb[0].mxu0
  %4031 = vdwg.mxu0
  %v4032 = vsel %vm2616, %v4029, -inf
  %4033 = vmax.xlane.f32.xlu0 %v4032
  %v4034 = vpop.xlane.xlu0 %4033
  %v4035 = vsub.f32 %v4029, %v4034
  %v4036 = vmul.f32 %v4035, 1.442695
  %v4037 = vpow.pop %v4036
  %v4038 = vsel %vm2616, %v4037, 0.0
  %4039 = vadd.xlane.f32.xlu0 %v4038
  %v4040 = vpop.xlane.xlu0 %4039
  %v4041 = vrcp.pop %v4040
  %v4042 = vmul.f32 %v4037, %v4041
  %4043 = vrot.lane.b32.xlu0 %v3785, 24
  %v4044 = vpop.permute.xlu0 %4043
  %v4047 = vsel %vm142, %v4042, 0
  %4049 = vmatprep.subr.mxu0 0.0
  %4050 = vmatpush1.msra.mxu0 %v4044
  %4051 = vmatprep.subr.mxu0 0.0
  %4052 = vmatpush1.msra.mxu0 0.0
  %4053 = vmatprep.subr.mxu0 0.0
  %4054 = vmatpush1.msra.mxu0 0.0
  %4055 = vmatprep.subr.mxu0 0.0
  %4056 = vmatpush1.msra.mxu0 0.0
  %4057 = vmatprep.subr.mxu0 0.0
  %4058 = vmatpush1.msra.mxu0 0.0
  %4059 = vmatprep.subr.mxu0 0.0
  %4060 = vmatpush1.msra.mxu0 0.0
  %4061 = vmatprep.subr.mxu0 0.0
  %4062 = vmatpush1.msra.mxu0 0.0
  %4063 = vmatprep.subr.mxu0 0.0
  %4064 = vmatpush1.msra.mxu0 0.0
  %4065 = vmatprep.subr.mxu0 0.0
  %4066 = vmatpush1.msra.mxu0 0.0
  %4067 = vmatprep.subr.mxu0 0.0
  %4068 = vmatpush1.msra.mxu0 0.0
  %4069 = vmatprep.subr.mxu0 0.0
  %4070 = vmatpush1.msra.mxu0 0.0
  %4071 = vmatprep.subr.mxu0 0.0
  %4072 = vmatpush1.msra.mxu0 0.0
  %4073 = vmatprep.subr.mxu0 0.0
  %4074 = vmatpush1.msra.mxu0 0.0
  %4075 = vmatprep.subr.mxu0 0.0
  %4076 = vmatpush1.msra.mxu0 0.0
  %4077 = vmatprep.subr.mxu0 0.0
  %4078 = vmatpush1.msra.mxu0 0.0
  %4079 = vmatprep.subr.mxu0 0.0
  %4080 = vmatpush1.msra.mxu0 0.0
  %4081 = vmatprep.subr.mxu0 0.0
  %4082 = vmatpush1.msra.mxu0 0.0
  %4083 = vmatprep.subr.mxu0 0.0
  %4084 = vmatpush1.msra.mxu0 0.0
  %4085 = vmatprep.subr.mxu0 0.0
  %4086 = vmatpush1.msra.mxu0 0.0
  %4087 = vmatprep.subr.mxu0 0.0
  %4088 = vmatpush1.msra.mxu0 0.0
  %4089 = vmatprep.subr.mxu0 0.0
  %4090 = vmatpush1.msra.mxu0 0.0
  %4091 = vmatprep.subr.mxu0 0.0
  %4092 = vmatpush1.msra.mxu0 0.0
  %4093 = vmatprep.subr.mxu0 0.0
  %4094 = vmatpush1.msra.mxu0 0.0
  %4095 = vmatprep.subr.mxu0 0.0
  %4096 = vmatpush1.msra.mxu0 0.0
  %4097 = vmatprep.subr.mxu0 0.0
  %4098 = vmatpush1.msra.mxu0 0.0
  %4099 = vmatprep.subr.mxu0 0.0
  %4100 = vmatpush1.msra.mxu0 0.0
  %4101 = vmatprep.subr.mxu0 0.0
  %4102 = vmatpush1.msra.mxu0 0.0
  %4103 = vmatprep.subr.mxu0 0.0
  %4104 = vmatpush1.msra.mxu0 0.0
  %4105 = vmatprep.subr.mxu0 0.0
  %4106 = vmatpush1.msra.mxu0 0.0
  %4107 = vmatprep.subr.mxu0 0.0
  %4108 = vmatpush1.msra.mxu0 0.0
  %4109 = vmatprep.subr.mxu0 0.0
  %4110 = vmatpush1.msra.mxu0 0.0
  %4111 = vmatprep.subr.mxu0 0.0
  %4112 = vmatpush1.msra.mxu0 0.0
  %4113 = vmatprep.mubr.f32.mxu0 0.0
  %4114 = vmatmul.mubr.f32.gmra.mrb[0].mxu0 %v4047
  %v4115 = vpop.f32.mrb[0].mxu0
  %v4116 = vadd.f32 0.0, %v4115
  %v4117 = vpop.f32.mrb[0].mxu0
  %4118 = vdwg.mxu0
  %4120 = vrot.lane.b32.xlu0 %v4116, 8
  %v4121 = vpop.permute.xlu0 %4120
  %4123 = vst.msk [vmem:[#allocation2] sm:$0x1] %vm2875, %v4121
  %4124 = vrot.lane.b32.xlu0 %v3786, 112
  %v4125 = vpop.permute.xlu0 %4124
  %4126 = vrot.lane.b32.xlu0 %v3776, 48
  %v4127 = vpop.permute.xlu0 %4126
  %v4128 = vsel %vm142, %v4125, 0
  %v4130 = vsel %vm142, %v4127, 0
  %4132 = vmatprep.subr.mxu0 0.0
  %4133 = vmatpush1.xpose.msra.mxu0 %v4130
  %4134 = vmatprep.subr.mxu0 0.0
  %4135 = vmatpush1.xpose.msra.mxu0 0.0
  %4136 = vmatprep.subr.mxu0 0.0
  %4137 = vmatpush1.xpose.msra.mxu0 0.0
  %4138 = vmatprep.subr.mxu0 0.0
  %4139 = vmatpush1.xpose.msra.mxu0 0.0
  %4140 = vmatprep.subr.mxu0 0.0
  %4141 = vmatpush1.xpose.msra.mxu0 0.0
  %4142 = vmatprep.subr.mxu0 0.0
  %4143 = vmatpush1.xpose.msra.mxu0 0.0
  %4144 = vmatprep.subr.mxu0 0.0
  %4145 = vmatpush1.xpose.msra.mxu0 0.0
  %4146 = vmatprep.subr.mxu0 0.0
  %4147 = vmatpush1.xpose.msra.mxu0 0.0
  %4148 = vmatprep.subr.mxu0 0.0
  %4149 = vmatpush1.xpose.msra.mxu0 0.0
  %4150 = vmatprep.subr.mxu0 0.0
  %4151 = vmatpush1.xpose.msra.mxu0 0.0
  %4152 = vmatprep.subr.mxu0 0.0
  %4153 = vmatpush1.xpose.msra.mxu0 0.0
  %4154 = vmatprep.subr.mxu0 0.0
  %4155 = vmatpush1.xpose.msra.mxu0 0.0
  %4156 = vmatprep.subr.mxu0 0.0
  %4157 = vmatpush1.xpose.msra.mxu0 0.0
  %4158 = vmatprep.subr.mxu0 0.0
  %4159 = vmatpush1.xpose.msra.mxu0 0.0
  %4160 = vmatprep.subr.mxu0 0.0
  %4161 = vmatpush1.xpose.msra.mxu0 0.0
  %4162 = vmatprep.subr.mxu0 0.0
  %4163 = vmatpush1.xpose.msra.mxu0 0.0
  %4164 = vmatprep.subr.mxu0 0.0
  %4165 = vmatpush1.xpose.msra.mxu0 0.0
  %4166 = vmatprep.subr.mxu0 0.0
  %4167 = vmatpush1.xpose.msra.mxu0 0.0
  %4168 = vmatprep.subr.mxu0 0.0
  %4169 = vmatpush1.xpose.msra.mxu0 0.0
  %4170 = vmatprep.subr.mxu0 0.0
  %4171 = vmatpush1.xpose.msra.mxu0 0.0
  %4172 = vmatprep.subr.mxu0 0.0
  %4173 = vmatpush1.xpose.msra.mxu0 0.0
  %4174 = vmatprep.subr.mxu0 0.0
  %4175 = vmatpush1.xpose.msra.mxu0 0.0
  %4176 = vmatprep.subr.mxu0 0.0
  %4177 = vmatpush1.xpose.msra.mxu0 0.0
  %4178 = vmatprep.subr.mxu0 0.0
  %4179 = vmatpush1.xpose.msra.mxu0 0.0
  %4180 = vmatprep.subr.mxu0 0.0
  %4181 = vmatpush1.xpose.msra.mxu0 0.0
  %4182 = vmatprep.subr.mxu0 0.0
  %4183 = vmatpush1.xpose.msra.mxu0 0.0
  %4184 = vmatprep.subr.mxu0 0.0
  %4185 = vmatpush1.xpose.msra.mxu0 0.0
  %4186 = vmatprep.subr.mxu0 0.0
  %4187 = vmatpush1.xpose.msra.mxu0 0.0
  %4188 = vmatprep.subr.mxu0 0.0
  %4189 = vmatpush1.xpose.msra.mxu0 0.0
  %4190 = vmatprep.subr.mxu0 0.0
  %4191 = vmatpush1.xpose.msra.mxu0 0.0
  %4192 = vmatprep.subr.mxu0 0.0
  %4193 = vmatpush1.xpose.msra.mxu0 0.0
  %4194 = vmatprep.subr.mxu0 0.0
  %4195 = vmatpush1.xpose.msra.mxu0 0.0
  %4196 = vmatprep.mubr.f32.mxu0 0.0
  %4197 = vmatmul.mubr.f32.gmra.mrb[0].mxu0 %v4128
  %v4198 = vpop.f32.mrb[0].mxu0
  %v4199 = vadd.f32 0.0, %v4198
  %v4200 = vpop.f32.mrb[0].mxu0
  %4201 = vdwg.mxu0
  %v4202 = vsel %vm2616, %v4199, -inf
  %4203 = vmax.xlane.f32.xlu0 %v4202
  %v4204 = vpop.xlane.xlu0 %4203
  %v4205 = vsub.f32 %v4199, %v4204
  %v4206 = vmul.f32 %v4205, 1.442695
  %v4207 = vpow.pop %v4206
  %v4208 = vsel %vm2616, %v4207, 0.0
  %4209 = vadd.xlane.f32.xlu0 %v4208
  %v4210 = vpop.xlane.xlu0 %4209
  %v4211 = vrcp.pop %v4210
  %v4212 = vmul.f32 %v4207, %v4211
  %4213 = vrot.lane.b32.xlu0 %v3785, 16
  %v4214 = vpop.permute.xlu0 %4213
  %v4217 = vsel %vm142, %v4212, 0
  %4219 = vmatprep.subr.mxu0 0.0
  %4220 = vmatpush1.msra.mxu0 %v4214
  %4221 = vmatprep.subr.mxu0 0.0
  %4222 = vmatpush1.msra.mxu0 0.0
  %4223 = vmatprep.subr.mxu0 0.0
  %4224 = vmatpush1.msra.mxu0 0.0
  %4225 = vmatprep.subr.mxu0 0.0
  %4226 = vmatpush1.msra.mxu0 0.0
  %4227 = vmatprep.subr.mxu0 0.0
  %4228 = vmatpush1.msra.mxu0 0.0
  %4229 = vmatprep.subr.mxu0 0.0
  %4230 = vmatpush1.msra.mxu0 0.0
  %4231 = vmatprep.subr.mxu0 0.0
  %4232 = vmatpush1.msra.mxu0 0.0
  %4233 = vmatprep.subr.mxu0 0.0
  %4234 = vmatpush1.msra.mxu0 0.0
  %4235 = vmatprep.subr.mxu0 0.0
  %4236 = vmatpush1.msra.mxu0 0.0
  %4237 = vmatprep.subr.mxu0 0.0
  %4238 = vmatpush1.msra.mxu0 0.0
  %4239 = vmatprep.subr.mxu0 0.0
  %4240 = vmatpush1.msra.mxu0 0.0
  %4241 = vmatprep.subr.mxu0 0.0
  %4242 = vmatpush1.msra.mxu0 0.0
  %4243 = vmatprep.subr.mxu0 0.0
  %4244 = vmatpush1.msra.mxu0 0.0
  %4245 = vmatprep.subr.mxu0 0.0
  %4246 = vmatpush1.msra.mxu0 0.0
  %4247 = vmatprep.subr.mxu0 0.0
  %4248 = vmatpush1.msra.mxu0 0.0
  %4249 = vmatprep.subr.mxu0 0.0
  %4250 = vmatpush1.msra.mxu0 0.0
  %4251 = vmatprep.subr.mxu0 0.0
  %4252 = vmatpush1.msra.mxu0 0.0
  %4253 = vmatprep.subr.mxu0 0.0
  %4254 = vmatpush1.msra.mxu0 0.0
  %4255 = vmatprep.subr.mxu0 0.0
  %4256 = vmatpush1.msra.mxu0 0.0
  %4257 = vmatprep.subr.mxu0 0.0
  %4258 = vmatpush1.msra.mxu0 0.0
  %4259 = vmatprep.subr.mxu0 0.0
  %4260 = vmatpush1.msra.mxu0 0.0
  %4261 = vmatprep.subr.mxu0 0.0
  %4262 = vmatpush1.msra.mxu0 0.0
  %4263 = vmatprep.subr.mxu0 0.0
  %4264 = vmatpush1.msra.mxu0 0.0
  %4265 = vmatprep.subr.mxu0 0.0
  %4266 = vmatpush1.msra.mxu0 0.0
  %4267 = vmatprep.subr.mxu0 0.0
  %4268 = vmatpush1.msra.mxu0 0.0
  %4269 = vmatprep.subr.mxu0 0.0
  %4270 = vmatpush1.msra.mxu0 0.0
  %4271 = vmatprep.subr.mxu0 0.0
  %4272 = vmatpush1.msra.mxu0 0.0
  %4273 = vmatprep.subr.mxu0 0.0
  %4274 = vmatpush1.msra.mxu0 0.0
  %4275 = vmatprep.subr.mxu0 0.0
  %4276 = vmatpush1.msra.mxu0 0.0
  %4277 = vmatprep.subr.mxu0 0.0
  %4278 = vmatpush1.msra.mxu0 0.0
  %4279 = vmatprep.subr.mxu0 0.0
  %4280 = vmatpush1.msra.mxu0 0.0
  %4281 = vmatprep.subr.mxu0 0.0
  %4282 = vmatpush1.msra.mxu0 0.0
  %4283 = vmatprep.mubr.f32.mxu0 0.0
  %4284 = vmatmul.mubr.f32.gmra.mrb[0].mxu0 %v4217
  %v4285 = vpop.f32.mrb[0].mxu0
  %v4286 = vadd.f32 0.0, %v4285
  %v4287 = vpop.f32.mrb[0].mxu0
  %4288 = vdwg.mxu0
  %4290 = vrot.lane.b32.xlu0 %v4286, 16
  %v4291 = vpop.permute.xlu0 %4290
  %4293 = vst.msk [vmem:[#allocation2] sm:$0x1] %vm3046, %v4291
  %4294 = vrot.lane.b32.xlu0 %v3786, 104
  %v4295 = vpop.permute.xlu0 %4294
  %4296 = vrot.lane.b32.xlu0 %v3776, 40
  %v4297 = vpop.permute.xlu0 %4296
  %v4298 = vsel %vm142, %v4295, 0
  %v4300 = vsel %vm142, %v4297, 0
  %4302 = vmatprep.subr.mxu0 0.0
  %4303 = vmatpush1.xpose.msra.mxu0 %v4300
  %4304 = vmatprep.subr.mxu0 0.0
  %4305 = vmatpush1.xpose.msra.mxu0 0.0
  %4306 = vmatprep.subr.mxu0 0.0
  %4307 = vmatpush1.xpose.msra.mxu0 0.0
  %4308 = vmatprep.subr.mxu0 0.0
  %4309 = vmatpush1.xpose.msra.mxu0 0.0
  %4310 = vmatprep.subr.mxu0 0.0
  %4311 = vmatpush1.xpose.msra.mxu0 0.0
  %4312 = vmatprep.subr.mxu0 0.0
  %4313 = vmatpush1.xpose.msra.mxu0 0.0
  %4314 = vmatprep.subr.mxu0 0.0
  %4315 = vmatpush1.xpose.msra.mxu0 0.0
  %4316 = vmatprep.subr.mxu0 0.0
  %4317 = vmatpush1.xpose.msra.mxu0 0.0
  %4318 = vmatprep.subr.mxu0 0.0
  %4319 = vmatpush1.xpose.msra.mxu0 0.0
  %4320 = vmatprep.subr.mxu0 0.0
  %4321 = vmatpush1.xpose.msra.mxu0 0.0
  %4322 = vmatprep.subr.mxu0 0.0
  %4323 = vmatpush1.xpose.msra.mxu0 0.0
  %4324 = vmatprep.subr.mxu0 0.0
  %4325 = vmatpush1.xpose.msra.mxu0 0.0
  %4326 = vmatprep.subr.mxu0 0.0
  %4327 = vmatpush1.xpose.msra.mxu0 0.0
  %4328 = vmatprep.subr.mxu0 0.0
  %4329 = vmatpush1.xpose.msra.mxu0 0.0
  %4330 = vmatprep.subr.mxu0 0.0
  %4331 = vmatpush1.xpose.msra.mxu0 0.0
  %4332 = vmatprep.subr.mxu0 0.0
  %4333 = vmatpush1.xpose.msra.mxu0 0.0
  %4334 = vmatprep.subr.mxu0 0.0
  %4335 = vmatpush1.xpose.msra.mxu0 0.0
  %4336 = vmatprep.subr.mxu0 0.0
  %4337 = vmatpush1.xpose.msra.mxu0 0.0
  %4338 = vmatprep.subr.mxu0 0.0
  %4339 = vmatpush1.xpose.msra.mxu0 0.0
  %4340 = vmatprep.subr.mxu0 0.0
  %4341 = vmatpush1.xpose.msra.mxu0 0.0
  %4342 = vmatprep.subr.mxu0 0.0
  %4343 = vmatpush1.xpose.msra.mxu0 0.0
  %4344 = vmatprep.subr.mxu0 0.0
  %4345 = vmatpush1.xpose.msra.mxu0 0.0
  %4346 = vmatprep.subr.mxu0 0.0
  %4347 = vmatpush1.xpose.msra.mxu0 0.0
  %4348 = vmatprep.subr.mxu0 0.0
  %4349 = vmatpush1.xpose.msra.mxu0 0.0
  %4350 = vmatprep.subr.mxu0 0.0
  %4351 = vmatpush1.xpose.msra.mxu0 0.0
  %4352 = vmatprep.subr.mxu0 0.0
  %4353 = vmatpush1.xpose.msra.mxu0 0.0
  %4354 = vmatprep.subr.mxu0 0.0
  %4355 = vmatpush1.xpose.msra.mxu0 0.0
  %4356 = vmatprep.subr.mxu0 0.0
  %4357 = vmatpush1.xpose.msra.mxu0 0.0
  %4358 = vmatprep.subr.mxu0 0.0
  %4359 = vmatpush1.xpose.msra.mxu0 0.0
  %4360 = vmatprep.subr.mxu0 0.0
  %4361 = vmatpush1.xpose.msra.mxu0 0.0
  %4362 = vmatprep.subr.mxu0 0.0
  %4363 = vmatpush1.xpose.msra.mxu0 0.0
  %4364 = vmatprep.subr.mxu0 0.0
  %4365 = vmatpush1.xpose.msra.mxu0 0.0
  %4366 = vmatprep.mubr.f32.mxu0 0.0
  %4367 = vmatmul.mubr.f32.gmra.mrb[0].mxu0 %v4298
  %v4368 = vpop.f32.mrb[0].mxu0
  %v4369 = vadd.f32 0.0, %v4368
  %v4370 = vpop.f32.mrb[0].mxu0
  %4371 = vdwg.mxu0
  %v4372 = vsel %vm2616, %v4369, -inf
  %4373 = vmax.xlane.f32.xlu0 %v4372
  %v4374 = vpop.xlane.xlu0 %4373
  %v4375 = vsub.f32 %v4369, %v4374
  %v4376 = vmul.f32 %v4375, 1.442695
  %v4377 = vpow.pop %v4376
  %v4378 = vsel %vm2616, %v4377, 0.0
  %4379 = vadd.xlane.f32.xlu0 %v4378
  %v4380 = vpop.xlane.xlu0 %4379
  %v4381 = vrcp.pop %v4380
  %v4382 = vmul.f32 %v4377, %v4381
  %4383 = vrot.lane.b32.xlu0 %v3785, 8
  %v4384 = vpop.permute.xlu0 %4383
  %v4387 = vsel %vm142, %v4382, 0
  %4389 = vmatprep.subr.mxu0 0.0
  %4390 = vmatpush1.msra.mxu0 %v4384
  %4391 = vmatprep.subr.mxu0 0.0
  %4392 = vmatpush1.msra.mxu0 0.0
  %4393 = vmatprep.subr.mxu0 0.0
  %4394 = vmatpush1.msra.mxu0 0.0
  %4395 = vmatprep.subr.mxu0 0.0
  %4396 = vmatpush1.msra.mxu0 0.0
  %4397 = vmatprep.subr.mxu0 0.0
  %4398 = vmatpush1.msra.mxu0 0.0
  %4399 = vmatprep.subr.mxu0 0.0
  %4400 = vmatpush1.msra.mxu0 0.0
  %4401 = vmatprep.subr.mxu0 0.0
  %4402 = vmatpush1.msra.mxu0 0.0
  %4403 = vmatprep.subr.mxu0 0.0
  %4404 = vmatpush1.msra.mxu0 0.0
  %4405 = vmatprep.subr.mxu0 0.0
  %4406 = vmatpush1.msra.mxu0 0.0
  %4407 = vmatprep.subr.mxu0 0.0
  %4408 = vmatpush1.msra.mxu0 0.0
  %4409 = vmatprep.subr.mxu0 0.0
  %4410 = vmatpush1.msra.mxu0 0.0
  %4411 = vmatprep.subr.mxu0 0.0
  %4412 = vmatpush1.msra.mxu0 0.0
  %4413 = vmatprep.subr.mxu0 0.0
  %4414 = vmatpush1.msra.mxu0 0.0
  %4415 = vmatprep.subr.mxu0 0.0
  %4416 = vmatpush1.msra.mxu0 0.0
  %4417 = vmatprep.subr.mxu0 0.0
  %4418 = vmatpush1.msra.mxu0 0.0
  %4419 = vmatprep.subr.mxu0 0.0
  %4420 = vmatpush1.msra.mxu0 0.0
  %4421 = vmatprep.subr.mxu0 0.0
  %4422 = vmatpush1.msra.mxu0 0.0
  %4423 = vmatprep.subr.mxu0 0.0
  %4424 = vmatpush1.msra.mxu0 0.0
  %4425 = vmatprep.subr.mxu0 0.0
  %4426 = vmatpush1.msra.mxu0 0.0
  %4427 = vmatprep.subr.mxu0 0.0
  %4428 = vmatpush1.msra.mxu0 0.0
  %4429 = vmatprep.subr.mxu0 0.0
  %4430 = vmatpush1.msra.mxu0 0.0
  %4431 = vmatprep.subr.mxu0 0.0
  %4432 = vmatpush1.msra.mxu0 0.0
  %4433 = vmatprep.subr.mxu0 0.0
  %4434 = vmatpush1.msra.mxu0 0.0
  %4435 = vmatprep.subr.mxu0 0.0
  %4436 = vmatpush1.msra.mxu0 0.0
  %4437 = vmatprep.subr.mxu0 0.0
  %4438 = vmatpush1.msra.mxu0 0.0
  %4439 = vmatprep.subr.mxu0 0.0
  %4440 = vmatpush1.msra.mxu0 0.0
  %4441 = vmatprep.subr.mxu0 0.0
  %4442 = vmatpush1.msra.mxu0 0.0
  %4443 = vmatprep.subr.mxu0 0.0
  %4444 = vmatpush1.msra.mxu0 0.0
  %4445 = vmatprep.subr.mxu0 0.0
  %4446 = vmatpush1.msra.mxu0 0.0
  %4447 = vmatprep.subr.mxu0 0.0
  %4448 = vmatpush1.msra.mxu0 0.0
  %4449 = vmatprep.subr.mxu0 0.0
  %4450 = vmatpush1.msra.mxu0 0.0
  %4451 = vmatprep.subr.mxu0 0.0
  %4452 = vmatpush1.msra.mxu0 0.0
  %4453 = vmatprep.mubr.f32.mxu0 0.0
  %4454 = vmatmul.mubr.f32.gmra.mrb[0].mxu0 %v4387
  %v4455 = vpop.f32.mrb[0].mxu0
  %v4456 = vadd.f32 0.0, %v4455
  %v4457 = vpop.f32.mrb[0].mxu0
  %4458 = vdwg.mxu0
  %4460 = vrot.lane.b32.xlu0 %v4456, 24
  %v4461 = vpop.permute.xlu0 %4460
  %4463 = vst.msk [vmem:[#allocation2] sm:$0x1] %vm3217, %v4461
  %v4464 = vld [vmem:[#allocation2] sm:$0x1]
  %s4465 = scalar_lea.vmem %s10, 32
  %v4466 = vld [vmem:[%s4465] sm:$0xff]
  %v4467 = vld [vmem:[%s4465 + $0x8] sm:$0xff]
  %v4468 = vld [vmem:[%s4465 + $0x10] sm:$0xff]
  %v4469 = vld [vmem:[%s4465 + $0x18] sm:$0xff]
  %v4470 = vrot.slane %v3507, 7
  %v4473 = vsel %vm64, %v4464, 0
  %4475 = vmatprep.subr.mxu0 0.0
  %4476 = vmatpush1.msra.mxu0 %v4466
  %4477 = vmatprep.subr.mxu0 0.0
  %4478 = vmatpush1.msra.mxu0 %v4467
  %4479 = vmatprep.subr.mxu0 0.0
  %4480 = vmatpush1.msra.mxu0 %v4468
  %4481 = vmatprep.subr.mxu0 0.0
  %4482 = vmatpush1.msra.mxu0 %v4469
  %4483 = vmatprep.subr.mxu0 0.0
  %4484 = vmatpush1.msra.mxu0 0.0
  %4485 = vmatprep.subr.mxu0 0.0
  %4486 = vmatpush1.msra.mxu0 0.0
  %4487 = vmatprep.subr.mxu0 0.0
  %4488 = vmatpush1.msra.mxu0 0.0
  %4489 = vmatprep.subr.mxu0 0.0
  %4490 = vmatpush1.msra.mxu0 0.0
  %4491 = vmatprep.subr.mxu0 0.0
  %4492 = vmatpush1.msra.mxu0 0.0
  %4493 = vmatprep.subr.mxu0 0.0
  %4494 = vmatpush1.msra.mxu0 0.0
  %4495 = vmatprep.subr.mxu0 0.0
  %4496 = vmatpush1.msra.mxu0 0.0
  %4497 = vmatprep.subr.mxu0 0.0
  %4498 = vmatpush1.msra.mxu0 0.0
  %4499 = vmatprep.subr.mxu0 0.0
  %4500 = vmatpush1.msra.mxu0 0.0
  %4501 = vmatprep.subr.mxu0 0.0
  %4502 = vmatpush1.msra.mxu0 0.0
  %4503 = vmatprep.subr.mxu0 0.0
  %4504 = vmatpush1.msra.mxu0 0.0
  %4505 = vmatprep.subr.mxu0 0.0
  %4506 = vmatpush1.msra.mxu0 0.0
  %4507 = vmatprep.subr.mxu0 0.0
  %4508 = vmatpush1.msra.mxu0 0.0
  %4509 = vmatprep.subr.mxu0 0.0
  %4510 = vmatpush1.msra.mxu0 0.0
  %4511 = vmatprep.subr.mxu0 0.0
  %4512 = vmatpush1.msra.mxu0 0.0
  %4513 = vmatprep.subr.mxu0 0.0
  %4514 = vmatpush1.msra.mxu0 0.0
  %4515 = vmatprep.subr.mxu0 0.0
  %4516 = vmatpush1.msra.mxu0 0.0
  %4517 = vmatprep.subr.mxu0 0.0
  %4518 = vmatpush1.msra.mxu0 0.0
  %4519 = vmatprep.subr.mxu0 0.0
  %4520 = vmatpush1.msra.mxu0 0.0
  %4521 = vmatprep.subr.mxu0 0.0
  %4522 = vmatpush1.msra.mxu0 0.0
  %4523 = vmatprep.subr.mxu0 0.0
  %4524 = vmatpush1.msra.mxu0 0.0
  %4525 = vmatprep.subr.mxu0 0.0
  %4526 = vmatpush1.msra.mxu0 0.0
  %4527 = vmatprep.subr.mxu0 0.0
  %4528 = vmatpush1.msra.mxu0 0.0
  %4529 = vmatprep.subr.mxu0 0.0
  %4530 = vmatpush1.msra.mxu0 0.0
  %4531 = vmatprep.subr.mxu0 0.0
  %4532 = vmatpush1.msra.mxu0 0.0
  %4533 = vmatprep.subr.mxu0 0.0
  %4534 = vmatpush1.msra.mxu0 0.0
  %4535 = vmatprep.subr.mxu0 0.0
  %4536 = vmatpush1.msra.mxu0 0.0
  %4537 = vmatprep.subr.mxu0 0.0
  %4538 = vmatpush1.msra.mxu0 0.0
  %4539 = vmatprep.mubr.f32.mxu0 0.0
  %4540 = vmatmul.mubr.f32.gmra.mrb[0].mxu0 %v4473
  %v4541 = vpop.f32.mrb[0].mxu0
  %v4542 = vadd.f32 %v4470, %v4541
  %v4543 = vpop.f32.mrb[0].mxu0
  %4544 = vdwg.mxu0
  %v4545 = vadd.f32 %v4542, %v3687
  %v4546 = vsel %vm2426, %v4545, 0.0
  %4547 = vadd.xlane.f32.xlu0 %v4546
  %v4548 = vpop.xlane.xlu0 %4547
  %v4549 = vmul.f32 %v4548, %v905
  %v4550 = vsub.f32 %v4545, %v4549
  %v4551 = vmul.f32 %v4550, %v4550
  %v4552 = vsel %vm2426, %v4551, 0.0
  %4553 = vadd.xlane.f32.xlu0 %v4552
  %v4554 = vpop.xlane.xlu0 %4553
  %v4555 = vmul.f32 %v4554, %v905
  %v4556 = vadd.f32 %v4555, 1e-05
  %v4557 = vrsqrt.pop %v4556
  %v4558 = vmul.f32 %v4550, %v4557
  %v4559 = vmul.f32 %v4558, %v3508
  %v4561 = vrot.slane %v3508, 1
  %v4563 = vadd.f32 %v4559, %v4561
  %s4564 = scalar_lea.vmem %s11, 32
  %v4565 = vld [vmem:[%s4564] sm:$0xff]
  %v4566 = vld [vmem:[%s4564 + $0x8] sm:$0xff]
  %v4567 = vld [vmem:[%s4564 + $0x10] sm:$0xff]
  %v4568 = vld [vmem:[%s4564 + $0x18] sm:$0xff]
  %v4569 = vrot.slane %v3508, 2
  %v4572 = vsel %vm64, %v4563, 0
  %4574 = vmatprep.subr.mxu0 0.0
  %4575 = vmatpush1.msra.mxu0 %v4565
  %4576 = vmatprep.subr.mxu0 0.0
  %4577 = vmatpush1.msra.mxu0 %v4566
  %4578 = vmatprep.subr.mxu0 0.0
  %4579 = vmatpush1.msra.mxu0 %v4567
  %4580 = vmatprep.subr.mxu0 0.0
  %4581 = vmatpush1.msra.mxu0 %v4568
  %4582 = vmatprep.subr.mxu0 0.0
  %4583 = vmatpush1.msra.mxu0 0.0
  %4584 = vmatprep.subr.mxu0 0.0
  %4585 = vmatpush1.msra.mxu0 0.0
  %4586 = vmatprep.subr.mxu0 0.0
  %4587 = vmatpush1.msra.mxu0 0.0
  %4588 = vmatprep.subr.mxu0 0.0
  %4589 = vmatpush1.msra.mxu0 0.0
  %4590 = vmatprep.subr.mxu0 0.0
  %4591 = vmatpush1.msra.mxu0 0.0
  %4592 = vmatprep.subr.mxu0 0.0
  %4593 = vmatpush1.msra.mxu0 0.0
  %4594 = vmatprep.subr.mxu0 0.0
  %4595 = vmatpush1.msra.mxu0 0.0
  %4596 = vmatprep.subr.mxu0 0.0
  %4597 = vmatpush1.msra.mxu0 0.0
  %4598 = vmatprep.subr.mxu0 0.0
  %4599 = vmatpush1.msra.mxu0 0.0
  %4600 = vmatprep.subr.mxu0 0.0
  %4601 = vmatpush1.msra.mxu0 0.0
  %4602 = vmatprep.subr.mxu0 0.0
  %4603 = vmatpush1.msra.mxu0 0.0
  %4604 = vmatprep.subr.mxu0 0.0
  %4605 = vmatpush1.msra.mxu0 0.0
  %4606 = vmatprep.subr.mxu0 0.0
  %4607 = vmatpush1.msra.mxu0 0.0
  %4608 = vmatprep.subr.mxu0 0.0
  %4609 = vmatpush1.msra.mxu0 0.0
  %4610 = vmatprep.subr.mxu0 0.0
  %4611 = vmatpush1.msra.mxu0 0.0
  %4612 = vmatprep.subr.mxu0 0.0
  %4613 = vmatpush1.msra.mxu0 0.0
  %4614 = vmatprep.subr.mxu0 0.0
  %4615 = vmatpush1.msra.mxu0 0.0
  %4616 = vmatprep.subr.mxu0 0.0
  %4617 = vmatpush1.msra.mxu0 0.0
  %4618 = vmatprep.subr.mxu0 0.0
  %4619 = vmatpush1.msra.mxu0 0.0
  %4620 = vmatprep.subr.mxu0 0.0
  %4621 = vmatpush1.msra.mxu0 0.0
  %4622 = vmatprep.subr.mxu0 0.0
  %4623 = vmatpush1.msra.mxu0 0.0
  %4624 = vmatprep.subr.mxu0 0.0
  %4625 = vmatpush1.msra.mxu0 0.0
  %4626 = vmatprep.subr.mxu0 0.0
  %4627 = vmatpush1.msra.mxu0 0.0
  %4628 = vmatprep.subr.mxu0 0.0
  %4629 = vmatpush1.msra.mxu0 0.0
  %4630 = vmatprep.subr.mxu0 0.0
  %4631 = vmatpush1.msra.mxu0 0.0
  %4632 = vmatprep.subr.mxu0 0.0
  %4633 = vmatpush1.msra.mxu0 0.0
  %4634 = vmatprep.subr.mxu0 0.0
  %4635 = vmatpush1.msra.mxu0 0.0
  %4636 = vmatprep.subr.mxu0 0.0
  %4637 = vmatpush1.msra.mxu0 0.0
  %4638 = vmatprep.mubr.f32.mxu0 0.0
  %4639 = vmatmul.mubr.f32.gmra.mrb[0].mxu0 %v4572
  %v4640 = vpop.f32.mrb[0].mxu0
  %v4641 = vadd.f32 %v4569, %v4640
  %v4642 = vpop.f32.mrb[0].mxu0
  %4643 = vdwg.mxu0
  %v4644 = vmax.f32 %v4641, 0.0
  %s4645 = scalar_lea.vmem %s12, 128
  %v4646 = vld [vmem:[%s4645] sm:$0xff]
  %v4647 = vld [vmem:[%s4645 + $0x8] sm:$0xff]
  %v4648 = vld [vmem:[%s4645 + $0x10] sm:$0xff]
  %v4649 = vld [vmem:[%s4645 + $0x18] sm:$0xff]
  %v4650 = vld [vmem:[%s4645 + $0x20] sm:$0xff]
  %v4651 = vld [vmem:[%s4645 + $0x28] sm:$0xff]
  %v4652 = vld [vmem:[%s4645 + $0x30] sm:$0xff]
  %v4653 = vld [vmem:[%s4645 + $0x38] sm:$0xff]
  %v4654 = vld [vmem:[%s4645 + $0x40] sm:$0xff]
  %v4655 = vld [vmem:[%s4645 + $0x48] sm:$0xff]
  %v4656 = vld [vmem:[%s4645 + $0x50] sm:$0xff]
  %v4657 = vld [vmem:[%s4645 + $0x58] sm:$0xff]
  %v4658 = vld [vmem:[%s4645 + $0x60] sm:$0xff]
  %v4659 = vld [vmem:[%s4645 + $0x68] sm:$0xff]
  %v4660 = vld [vmem:[%s4645 + $0x70] sm:$0xff]
  %v4661 = vld [vmem:[%s4645 + $0x78] sm:$0xff]
  %v4662 = vrot.slane %v3508, 3
  %4664 = vmatprep.subr.mxu0 0.0
  %4665 = vmatpush1.msra.mxu0 %v4646
  %4666 = vmatprep.subr.mxu0 0.0
  %4667 = vmatpush1.msra.mxu0 %v4647
  %4668 = vmatprep.subr.mxu0 0.0
  %4669 = vmatpush1.msra.mxu0 %v4648
  %4670 = vmatprep.subr.mxu0 0.0
  %4671 = vmatpush1.msra.mxu0 %v4649
  %4672 = vmatprep.subr.mxu0 0.0
  %4673 = vmatpush1.msra.mxu0 %v4650
  %4674 = vmatprep.subr.mxu0 0.0
  %4675 = vmatpush1.msra.mxu0 %v4651
  %4676 = vmatprep.subr.mxu0 0.0
  %4677 = vmatpush1.msra.mxu0 %v4652
  %4678 = vmatprep.subr.mxu0 0.0
  %4679 = vmatpush1.msra.mxu0 %v4653
  %4680 = vmatprep.subr.mxu0 0.0
  %4681 = vmatpush1.msra.mxu0 %v4654
  %4682 = vmatprep.subr.mxu0 0.0
  %4683 = vmatpush1.msra.mxu0 %v4655
  %4684 = vmatprep.subr.mxu0 0.0
  %4685 = vmatpush1.msra.mxu0 %v4656
  %4686 = vmatprep.subr.mxu0 0.0
  %4687 = vmatpush1.msra.mxu0 %v4657
  %4688 = vmatprep.subr.mxu0 0.0
  %4689 = vmatpush1.msra.mxu0 %v4658
  %4690 = vmatprep.subr.mxu0 0.0
  %4691 = vmatpush1.msra.mxu0 %v4659
  %4692 = vmatprep.subr.mxu0 0.0
  %4693 = vmatpush1.msra.mxu0 %v4660
  %4694 = vmatprep.subr.mxu0 0.0
  %4695 = vmatpush1.msra.mxu0 %v4661
  %4696 = vmatprep.subr.mxu0 0.0
  %4697 = vmatpush1.msra.mxu0 0.0
  %4698 = vmatprep.subr.mxu0 0.0
  %4699 = vmatpush1.msra.mxu0 0.0
  %4700 = vmatprep.subr.mxu0 0.0
  %4701 = vmatpush1.msra.mxu0 0.0
  %4702 = vmatprep.subr.mxu0 0.0
  %4703 = vmatpush1.msra.mxu0 0.0
  %4704 = vmatprep.subr.mxu0 0.0
  %4705 = vmatpush1.msra.mxu0 0.0
  %4706 = vmatprep.subr.mxu0 0.0
  %4707 = vmatpush1.msra.mxu0 0.0
  %4708 = vmatprep.subr.mxu0 0.0
  %4709 = vmatpush1.msra.mxu0 0.0
  %4710 = vmatprep.subr.mxu0 0.0
  %4711 = vmatpush1.msra.mxu0 0.0
  %4712 = vmatprep.subr.mxu0 0.0
  %4713 = vmatpush1.msra.mxu0 0.0
  %4714 = vmatprep.subr.mxu0 0.0
  %4715 = vmatpush1.msra.mxu0 0.0
  %4716 = vmatprep.subr.mxu0 0.0
  %4717 = vmatpush1.msra.mxu0 0.0
  %4718 = vmatprep.subr.mxu0 0.0
  %4719 = vmatpush1.msra.mxu0 0.0
  %4720 = vmatprep.subr.mxu0 0.0
  %4721 = vmatpush1.msra.mxu0 0.0
  %4722 = vmatprep.subr.mxu0 0.0
  %4723 = vmatpush1.msra.mxu0 0.0
  %4724 = vmatprep.subr.mxu0 0.0
  %4725 = vmatpush1.msra.mxu0 0.0
  %4726 = vmatprep.subr.mxu0 0.0
  %4727 = vmatpush1.msra.mxu0 0.0
  %4728 = vmatprep.mubr.f32.mxu0 0.0
  %4729 = vmatmul.mubr.f32.gmra.mrb[0].mxu0 %v4644
  %v4730 = vpop.f32.mrb[0].mxu0
  %v4731 = vadd.f32 %v4662, %v4730
  %v4732 = vpop.f32.mrb[0].mxu0
  %4733 = vdwg.mxu0
  %v4734 = vadd.f32 %v4731, %v4563
  %v4735 = vsel %vm2426, %v4734, 0.0
  %4736 = vadd.xlane.f32.xlu0 %v4735
  %v4737 = vpop.xlane.xlu0 %4736
  %v4738 = vmul.f32 %v4737, %v905
  %v4739 = vsub.f32 %v4734, %v4738
  %v4740 = vmul.f32 %v4739, %v4739
  %v4741 = vsel %vm2426, %v4740, 0.0
  %4742 = vadd.xlane.f32.xlu0 %v4741
  %v4743 = vpop.xlane.xlu0 %4742
  %v4744 = vmul.f32 %v4743, %v905
  %v4745 = vadd.f32 %v4744, 1e-05
  %v4746 = vrsqrt.pop %v4745
  %v4747 = vmul.f32 %v4739, %v4746
  %v4748 = vrot.slane %v3508, 4
  %v4750 = vmul.f32 %v4747, %v4748
  %v4751 = vrot.slane %v3508, 5
  %v4753 = vadd.f32 %v4750, %v4751
  %v4754 = vld [vmem:[%s14] sm:$0xff]
  %v4755 = vld [vmem:[%s14 + $0x8] sm:$0xff]
  %v4756 = vld [vmem:[%s14 + $0x10] sm:$0xff]
  %v4757 = vld [vmem:[%s14 + $0x18] sm:$0xff]
  %v4758 = vld [vmem:[%s15 + $0x1] sm:$0x1]
  %v4760 = vsel %vm64, %v4753, 0
  %4762 = vmatprep.subr.mxu0 0.0
  %4763 = vmatpush1.msra.mxu0 %v4754
  %4764 = vmatprep.subr.mxu0 0.0
  %4765 = vmatpush1.msra.mxu0 %v4755
  %4766 = vmatprep.subr.mxu0 0.0
  %4767 = vmatpush1.msra.mxu0 %v4756
  %4768 = vmatprep.subr.mxu0 0.0
  %4769 = vmatpush1.msra.mxu0 %v4757
  %4770 = vmatprep.subr.mxu0 0.0
  %4771 = vmatpush1.msra.mxu0 0.0
  %4772 = vmatprep.subr.mxu0 0.0
  %4773 = vmatpush1.msra.mxu0 0.0
  %4774 = vmatprep.subr.mxu0 0.0
  %4775 = vmatpush1.msra.mxu0 0.0
  %4776 = vmatprep.subr.mxu0 0.0
  %4777 = vmatpush1.msra.mxu0 0.0
  %4778 = vmatprep.subr.mxu0 0.0
  %4779 = vmatpush1.msra.mxu0 0.0
  %4780 = vmatprep.subr.mxu0 0.0
  %4781 = vmatpush1.msra.mxu0 0.0
  %4782 = vmatprep.subr.mxu0 0.0
  %4783 = vmatpush1.msra.mxu0 0.0
  %4784 = vmatprep.subr.mxu0 0.0
  %4785 = vmatpush1.msra.mxu0 0.0
  %4786 = vmatprep.subr.mxu0 0.0
  %4787 = vmatpush1.msra.mxu0 0.0
  %4788 = vmatprep.subr.mxu0 0.0
  %4789 = vmatpush1.msra.mxu0 0.0
  %4790 = vmatprep.subr.mxu0 0.0
  %4791 = vmatpush1.msra.mxu0 0.0
  %4792 = vmatprep.subr.mxu0 0.0
  %4793 = vmatpush1.msra.mxu0 0.0
  %4794 = vmatprep.subr.mxu0 0.0
  %4795 = vmatpush1.msra.mxu0 0.0
  %4796 = vmatprep.subr.mxu0 0.0
  %4797 = vmatpush1.msra.mxu0 0.0
  %4798 = vmatprep.subr.mxu0 0.0
  %4799 = vmatpush1.msra.mxu0 0.0
  %4800 = vmatprep.subr.mxu0 0.0
  %4801 = vmatpush1.msra.mxu0 0.0
  %4802 = vmatprep.subr.mxu0 0.0
  %4803 = vmatpush1.msra.mxu0 0.0
  %4804 = vmatprep.subr.mxu0 0.0
  %4805 = vmatpush1.msra.mxu0 0.0
  %4806 = vmatprep.subr.mxu0 0.0
  %4807 = vmatpush1.msra.mxu0 0.0
  %4808 = vmatprep.subr.mxu0 0.0
  %4809 = vmatpush1.msra.mxu0 0.0
  %4810 = vmatprep.subr.mxu0 0.0
  %4811 = vmatpush1.msra.mxu0 0.0
  %4812 = vmatprep.subr.mxu0 0.0
  %4813 = vmatpush1.msra.mxu0 0.0
  %4814 = vmatprep.subr.mxu0 0.0
  %4815 = vmatpush1.msra.mxu0 0.0
  %4816 = vmatprep.subr.mxu0 0.0
  %4817 = vmatpush1.msra.mxu0 0.0
  %4818 = vmatprep.subr.mxu0 0.0
  %4819 = vmatpush1.msra.mxu0 0.0
  %4820 = vmatprep.subr.mxu0 0.0
  %4821 = vmatpush1.msra.mxu0 0.0
  %4822 = vmatprep.subr.mxu0 0.0
  %4823 = vmatpush1.msra.mxu0 0.0
  %4824 = vmatprep.subr.mxu0 0.0
  %4825 = vmatpush1.msra.mxu0 0.0
  %4826 = vmatprep.mubr.f32.mxu0 0.0
  %4827 = vmatmul.mubr.f32.gmra.mrb[0].mxu0 %v4760
  %v4828 = vpop.f32.mrb[0].mxu0
  %v4829 = vadd.f32 %v4758, %v4828
  %v4830 = vpop.f32.mrb[0].mxu0
  %4831 = vdwg.mxu0
  %v4832 = vsub.f32 0.0, %v4829
  %v4833 = vmul.f32 %v4832, 1.442695
  %v4834 = vpow.pop %v4833
  %v4835 = vadd.f32 %v4834, 1.0
  %v4836 = vrcp.pop %v4835
  %v4837 = vmul.f32 1.0, %v4836
  %4838 = vst [vmem:[%s16] sm:$0x1] %v4837
  // Predicated region
  $region66: #{ner_class_handler_forward.1} parent=0 // pred_check
    _
  $region67: #{ner_class_handler_forward.1} parent=0 // pred_check_branch
    %4840 = sbr.rel (0) target = $region69
  $region68: #{ner_class_handler_forward.1} parent=0 // pred_region
    _
  $region69: #{ner_class_handler_forward.1} parent=0 // pred_fallthru
    _
  // Predicated region
  $region70: #{ner_class_handler_forward.1} parent=0 // pred_check
    _
  $region71: #{ner_class_handler_forward.1} parent=0 // pred_check_branch
    %4842 = sbr.rel (0) target = $region73
  $region72: #{ner_class_handler_forward.1} parent=0 // pred_region
    _
  $region73: #{ner_class_handler_forward.1} parent=0 // pred_fallthru
    _

</llo_original>
